<compile_context>
chip_gen: v7x
topology: tpu7x:2x2x1
jax: 0.10.0
libtpu: 0.0.40
codegen_flags: <defaults>
</compile_context>

<pallas_src>
import jax
import jax.numpy as jnp
from jax.experimental import pallas as pl
from jax.experimental.pallas import tpu as pltpu

LEAKY_SLOPE = 0.01            # nn.LeakyReLU default negative_slope
OUT_FEATURES = 3 * 128 * 128  # 49152


# ---------------- fused decoder kernel ----------------

def _decoder_kernel(x_ref, w1_ref, b1_ref, w2_ref, b2_ref, o_ref):
    # h = leaky_relu(x @ W1 + b1)   -- tiny, recomputed per column tile (f32)
    h = jnp.dot(x_ref[...], w1_ref[...], preferred_element_type=jnp.float32)
    h = h + b1_ref[...]
    h = jnp.where(h > 0, h, LEAKY_SLOPE * h)

    # y_tile = sigmoid(h @ W2[:, tile] + b2[tile])
    # W2 / b2 arrive as bf16 (half the HBM bytes); MXU accumulates in f32.
    y = jnp.dot(h.astype(jnp.bfloat16), w2_ref[...],
                preferred_element_type=jnp.float32)
    y = y + b2_ref[...].astype(jnp.float32)
    o_ref[...] = jax.nn.sigmoid(y)


def fc_decoder_forward(z, params, *, tn=12288):
    """z: (B, latent_dim) f32 -> (B, 3, 128, 128) f32."""
    w1, b1, w2, b2 = params
    B, L = z.shape
    H = w1.shape[1]
    N = w2.shape[1]
    assert N % tn == 0 and (N // tn) % 2 == 0, "even grid keeps both v7x TCs busy"
    grid = (N // tn,)

    bytes_accessed = (
        w2.size * w2.dtype.itemsize + b2.size * b2.dtype.itemsize +   # streamed weights
        z.size * 4 + w1.size * 4 + b1.size * 4 +                      # small inputs
        B * N * 4                                                     # output
    )
    cost = pl.CostEstimate(
        flops=2 * B * H * N + 2 * B * L * H,
        transcendentals=B * N,           # sigmoid -> exp on EUP
        bytes_accessed=bytes_accessed,
    )

    y = pl.pallas_call(
        _decoder_kernel,
        out_shape=jax.ShapeDtypeStruct((B, N), jnp.float32),
        grid=grid,
        in_specs=[
            pl.BlockSpec((B, L), lambda j: (0, 0)),    # x      (full, tiny, cached)
            pl.BlockSpec((L, H), lambda j: (0, 0)),    # W1     (full, tiny, cached)
            pl.BlockSpec((1, H), lambda j: (0, 0)),    # b1     (full, tiny, cached)
            pl.BlockSpec((H, tn), lambda j: (0, j)),   # W2 column tile (bf16 stream)
            pl.BlockSpec((1, tn), lambda j: (0, j)),   # b2 tile         (bf16 stream)
        ],
        out_specs=pl.BlockSpec((B, tn), lambda j: (0, j)),
        compiler_params=pltpu.CompilerParams(
            dimension_semantics=("parallel",)),
        cost_estimate=cost,
    )(z, w1, b1.reshape(1, H), w2, b2.reshape(1, N))

    return y.reshape(B, 3, 128, 128)


# ---------------- AutoEncoder forward semantics (plain-JAX glue) ----------------

def reparameterize(mu, log_var, eps):
    std = jnp.exp(0.5 * log_var)
    return mu + eps * std


def autoencoder_forward(x_mu, x_log_var, eps, decoder_params, eval=False):
    """Mirrors AutoEncoder.forward given the encoder's outputs (mu, log_var).

    Returns (reconstruction, kl_div)."""
    # TODO(synk): the encoder is an injected nn.Module with no fixed architecture
    # in the spec; its outputs (x_mu, x_log_var) are taken as inputs here, and
    # torch.randn_like is replaced by an explicit `eps` argument.
    z = x_mu if eval else reparameterize(x_mu, x_log_var, eps)
    kl_div = -0.5 * jnp.sum(1.0 + x_log_var - x_mu ** 2 - jnp.exp(x_log_var))
    recon = fc_decoder_forward(z, decoder_params)
    return recon, kl_div


# ---------------- params ----------------

def init_params(key, latent_dim, hidden_dim):
    k1, k2, k3, k4 = jax.random.split(key, 4)
    # Stored as (in, out) so the kernel does x @ W + b (same math as nn.Linear).
    w1 = jax.random.normal(k1, (latent_dim, hidden_dim), jnp.float32) * 0.05
    b1 = jax.random.normal(k2, (hidden_dim,), jnp.float32) * 0.05
    # W2 / b2 stored in bf16: kernel is HBM-bandwidth bound on streaming W2.
    w2 = (jax.random.normal(k3, (hidden_dim, OUT_FEATURES), jnp.float32) * 0.05
          ).astype(jnp.bfloat16)
    b2 = (jax.random.normal(k4, (OUT_FEATURES,), jnp.float32) * 0.05
          ).astype(jnp.bfloat16)
    return w1, b1, w2, b2


if __name__ == "__main__":
    B, latent_dim, hidden_dim = 2, 8, 32
    key = jax.random.PRNGKey(0)
    k_mu, k_lv, k_eps, k_p = jax.random.split(key, 4)

    x_mu = jax.random.normal(k_mu, (B, latent_dim), jnp.float32)
    x_log_var = jax.random.normal(k_lv, (B, latent_dim), jnp.float32) * 0.1
    eps = jax.random.normal(k_eps, (B, latent_dim), jnp.float32)
    params = init_params(k_p, latent_dim, hidden_dim)

    fwd = jax.jit(autoencoder_forward)
    recon, kl_div = fwd(x_mu, x_log_var, eps, params)
    jax.block_until_ready((recon, kl_div))

    # ----- reference check vs full-precision (f32) math of the original module -----
    w1, b1, w2, b2 = params
    z_ref = x_mu + eps * jnp.exp(0.5 * x_log_var)
    kl_ref = -0.5 * jnp.sum(1.0 + x_log_var - x_mu ** 2 - jnp.exp(x_log_var))
    h_ref = z_ref @ w1 + b1
    h_ref = jnp.where(h_ref > 0, h_ref, LEAKY_SLOPE * h_ref)
    y_ref = jax.nn.sigmoid(
        h_ref @ w2.astype(jnp.float32) + b2.astype(jnp.float32)
    ).reshape(B, 3, 128, 128)

    assert recon.shape == (B, 3, 128, 128)
    assert recon.dtype == jnp.float32
    assert jnp.allclose(recon, y_ref, atol=2e-3, rtol=0), "decoder mismatch"
    assert jnp.allclose(kl_div, kl_ref, atol=1e-5, rtol=1e-5), "kl mismatch"
    assert bool(jnp.isfinite(kl_div))

    print("KERNEL_OK")
</pallas_src>

<mosaic_0001>
module attributes {stable_mosaic.version = 11 : i64} {
  func.func @_decoder_kernel(%arg0: i32, %arg1: memref<2x8xf32, #tpu.memory_space<vmem>>, %arg2: memref<8x32xf32, #tpu.memory_space<vmem>>, %arg3: memref<1x32xf32, #tpu.memory_space<vmem>>, %arg4: memref<32x12288xbf16, #tpu.memory_space<vmem>>, %arg5: memref<1x12288xbf16, #tpu.memory_space<vmem>>, %arg6: memref<2x12288xf32, #tpu.memory_space<vmem>>) attributes {dimension_semantics = [#tpu.dimension_semantics<parallel>], iteration_bounds = array<i64: 4>, scalar_prefetch = 0 : i64, scratch_operands = 0 : i64, tpu.core_type = #tpu.core_type<tc>, window_params = [{pipeline_mode = #tpu.pipeline_mode<synchronous>, transform_indices = @transform_0, window_bounds = array<i64: 2, 8>}, {pipeline_mode = #tpu.pipeline_mode<synchronous>, transform_indices = @transform_1, window_bounds = array<i64: 8, 32>}, {pipeline_mode = #tpu.pipeline_mode<synchronous>, transform_indices = @transform_2, window_bounds = array<i64: 1, 32>}, {transform_indices = @transform_3, window_bounds = array<i64: 32, 12288>}, {transform_indices = @transform_4, window_bounds = array<i64: 1, 12288>}, {transform_indices = @transform_5, window_bounds = array<i64: 2, 12288>}]} {
    %c0 = arith.constant 0 : index
    %c0_0 = arith.constant 0 : index
    %0 = vector.load %arg1[%c0, %c0_0] : memref<2x8xf32, #tpu.memory_space<vmem>>, vector<2x8xf32>
    %c0_1 = arith.constant 0 : index
    %c0_2 = arith.constant 0 : index
    %1 = vector.load %arg2[%c0_1, %c0_2] : memref<8x32xf32, #tpu.memory_space<vmem>>, vector<8x32xf32>
    %cst = arith.constant dense<0.000000e+00> : vector<2x32xf32>
    %2 = tpu.matmul %0, %1, %cst {dimension_numbers = #tpu.dot_dimension_numbers<[1], [0], [0], [1], [0, 0, 1, 1], [], []>} : vector<2x8xf32>, vector<8x32xf32>, vector<2x32xf32> -> vector<2x32xf32>
    %c0_3 = arith.constant 0 : index
    %c0_4 = arith.constant 0 : index
    %3 = vector.load %arg3[%c0_3, %c0_4] : memref<1x32xf32, #tpu.memory_space<vmem>>, vector<1x32xf32>
    %4 = vector.broadcast %3 : vector<1x32xf32> to vector<2x32xf32>
    %5 = arith.addf %2, %4 : vector<2x32xf32>
    %cst_5 = arith.constant 0.000000e+00 : f32
    %6 = vector.broadcast %cst_5 : f32 to vector<2x32xf32>
    %7 = arith.cmpf ogt, %5, %6 : vector<2x32xf32>
    %cst_6 = arith.constant 0.00999999977 : f32
    %8 = vector.broadcast %cst_6 : f32 to vector<2x32xf32>
    %9 = arith.mulf %8, %5 : vector<2x32xf32>
    %10 = arith.select %7, %5, %9 : vector<2x32xi1>, vector<2x32xf32>
    %11 = arith.truncf %10 : vector<2x32xf32> to vector<2x32xbf16>
    %c0_7 = arith.constant 0 : index
    %c0_8 = arith.constant 0 : index
    %12 = vector.load %arg4[%c0_7, %c0_8] : memref<32x12288xbf16, #tpu.memory_space<vmem>>, vector<32x12288xbf16>
    %cst_9 = arith.constant dense<0.000000e+00> : vector<2x12288xf32>
    %13 = tpu.matmul %11, %12, %cst_9 {dimension_numbers = #tpu.dot_dimension_numbers<[1], [0], [0], [1], [0, 0, 1, 1], [], []>} : vector<2x32xbf16>, vector<32x12288xbf16>, vector<2x12288xf32> -> vector<2x12288xf32>
    %c0_10 = arith.constant 0 : index
    %c0_11 = arith.constant 0 : index
    %14 = vector.load %arg5[%c0_10, %c0_11] : memref<1x12288xbf16, #tpu.memory_space<vmem>>, vector<1x12288xbf16>
    %15 = arith.extf %14 : vector<1x12288xbf16> to vector<1x12288xf32>
    %16 = vector.broadcast %15 : vector<1x12288xf32> to vector<2x12288xf32>
    %17 = arith.addf %13, %16 : vector<2x12288xf32>
    %18 = arith.negf %17 : vector<2x12288xf32>
    %19 = math.exp %18 : vector<2x12288xf32>
    %cst_12 = arith.constant 1.000000e+00 : f32
    %20 = vector.broadcast %cst_12 : f32 to vector<2x12288xf32>
    %21 = arith.addf %20, %19 : vector<2x12288xf32>
    %22 = arith.divf %20, %21 : vector<2x12288xf32>
    %c0_13 = arith.constant 0 : index
    %c0_14 = arith.constant 0 : index
    %23 = vector.load %arg6[%c0_13, %c0_14] : memref<2x12288xf32, #tpu.memory_space<vmem>>, vector<2x12288xf32>
    tpu.vector_store %arg6[%c0_13, %c0_14], %22 {strides = array<i32>} : memref<2x12288xf32, #tpu.memory_space<vmem>>, vector<2x12288xf32>,
    return
  }
  func.func @transform_0(%arg0: i32) -> (i32, i32) {
    %c0_i32 = arith.constant 0 : i32
    %c0_i32_0 = arith.constant 0 : i32
    %c0_i32_1 = arith.constant 0 : i32
    return %c0_i32, %c0_i32_0 : i32, i32
  }
  func.func @transform_1(%arg0: i32) -> (i32, i32) {
    %c0_i32 = arith.constant 0 : i32
    %c0_i32_0 = arith.constant 0 : i32
    %c0_i32_1 = arith.constant 0 : i32
    return %c0_i32, %c0_i32_0 : i32, i32
  }
  func.func @transform_2(%arg0: i32) -> (i32, i32) {
    %c0_i32 = arith.constant 0 : i32
    %c0_i32_0 = arith.constant 0 : i32
    %c0_i32_1 = arith.constant 0 : i32
    return %c0_i32, %c0_i32_0 : i32, i32
  }
  func.func @transform_3(%arg0: i32) -> (i32, i32) {
    %c0_i32 = arith.constant 0 : i32
    %c0_i32_0 = arith.constant 0 : i32
    return %c0_i32, %arg0 : i32, i32
  }
  func.func @transform_4(%arg0: i32) -> (i32, i32) {
    %c0_i32 = arith.constant 0 : i32
    %c0_i32_0 = arith.constant 0 : i32
    return %c0_i32, %arg0 : i32, i32
  }
  func.func @transform_5(%arg0: i32) -> (i32, i32) {
    %c0_i32 = arith.constant 0 : i32
    %c0_i32_0 = arith.constant 0 : i32
    return %c0_i32, %arg0 : i32, i32
  }
}

</mosaic_0001>

<llo_original>
// kernel: autoencoder_forward.1
$region0: #{autoencoder_forward.1}
  #allocation0 [shape = 'u32[]', space=smem, size = 0x4, offset = 0x4, fixed_abs, tag = 'smem constant byte address 0x4 - core index']
  #allocation1 [shape = 'u32[144,128]{1,0:T(1,128)}', space=vmem, size = 0x12000, scoped, tag = 'internal scratch']
  %s0 = inlined_call_operand.vmem [shape: f32[2,8], index: 0, kind: input, shape index: {}]
  %s1 = inlined_call_operand.hbm [shape: f32[8,32], index: 1, kind: input, shape index: {}]
  %s2 = inlined_call_operand.hbm [shape: f32[1,32], index: 2, kind: input, shape index: {}]
  %s3 = inlined_call_operand.hbm [shape: bf16[32,49152], index: 3, kind: input, shape index: {}]
  %s4 = inlined_call_operand.vmem [shape: bf16[1,49152], index: 4, kind: input, shape index: {}]
  %s5 = inlined_call_operand.vmem [shape: f32[2,49152], index: 5, kind: output, shape index: {}]
  %s6 = sld [smem:[#allocation0]]
  $region65: #{autoencoder_forward.1} parent=0
    _
  %s8 = ssub.s32 1, %s6
  %s9 = scalar_select 0, %s8, %s6
  $region1: #{autoencoder_forward.1} parent=0
    #allocation2 [shape = 'u8[4096]{0}', space=vmem, size = 0x1000, scoped, tag = 'input window, operand 1, single buffered']
    #allocation3 [shape = 's32[2]{0}', space=sflag, size = 0x8, scoped, tag = 'scoped memory for autoencoder_forward.1']
    #allocation4 [shape = 'u8[512]{0}', space=vmem, size = 0x400, scoped, tag = 'input window, operand 2, single buffered']
    #allocation5 [shape = 's32[1]{0}', space=sflag, size = 0x4, scoped, tag = 'scoped memory for autoencoder_forward.1']
    #allocation6 [shape = 'u8[1572864]{0}', space=vmem, size = 0x180000, scoped, tag = 'input window, operand 3']
    %10 = vsyncpa [#allocation3], 0
    %11 = vsyncpa [#allocation5], 0
    loop: start=0, step=1, limit=6
    $region2: #{autoencoder_forward.1} parent=1 // loop_pre_header
      _
    $region3: #{autoencoder_forward.1} parent=1 // loop_header
      %s13 = sphi 0, %s17
      %p14 = scmp.ge.s32.totalorder %s13, 6
      %s21 = sphi 0, %s21
      %s23 = sphi 0, %s21
      %s24 = sphi 0, %s23
      %s38 = sphi 0, %s24
      %s42 = sphi 0, %s42
      %s44 = sphi 0, %s42
      %s45 = sphi 0, %s44
      %s59 = sphi 0, %s45
      %s63 = sphi 0, %s63
      %s65 = sphi 0, %s63
      %s66 = sphi 0, %s65
      %s80 = sphi 0, %s66
      %s86 = sphi 0, %s88
      %s89 = sphi 0, %s86
      %s90 = sphi 0, %s89
      %s106 = sphi 0, %s90
      %s112 = sphi 0, %s114
      %s115 = sphi 0, %s112
      %s116 = sphi 0, %s115
      %s132 = sphi 0, %s116
      %s138 = sphi 0, %s140
      %s141 = sphi 0, %s138
      %s142 = sphi 0, %s141
      %s158 = sphi 0, %s142
    $region4: #{autoencoder_forward.1} parent=1 // loop_header_branch
      %16 = sbr.rel (%p14) target = $region8
    $region5: #{autoencoder_forward.1} parent=1 // loop_body
      %s18 = ssub.s32 %s13, 1
      %s19 = ssub.s32 %s13, 2
      %s20 = sadd.s32 %s13, 1
      %s22 = sadd.s32 %s21, 1
      %p25 = scmp.eq.s32.totalorder %s13, 3
      %p26 = scmp.ne.s32.totalorder %s21, %s23
      %p27 = scmp.eq.s32.totalorder %s13, 0
      %p28 = por %p26, %p27
      %p29 = scmp.ne.s32.totalorder %s21, %s23
      %p30 = scmp.eq.s32.totalorder %s18, 3
      %p31 = por %p29, %p30
      %p32 = scmp.ne.s32.totalorder %s23, %s24
      %p33 = scmp.eq.s32.totalorder %s18, 0
      %p34 = por %p32, %p33
      %p35 = scmp.ne.s32.totalorder %s23, %s24
      %p36 = scmp.eq.s32.totalorder %s19, 3
      %p37 = por %p35, %p36
      %p39 = scmp.ne.s32.totalorder %s24, %s38
      %p40 = scmp.eq.s32.totalorder %s19, 0
      %p41 = por %p39, %p40
      %s43 = sadd.s32 %s42, 1
      %p46 = scmp.eq.s32.totalorder %s13, 3
      %p47 = scmp.ne.s32.totalorder %s42, %s44
      %p48 = scmp.eq.s32.totalorder %s13, 0
      %p49 = por %p47, %p48
      %p50 = scmp.ne.s32.totalorder %s42, %s44
      %p51 = scmp.eq.s32.totalorder %s18, 3
      %p52 = por %p50, %p51
      %p53 = scmp.ne.s32.totalorder %s44, %s45
      %p54 = scmp.eq.s32.totalorder %s18, 0
      %p55 = por %p53, %p54
      %p56 = scmp.ne.s32.totalorder %s44, %s45
      %p57 = scmp.eq.s32.totalorder %s19, 3
      %p58 = por %p56, %p57
      %p60 = scmp.ne.s32.totalorder %s45, %s59
      %p61 = scmp.eq.s32.totalorder %s19, 0
      %p62 = por %p60, %p61
      %s64 = sadd.s32 %s63, 1
      %p67 = scmp.eq.s32.totalorder %s13, 3
      %p68 = scmp.ne.s32.totalorder %s63, %s65
      %p69 = scmp.eq.s32.totalorder %s13, 0
      %p70 = por %p68, %p69
      %p71 = scmp.ne.s32.totalorder %s63, %s65
      %p72 = scmp.eq.s32.totalorder %s18, 3
      %p73 = por %p71, %p72
      %p74 = scmp.ne.s32.totalorder %s65, %s66
      %p75 = scmp.eq.s32.totalorder %s18, 0
      %p76 = por %p74, %p75
      %p77 = scmp.ne.s32.totalorder %s65, %s66
      %p78 = scmp.eq.s32.totalorder %s19, 3
      %p79 = por %p77, %p78
      %p81 = scmp.ne.s32.totalorder %s66, %s80
      %p82 = scmp.eq.s32.totalorder %s19, 0
      %p83 = por %p81, %p82
      %s84 = ssub.s32 %s13, %s20
      %p85 = scmp.eq.s32.totalorder %s84, 0
      %s87 = sadd.s32 %s86, 1
      %s88 = scalar_select %p85, %s86, %s87
      %p91 = pneg %p85
      %p92 = scmp.eq.s32.totalorder %s13, 3
      %p93 = por %p91, %p92
      %p94 = scmp.ne.s32.totalorder %s86, %s89
      %p95 = scmp.eq.s32.totalorder %s13, 0
      %p96 = por %p94, %p95
      %p97 = scmp.ne.s32.totalorder %s86, %s89
      %p98 = scmp.eq.s32.totalorder %s18, 3
      %p99 = por %p97, %p98
      %p100 = scmp.ne.s32.totalorder %s89, %s90
      %p101 = scmp.eq.s32.totalorder %s18, 0
      %p102 = por %p100, %p101
      %p103 = scmp.ne.s32.totalorder %s89, %s90
      %p104 = scmp.eq.s32.totalorder %s19, 3
      %p105 = por %p103, %p104
      %p107 = scmp.ne.s32.totalorder %s90, %s106
      %p108 = scmp.eq.s32.totalorder %s19, 0
      %p109 = por %p107, %p108
      %s110 = ssub.s32 %s13, %s20
      %p111 = scmp.eq.s32.totalorder %s110, 0
      %s113 = sadd.s32 %s112, 1
      %s114 = scalar_select %p111, %s112, %s113
      %p117 = pneg %p111
      %p118 = scmp.eq.s32.totalorder %s13, 3
      %p119 = por %p117, %p118
      %p120 = scmp.ne.s32.totalorder %s112, %s115
      %p121 = scmp.eq.s32.totalorder %s13, 0
      %p122 = por %p120, %p121
      %p123 = scmp.ne.s32.totalorder %s112, %s115
      %p124 = scmp.eq.s32.totalorder %s18, 3
      %p125 = por %p123, %p124
      %p126 = scmp.ne.s32.totalorder %s115, %s116
      %p127 = scmp.eq.s32.totalorder %s18, 0
      %p128 = por %p126, %p127
      %p129 = scmp.ne.s32.totalorder %s115, %s116
      %p130 = scmp.eq.s32.totalorder %s19, 3
      %p131 = por %p129, %p130
      %p133 = scmp.ne.s32.totalorder %s116, %s132
      %p134 = scmp.eq.s32.totalorder %s19, 0
      %p135 = por %p133, %p134
      %s136 = ssub.s32 %s13, %s20
      %p137 = scmp.eq.s32.totalorder %s136, 0
      %s139 = sadd.s32 %s138, 1
      %s140 = scalar_select %p137, %s138, %s139
      %p143 = pneg %p137
      %p144 = scmp.eq.s32.totalorder %s13, 3
      %p145 = por %p143, %p144
      %p146 = scmp.ne.s32.totalorder %s138, %s141
      %p147 = scmp.eq.s32.totalorder %s13, 0
      %p148 = por %p146, %p147
      %p149 = scmp.ne.s32.totalorder %s138, %s141
      %p150 = scmp.eq.s32.totalorder %s18, 3
      %p151 = por %p149, %p150
      %p152 = scmp.ne.s32.totalorder %s141, %s142
      %p153 = scmp.eq.s32.totalorder %s18, 0
      %p154 = por %p152, %p153
      %p155 = scmp.ne.s32.totalorder %s141, %s142
      %p156 = scmp.eq.s32.totalorder %s19, 3
      %p157 = por %p155, %p156
      %p159 = scmp.ne.s32.totalorder %s142, %s158
      %p160 = scmp.eq.s32.totalorder %s19, 0
      %p161 = por %p159, %p160
      %p162 = scmp.le.s32.totalorder 1, %s13
      %p163 = scmp.lt.s32.totalorder %s13, 5
      %p164 = pnand %p162, %p163
      %p165 = pneg %p164
      // Predicated region
      $region9: #{autoencoder_forward.1} parent=5 // pred_check
        _
      $region10: #{autoencoder_forward.1} parent=5 // pred_check_branch
        %167 = sbr.rel (%p164) target = $region12
      $region11: #{autoencoder_forward.1} parent=5 // pred_region
        %s168 = ssub.s32 %s13, 1
        // Predicated region
        $region13: #{autoencoder_forward.1} parent=11 // pred_check
          %p169 = pneg %p34
        $region14: #{autoencoder_forward.1} parent=11 // pred_check_branch
          %171 = sbr.rel (%p169) target = $region16
        $region15: #{autoencoder_forward.1} parent=11 // pred_region
          _
        $region16: #{autoencoder_forward.1} parent=11 // pred_fallthru
          _
        // Predicated region
        $region17: #{autoencoder_forward.1} parent=11 // pred_check
          %p172 = pneg %p55
        $region18: #{autoencoder_forward.1} parent=11 // pred_check_branch
          %174 = sbr.rel (%p172) target = $region20
        $region19: #{autoencoder_forward.1} parent=11 // pred_region
          %s176 = ssub.s32 128, 128
          %177 = vsyncadd [#allocation3], %s176
          %s179 = sshll.u32 [#allocation2], 4
          %s180 = int_to_ptr.vmem [resolvable:$true] %s179
          %182 = dma.hbm_to_vmem [thread:$0]  %s1, 128, %s180, [#allocation3]
        $region20: #{autoencoder_forward.1} parent=11 // pred_fallthru
          _
        // Predicated region
        $region21: #{autoencoder_forward.1} parent=11 // pred_check
          %p183 = pneg %p76
        $region22: #{autoencoder_forward.1} parent=11 // pred_check_branch
          %185 = sbr.rel (%p183) target = $region24
        $region23: #{autoencoder_forward.1} parent=11 // pred_region
          %s187 = ssub.s32 16, 16
          %188 = vsyncadd [#allocation5], %s187
          %s190 = sshll.u32 [#allocation4], 4
          %s191 = int_to_ptr.vmem [resolvable:$true] %s190
          %193 = dma.hbm_to_vmem [thread:$0]  %s2, 16, %s191, [#allocation5]
        $region24: #{autoencoder_forward.1} parent=11 // pred_fallthru
          _
      $region12: #{autoencoder_forward.1} parent=5 // pred_fallthru
        _
      %p194 = scmp.lt.s32.totalorder %s13, 4
      // Predicated region
      $region25: #{autoencoder_forward.1} parent=5 // pred_check
        %p195 = pneg %p194
      $region26: #{autoencoder_forward.1} parent=5 // pred_check_branch
        %197 = sbr.rel (%p195) target = $region28
      $region27: #{autoencoder_forward.1} parent=5 // pred_region
        // Predicated region
        $region29: #{autoencoder_forward.1} parent=27 // pred_check
          %p198 = pneg %p96
        $region30: #{autoencoder_forward.1} parent=27 // pred_check_branch
          %200 = sbr.rel (%p198) target = $region32
        $region31: #{autoencoder_forward.1} parent=27 // pred_region
          %s201 = sand.u32 %s13, 1
          %s202 = scalar_lea.sflag [#allocation3], %s201
          %s203 = sand.u32 %s86, 1
          %s204 = smul.addr %s203, 1536
          %s205 = scalar_lea.vmem [#allocation6], %s204
          %s206 = smul.u32 96, %s13
          %s208 = ssub.s32 24576, 24576
          %209 = vsyncadd %s202, %s208
          %s210 = smul.addr %s206, 64
          %s211 = scalar_lea.hbm %s3, %s210
          %s212 = sshll.u32 %s205, 4
          %s213 = int_to_ptr.vmem [resolvable:$true] %s212
          %218 = dma.hbm_to_vmem [thread:$0]  %s211, 24576, %s213, %s202, 24576, 6144, 384
        $region32: #{autoencoder_forward.1} parent=27 // pred_fallthru
          _
        // Predicated region
        $region33: #{autoencoder_forward.1} parent=27 // pred_check
          %p219 = pneg %p122
        $region34: #{autoencoder_forward.1} parent=27 // pred_check_branch
          %221 = sbr.rel (%p219) target = $region36
        $region35: #{autoencoder_forward.1} parent=27 // pred_region
          %s222 = smul.u32 96, %s13
          %p223 = scmp.lt.s32.totalorder %s222, 383
          %s224 = scalar_select %p223, %s222, 383
          %s225 = scalar_lea.vmem %s4, %s224
          %s226 = smul.u32 96, %s13
        $region36: #{autoencoder_forward.1} parent=27 // pred_fallthru
          _
      $region28: #{autoencoder_forward.1} parent=5 // pred_fallthru
        _
      %p227 = scmp.le.s32.totalorder 1, %s13
      %p228 = scmp.lt.s32.totalorder %s13, 5
      %p229 = pnand %p227, %p228
      %p230 = pneg %p229
      // Predicated region
      $region37: #{autoencoder_forward.1} parent=5 // pred_check
        _
      $region38: #{autoencoder_forward.1} parent=5 // pred_check_branch
        %232 = sbr.rel (%p229) target = $region40
      $region39: #{autoencoder_forward.1} parent=5 // pred_region
        %s233 = ssub.s32 %s13, 1
        // Predicated region
        $region41: #{autoencoder_forward.1} parent=39 // pred_check
          %p234 = pneg %p55
        $region42: #{autoencoder_forward.1} parent=39 // pred_check_branch
          %236 = sbr.rel (%p234) target = $region44
        $region43: #{autoencoder_forward.1} parent=39 // pred_region
          %237 = dma.done [#allocation3], 128
        $region44: #{autoencoder_forward.1} parent=39 // pred_fallthru
          _
        // Predicated region
        $region45: #{autoencoder_forward.1} parent=39 // pred_check
          %p238 = pneg %p76
        $region46: #{autoencoder_forward.1} parent=39 // pred_check_branch
          %240 = sbr.rel (%p238) target = $region48
        $region47: #{autoencoder_forward.1} parent=39 // pred_region
          %241 = dma.done [#allocation5], 16
        $region48: #{autoencoder_forward.1} parent=39 // pred_fallthru
          _
        %s242 = sand.u32 %s18, 1
        %s243 = scalar_lea.sflag [#allocation3], %s242
        %s244 = sand.u32 %s89, 1
        %s245 = smul.addr %s244, 1536
        %s246 = scalar_lea.vmem [#allocation6], %s245
        // Predicated region
        $region49: #{autoencoder_forward.1} parent=39 // pred_check
          %p247 = pneg %p102
        $region50: #{autoencoder_forward.1} parent=39 // pred_check_branch
          %249 = sbr.rel (%p247) target = $region52
        $region51: #{autoencoder_forward.1} parent=39 // pred_region
          %250 = dma.done %s243, 24576
        $region52: #{autoencoder_forward.1} parent=39 // pred_fallthru
          _
        %p251 = pneg %p34
        %p252 = pneg %p31
        %p253 = pneg %p55
        %p254 = pneg %p52
        %p255 = pneg %p76
        %p256 = pneg %p73
        %s257 = sand.u32 %s18, 1
        %s258 = scalar_lea.sflag [#allocation3], %s257
        %s259 = sand.u32 %s89, 1
        %s260 = smul.addr %s259, 1536
        %s261 = scalar_lea.vmem [#allocation6], %s260
        %p262 = pneg %p102
        %p263 = pneg %p99
        %s264 = smul.u32 96, %s18
        %p265 = scmp.lt.s32.totalorder %s264, 383
        %s266 = scalar_select %p265, %s264, 383
        %s267 = scalar_lea.vmem %s4, %s266
        %p268 = pneg %p128
        %p269 = pneg %p125
        %p270 = pneg %p154
        %p271 = pneg %p151
        %s272 = smul.u32 96, %s18
        %p273 = scmp.lt.s32.totalorder %s272, 383
        %s274 = scalar_select %p273, %s272, 383
        %s275 = smul.addr %s274, 2
        %s276 = scalar_lea.vmem %s5, %s275
        %s277 = smul.u32 96, %s18
        %s278 = smul.u32 96, %s18
        %p279 = scmp.lt.s32.totalorder %s278, 383
        %s280 = scalar_select %p279, %s278, 383
        %s281 = scalar_lea.vmem %s4, %s280
        %s282 = smul.u32 96, %s18
        %s283 = smul.u32 96, %s18
        %p284 = scmp.lt.s32.totalorder %s283, 383
        %s285 = scalar_select %p284, %s283, 383
        %s286 = smul.addr %s285, 2
        %s287 = scalar_lea.vmem %s5, %s286
        %s288 = smul.u32 96, %s18
        %v290 = vld [vmem:[%s0] sm:$0x3]
        %v291 = vld [vmem:[#allocation2] sm:$0xff]
        %v292 = vld [vmem:[#allocation4] sm:$0x1]
        %v294 = vlaneseq
        %v295 = vshrl.u32 %v294, 7
        %v296 = vsub.s32 0, %v295
        %v297 = vrot.slane %v292, %v296
        %vm299 = vcmask 64512
        %v301 = vsel %vm299, %v290, 0
        %303 = vmatprep.subr.mxu0 0.0
        %304 = vmatpush1.msra.mxu0 %v291
        %305 = vmatprep.subr.mxu0 0.0
        %306 = vmatpush1.msra.mxu0 0.0
        %307 = vmatprep.subr.mxu0 0.0
        %308 = vmatpush1.msra.mxu0 0.0
        %309 = vmatprep.subr.mxu0 0.0
        %310 = vmatpush1.msra.mxu0 0.0
        %311 = vmatprep.subr.mxu0 0.0
        %312 = vmatpush1.msra.mxu0 0.0
        %313 = vmatprep.subr.mxu0 0.0
        %314 = vmatpush1.msra.mxu0 0.0
        %315 = vmatprep.subr.mxu0 0.0
        %316 = vmatpush1.msra.mxu0 0.0
        %317 = vmatprep.subr.mxu0 0.0
        %318 = vmatpush1.msra.mxu0 0.0
        %319 = vmatprep.subr.mxu0 0.0
        %320 = vmatpush1.msra.mxu0 0.0
        %321 = vmatprep.subr.mxu0 0.0
        %322 = vmatpush1.msra.mxu0 0.0
        %323 = vmatprep.subr.mxu0 0.0
        %324 = vmatpush1.msra.mxu0 0.0
        %325 = vmatprep.subr.mxu0 0.0
        %326 = vmatpush1.msra.mxu0 0.0
        %327 = vmatprep.subr.mxu0 0.0
        %328 = vmatpush1.msra.mxu0 0.0
        %329 = vmatprep.subr.mxu0 0.0
        %330 = vmatpush1.msra.mxu0 0.0
        %331 = vmatprep.subr.mxu0 0.0
        %332 = vmatpush1.msra.mxu0 0.0
        %333 = vmatprep.subr.mxu0 0.0
        %334 = vmatpush1.msra.mxu0 0.0
        %335 = vmatprep.subr.mxu0 0.0
        %336 = vmatpush1.msra.mxu0 0.0
        %337 = vmatprep.subr.mxu0 0.0
        %338 = vmatpush1.msra.mxu0 0.0
        %339 = vmatprep.subr.mxu0 0.0
        %340 = vmatpush1.msra.mxu0 0.0
        %341 = vmatprep.subr.mxu0 0.0
        %342 = vmatpush1.msra.mxu0 0.0
        %343 = vmatprep.subr.mxu0 0.0
        %344 = vmatpush1.msra.mxu0 0.0
        %345 = vmatprep.subr.mxu0 0.0
        %346 = vmatpush1.msra.mxu0 0.0
        %347 = vmatprep.subr.mxu0 0.0
        %348 = vmatpush1.msra.mxu0 0.0
        %349 = vmatprep.subr.mxu0 0.0
        %350 = vmatpush1.msra.mxu0 0.0
        %351 = vmatprep.subr.mxu0 0.0
        %352 = vmatpush1.msra.mxu0 0.0
        %353 = vmatprep.subr.mxu0 0.0
        %354 = vmatpush1.msra.mxu0 0.0
        %355 = vmatprep.subr.mxu0 0.0
        %356 = vmatpush1.msra.mxu0 0.0
        %357 = vmatprep.subr.mxu0 0.0
        %358 = vmatpush1.msra.mxu0 0.0
        %359 = vmatprep.subr.mxu0 0.0
        %360 = vmatpush1.msra.mxu0 0.0
        %361 = vmatprep.subr.mxu0 0.0
        %362 = vmatpush1.msra.mxu0 0.0
        %363 = vmatprep.subr.mxu0 0.0
        %364 = vmatpush1.msra.mxu0 0.0
        %365 = vmatprep.subr.mxu0 0.0
        %366 = vmatpush1.msra.mxu0 0.0
        %367 = vmatprep.mubr.f32.mxu0 0.0
        %368 = vmatmul.mubr.f32.gmra.mrb[0].mxu0 %v301
        %v369 = vpop.f32.mrb[0].mxu0
        %v370 = vadd.f32 %v297, %v369
        %v371 = vpop.f32.mrb[0].mxu0
        %372 = vdwg.mxu0
        %vm373 = vcmp.gt.f32.partialorder %v370, 0.0
        %v374 = vmul.f32 %v370, 0.01
        %v375 = vsel %vm373, %v370, %v374
        %v376 = vpack.c.bf16 %v375, %v375
        %v377 = vld [vmem:[%s246] sm:$0xff]
        %v378 = vld [vmem:[%s246 + $0x8] sm:$0xff]
        %v379 = vld [vmem:[%s246 + $0x10] sm:$0xff]
        %v380 = vld [vmem:[%s246 + $0x18] sm:$0xff]
        %v381 = vld [vmem:[%s246 + $0x20] sm:$0xff]
        %v382 = vld [vmem:[%s246 + $0x28] sm:$0xff]
        %v383 = vld [vmem:[%s246 + $0x30] sm:$0xff]
        %v384 = vld [vmem:[%s246 + $0x38] sm:$0xff]
        %v385 = vld [vmem:[%s246 + $0x40] sm:$0xff]
        %v386 = vld [vmem:[%s246 + $0x48] sm:$0xff]
        %v387 = vld [vmem:[%s246 + $0x50] sm:$0xff]
        %v388 = vld [vmem:[%s246 + $0x58] sm:$0xff]
        %v389 = vld [vmem:[%s246 + $0x60] sm:$0xff]
        %v390 = vld [vmem:[%s246 + $0x68] sm:$0xff]
        %v391 = vld [vmem:[%s246 + $0x70] sm:$0xff]
        %v392 = vld [vmem:[%s246 + $0x78] sm:$0xff]
        %v393 = vld [vmem:[%s246 + $0x80] sm:$0xff]
        %v394 = vld [vmem:[%s246 + $0x88] sm:$0xff]
        %v395 = vld [vmem:[%s246 + $0x90] sm:$0xff]
        %v396 = vld [vmem:[%s246 + $0x98] sm:$0xff]
        %v397 = vld [vmem:[%s246 + $0xa0] sm:$0xff]
        %v398 = vld [vmem:[%s246 + $0xa8] sm:$0xff]
        %v399 = vld [vmem:[%s246 + $0xb0] sm:$0xff]
        %v400 = vld [vmem:[%s246 + $0xb8] sm:$0xff]
        %v401 = vld [vmem:[%s246 + $0xc0] sm:$0xff]
        %v402 = vld [vmem:[%s246 + $0xc8] sm:$0xff]
        %v403 = vld [vmem:[%s246 + $0xd0] sm:$0xff]
        %v404 = vld [vmem:[%s246 + $0xd8] sm:$0xff]
        %v405 = vld [vmem:[%s246 + $0xe0] sm:$0xff]
        %v406 = vld [vmem:[%s246 + $0xe8] sm:$0xff]
        %v407 = vld [vmem:[%s246 + $0xf0] sm:$0xff]
        %v408 = vld [vmem:[%s246 + $0xf8] sm:$0xff]
        %v409 = vld [vmem:[%s246 + $0x100] sm:$0xff]
        %v410 = vld [vmem:[%s246 + $0x108] sm:$0xff]
        %v411 = vld [vmem:[%s246 + $0x110] sm:$0xff]
        %v412 = vld [vmem:[%s246 + $0x118] sm:$0xff]
        %v413 = vld [vmem:[%s246 + $0x120] sm:$0xff]
        %v414 = vld [vmem:[%s246 + $0x128] sm:$0xff]
        %v415 = vld [vmem:[%s246 + $0x130] sm:$0xff]
        %v416 = vld [vmem:[%s246 + $0x138] sm:$0xff]
        %v417 = vld [vmem:[%s246 + $0x140] sm:$0xff]
        %v418 = vld [vmem:[%s246 + $0x148] sm:$0xff]
        %v419 = vld [vmem:[%s246 + $0x150] sm:$0xff]
        %v420 = vld [vmem:[%s246 + $0x158] sm:$0xff]
        %v421 = vld [vmem:[%s246 + $0x160] sm:$0xff]
        %v422 = vld [vmem:[%s246 + $0x168] sm:$0xff]
        %v423 = vld [vmem:[%s246 + $0x170] sm:$0xff]
        %v424 = vld [vmem:[%s246 + $0x178] sm:$0xff]
        %v425 = vld [vmem:[%s246 + $0x180] sm:$0xff]
        %v426 = vld [vmem:[%s246 + $0x188] sm:$0xff]
        %v427 = vld [vmem:[%s246 + $0x190] sm:$0xff]
        %v428 = vld [vmem:[%s246 + $0x198] sm:$0xff]
        %v429 = vld [vmem:[%s246 + $0x1a0] sm:$0xff]
        %v430 = vld [vmem:[%s246 + $0x1a8] sm:$0xff]
        %v431 = vld [vmem:[%s246 + $0x1b0] sm:$0xff]
        %v432 = vld [vmem:[%s246 + $0x1b8] sm:$0xff]
        %v433 = vld [vmem:[%s246 + $0x1c0] sm:$0xff]
        %v434 = vld [vmem:[%s246 + $0x1c8] sm:$0xff]
        %v435 = vld [vmem:[%s246 + $0x1d0] sm:$0xff]
        %v436 = vld [vmem:[%s246 + $0x1d8] sm:$0xff]
        %v437 = vld [vmem:[%s246 + $0x1e0] sm:$0xff]
        %v438 = vld [vmem:[%s246 + $0x1e8] sm:$0xff]
        %v439 = vld [vmem:[%s246 + $0x1f0] sm:$0xff]
        %v440 = vld [vmem:[%s246 + $0x1f8] sm:$0xff]
        %v441 = vld [vmem:[%s246 + $0x200] sm:$0xff]
        %v442 = vld [vmem:[%s246 + $0x208] sm:$0xff]
        %v443 = vld [vmem:[%s246 + $0x210] sm:$0xff]
        %v444 = vld [vmem:[%s246 + $0x218] sm:$0xff]
        %v445 = vld [vmem:[%s246 + $0x220] sm:$0xff]
        %v446 = vld [vmem:[%s246 + $0x228] sm:$0xff]
        %v447 = vld [vmem:[%s246 + $0x230] sm:$0xff]
        %v448 = vld [vmem:[%s246 + $0x238] sm:$0xff]
        %v449 = vld [vmem:[%s246 + $0x240] sm:$0xff]
        %v450 = vld [vmem:[%s246 + $0x248] sm:$0xff]
        %v451 = vld [vmem:[%s246 + $0x250] sm:$0xff]
        %v452 = vld [vmem:[%s246 + $0x258] sm:$0xff]
        %v453 = vld [vmem:[%s246 + $0x260] sm:$0xff]
        %v454 = vld [vmem:[%s246 + $0x268] sm:$0xff]
        %v455 = vld [vmem:[%s246 + $0x270] sm:$0xff]
        %v456 = vld [vmem:[%s246 + $0x278] sm:$0xff]
        %v457 = vld [vmem:[%s246 + $0x280] sm:$0xff]
        %v458 = vld [vmem:[%s246 + $0x288] sm:$0xff]
        %v459 = vld [vmem:[%s246 + $0x290] sm:$0xff]
        %v460 = vld [vmem:[%s246 + $0x298] sm:$0xff]
        %v461 = vld [vmem:[%s246 + $0x2a0] sm:$0xff]
        %v462 = vld [vmem:[%s246 + $0x2a8] sm:$0xff]
        %v463 = vld [vmem:[%s246 + $0x2b0] sm:$0xff]
        %v464 = vld [vmem:[%s246 + $0x2b8] sm:$0xff]
        %v465 = vld [vmem:[%s246 + $0x2c0] sm:$0xff]
        %v466 = vld [vmem:[%s246 + $0x2c8] sm:$0xff]
        %v467 = vld [vmem:[%s246 + $0x2d0] sm:$0xff]
        %v468 = vld [vmem:[%s246 + $0x2d8] sm:$0xff]
        %v469 = vld [vmem:[%s246 + $0x2e0] sm:$0xff]
        %v470 = vld [vmem:[%s246 + $0x2e8] sm:$0xff]
        %v471 = vld [vmem:[%s246 + $0x2f0] sm:$0xff]
        %v472 = vld [vmem:[%s246 + $0x2f8] sm:$0xff]
        %v473 = vld [vmem:[%s246 + $0x300] sm:$0xff]
        %v474 = vld [vmem:[%s246 + $0x308] sm:$0xff]
        %v475 = vld [vmem:[%s246 + $0x310] sm:$0xff]
        %v476 = vld [vmem:[%s246 + $0x318] sm:$0xff]
        %v477 = vld [vmem:[%s246 + $0x320] sm:$0xff]
        %v478 = vld [vmem:[%s246 + $0x328] sm:$0xff]
        %v479 = vld [vmem:[%s246 + $0x330] sm:$0xff]
        %v480 = vld [vmem:[%s246 + $0x338] sm:$0xff]
        %v481 = vld [vmem:[%s246 + $0x340] sm:$0xff]
        %v482 = vld [vmem:[%s246 + $0x348] sm:$0xff]
        %v483 = vld [vmem:[%s246 + $0x350] sm:$0xff]
        %v484 = vld [vmem:[%s246 + $0x358] sm:$0xff]
        %v485 = vld [vmem:[%s246 + $0x360] sm:$0xff]
        %v486 = vld [vmem:[%s246 + $0x368] sm:$0xff]
        %v487 = vld [vmem:[%s246 + $0x370] sm:$0xff]
        %v488 = vld [vmem:[%s246 + $0x378] sm:$0xff]
        %v489 = vld [vmem:[%s246 + $0x380] sm:$0xff]
        %v490 = vld [vmem:[%s246 + $0x388] sm:$0xff]
        %v491 = vld [vmem:[%s246 + $0x390] sm:$0xff]
        %v492 = vld [vmem:[%s246 + $0x398] sm:$0xff]
        %v493 = vld [vmem:[%s246 + $0x3a0] sm:$0xff]
        %v494 = vld [vmem:[%s246 + $0x3a8] sm:$0xff]
        %v495 = vld [vmem:[%s246 + $0x3b0] sm:$0xff]
        %v496 = vld [vmem:[%s246 + $0x3b8] sm:$0xff]
        %v497 = vld [vmem:[%s246 + $0x3c0] sm:$0xff]
        %v498 = vld [vmem:[%s246 + $0x3c8] sm:$0xff]
        %v499 = vld [vmem:[%s246 + $0x3d0] sm:$0xff]
        %v500 = vld [vmem:[%s246 + $0x3d8] sm:$0xff]
        %v501 = vld [vmem:[%s246 + $0x3e0] sm:$0xff]
        %v502 = vld [vmem:[%s246 + $0x3e8] sm:$0xff]
        %v503 = vld [vmem:[%s246 + $0x3f0] sm:$0xff]
        %v504 = vld [vmem:[%s246 + $0x3f8] sm:$0xff]
        %v505 = vld [vmem:[%s246 + $0x400] sm:$0xff]
        %v506 = vld [vmem:[%s246 + $0x408] sm:$0xff]
        %v507 = vld [vmem:[%s246 + $0x410] sm:$0xff]
        %v508 = vld [vmem:[%s246 + $0x418] sm:$0xff]
        %v509 = vld [vmem:[%s246 + $0x420] sm:$0xff]
        %v510 = vld [vmem:[%s246 + $0x428] sm:$0xff]
        %v511 = vld [vmem:[%s246 + $0x430] sm:$0xff]
        %v512 = vld [vmem:[%s246 + $0x438] sm:$0xff]
        %v513 = vld [vmem:[%s246 + $0x440] sm:$0xff]
        %v514 = vld [vmem:[%s246 + $0x448] sm:$0xff]
        %v515 = vld [vmem:[%s246 + $0x450] sm:$0xff]
        %v516 = vld [vmem:[%s246 + $0x458] sm:$0xff]
        %v517 = vld [vmem:[%s246 + $0x460] sm:$0xff]
        %v518 = vld [vmem:[%s246 + $0x468] sm:$0xff]
        %v519 = vld [vmem:[%s246 + $0x470] sm:$0xff]
        %v520 = vld [vmem:[%s246 + $0x478] sm:$0xff]
        %v521 = vld [vmem:[%s246 + $0x480] sm:$0xff]
        %v522 = vld [vmem:[%s246 + $0x488] sm:$0xff]
        %v523 = vld [vmem:[%s246 + $0x490] sm:$0xff]
        %v524 = vld [vmem:[%s246 + $0x498] sm:$0xff]
        %v525 = vld [vmem:[%s246 + $0x4a0] sm:$0xff]
        %v526 = vld [vmem:[%s246 + $0x4a8] sm:$0xff]
        %v527 = vld [vmem:[%s246 + $0x4b0] sm:$0xff]
        %v528 = vld [vmem:[%s246 + $0x4b8] sm:$0xff]
        %v529 = vld [vmem:[%s246 + $0x4c0] sm:$0xff]
        %v530 = vld [vmem:[%s246 + $0x4c8] sm:$0xff]
        %v531 = vld [vmem:[%s246 + $0x4d0] sm:$0xff]
        %v532 = vld [vmem:[%s246 + $0x4d8] sm:$0xff]
        %v533 = vld [vmem:[%s246 + $0x4e0] sm:$0xff]
        %v534 = vld [vmem:[%s246 + $0x4e8] sm:$0xff]
        %v535 = vld [vmem:[%s246 + $0x4f0] sm:$0xff]
        %v536 = vld [vmem:[%s246 + $0x4f8] sm:$0xff]
        %v537 = vld [vmem:[%s246 + $0x500] sm:$0xff]
        %v538 = vld [vmem:[%s246 + $0x508] sm:$0xff]
        %v539 = vld [vmem:[%s246 + $0x510] sm:$0xff]
        %v540 = vld [vmem:[%s246 + $0x518] sm:$0xff]
        %v541 = vld [vmem:[%s246 + $0x520] sm:$0xff]
        %v542 = vld [vmem:[%s246 + $0x528] sm:$0xff]
        %v543 = vld [vmem:[%s246 + $0x530] sm:$0xff]
        %v544 = vld [vmem:[%s246 + $0x538] sm:$0xff]
        %v545 = vld [vmem:[%s246 + $0x540] sm:$0xff]
        %v546 = vld [vmem:[%s246 + $0x548] sm:$0xff]
        %v547 = vld [vmem:[%s246 + $0x550] sm:$0xff]
        %v548 = vld [vmem:[%s246 + $0x558] sm:$0xff]
        %v549 = vld [vmem:[%s246 + $0x560] sm:$0xff]
        %v550 = vld [vmem:[%s246 + $0x568] sm:$0xff]
        %v551 = vld [vmem:[%s246 + $0x570] sm:$0xff]
        %v552 = vld [vmem:[%s246 + $0x578] sm:$0xff]
        %v553 = vld [vmem:[%s246 + $0x580] sm:$0xff]
        %v554 = vld [vmem:[%s246 + $0x588] sm:$0xff]
        %v555 = vld [vmem:[%s246 + $0x590] sm:$0xff]
        %v556 = vld [vmem:[%s246 + $0x598] sm:$0xff]
        %v557 = vld [vmem:[%s246 + $0x5a0] sm:$0xff]
        %v558 = vld [vmem:[%s246 + $0x5a8] sm:$0xff]
        %v559 = vld [vmem:[%s246 + $0x5b0] sm:$0xff]
        %v560 = vld [vmem:[%s246 + $0x5b8] sm:$0xff]
        %v561 = vld [vmem:[%s246 + $0x5c0] sm:$0xff]
        %v562 = vld [vmem:[%s246 + $0x5c8] sm:$0xff]
        %v563 = vld [vmem:[%s246 + $0x5d0] sm:$0xff]
        %v564 = vld [vmem:[%s246 + $0x5d8] sm:$0xff]
        %v565 = vld [vmem:[%s246 + $0x5e0] sm:$0xff]
        %v566 = vld [vmem:[%s246 + $0x5e8] sm:$0xff]
        %v567 = vld [vmem:[%s246 + $0x5f0] sm:$0xff]
        %v568 = vld [vmem:[%s246 + $0x5f8] sm:$0xff]
        %v569 = vld [vmem:[%s281] sm:$0xff]
        %v570 = vld [vmem:[%s281 + $0x8] sm:$0xff]
        %v571 = vld [vmem:[%s281 + $0x10] sm:$0xff]
        %v572 = vld [vmem:[%s281 + $0x18] sm:$0xff]
        %v573 = vld [vmem:[%s281 + $0x20] sm:$0xff]
        %v574 = vld [vmem:[%s281 + $0x28] sm:$0xff]
        %v575 = vld [vmem:[%s281 + $0x30] sm:$0xff]
        %v576 = vld [vmem:[%s281 + $0x38] sm:$0xff]
        %v577 = vld [vmem:[%s281 + $0x40] sm:$0xff]
        %v578 = vld [vmem:[%s281 + $0x48] sm:$0xff]
        %v579 = vld [vmem:[%s281 + $0x50] sm:$0xff]
        %v580 = vld [vmem:[%s281 + $0x58] sm:$0xff]
        %v581 = vunpack.c.l.bf16 %v569
        %v582 = vunpack.c.h.bf16 %v569
        %v583 = vunpack.c.l.bf16 %v570
        %v584 = vunpack.c.h.bf16 %v570
        %v585 = vunpack.c.l.bf16 %v571
        %v586 = vunpack.c.h.bf16 %v571
        %v587 = vunpack.c.l.bf16 %v572
        %v588 = vunpack.c.h.bf16 %v572
        %v589 = vunpack.c.l.bf16 %v573
        %v590 = vunpack.c.h.bf16 %v573
        %v591 = vunpack.c.l.bf16 %v574
        %v592 = vunpack.c.h.bf16 %v574
        %v593 = vunpack.c.l.bf16 %v575
        %v594 = vunpack.c.h.bf16 %v575
        %v595 = vunpack.c.l.bf16 %v576
        %v596 = vunpack.c.h.bf16 %v576
        %v597 = vunpack.c.l.bf16 %v577
        %v598 = vunpack.c.h.bf16 %v577
        %v599 = vunpack.c.l.bf16 %v578
        %v600 = vunpack.c.h.bf16 %v578
        %v601 = vunpack.c.l.bf16 %v579
        %v602 = vunpack.c.h.bf16 %v579
        %v603 = vunpack.c.l.bf16 %v580
        %v604 = vunpack.c.h.bf16 %v580
        %v629 = vlaneseq
        %v630 = vshrl.u32 %v629, 7
        %v631 = vsub.s32 0, %v630
        %v632 = vrot.slane %v581, %v631
        %v633 = vlaneseq
        %v634 = vshrl.u32 %v633, 7
        %v635 = vsub.s32 2, %v634
        %v636 = vrot.slane %v581, %v635
        %v637 = vlaneseq
        %v638 = vshrl.u32 %v637, 7
        %v639 = vsub.s32 4, %v638
        %v640 = vrot.slane %v581, %v639
        %v641 = vlaneseq
        %v642 = vshrl.u32 %v641, 7
        %v643 = vsub.s32 6, %v642
        %v644 = vrot.slane %v581, %v643
        %v645 = vlaneseq
        %v646 = vshrl.u32 %v645, 7
        %v647 = vsub.s32 0, %v646
        %v648 = vrot.slane %v582, %v647
        %v649 = vlaneseq
        %v650 = vshrl.u32 %v649, 7
        %v651 = vsub.s32 2, %v650
        %v652 = vrot.slane %v582, %v651
        %v653 = vlaneseq
        %v654 = vshrl.u32 %v653, 7
        %v655 = vsub.s32 4, %v654
        %v656 = vrot.slane %v582, %v655
        %v657 = vlaneseq
        %v658 = vshrl.u32 %v657, 7
        %v659 = vsub.s32 6, %v658
        %v660 = vrot.slane %v582, %v659
        %v661 = vlaneseq
        %v662 = vshrl.u32 %v661, 7
        %v663 = vsub.s32 0, %v662
        %v664 = vrot.slane %v583, %v663
        %v665 = vlaneseq
        %v666 = vshrl.u32 %v665, 7
        %v667 = vsub.s32 2, %v666
        %v668 = vrot.slane %v583, %v667
        %v669 = vlaneseq
        %v670 = vshrl.u32 %v669, 7
        %v671 = vsub.s32 4, %v670
        %v672 = vrot.slane %v583, %v671
        %v673 = vlaneseq
        %v674 = vshrl.u32 %v673, 7
        %v675 = vsub.s32 6, %v674
        %v676 = vrot.slane %v583, %v675
        %v677 = vlaneseq
        %v678 = vshrl.u32 %v677, 7
        %v679 = vsub.s32 0, %v678
        %v680 = vrot.slane %v584, %v679
        %v681 = vlaneseq
        %v682 = vshrl.u32 %v681, 7
        %v683 = vsub.s32 2, %v682
        %v684 = vrot.slane %v584, %v683
        %v685 = vlaneseq
        %v686 = vshrl.u32 %v685, 7
        %v687 = vsub.s32 4, %v686
        %v688 = vrot.slane %v584, %v687
        %v689 = vlaneseq
        %v690 = vshrl.u32 %v689, 7
        %v691 = vsub.s32 6, %v690
        %v692 = vrot.slane %v584, %v691
        %v693 = vlaneseq
        %v694 = vshrl.u32 %v693, 7
        %v695 = vsub.s32 0, %v694
        %v696 = vrot.slane %v585, %v695
        %v697 = vlaneseq
        %v698 = vshrl.u32 %v697, 7
        %v699 = vsub.s32 2, %v698
        %v700 = vrot.slane %v585, %v699
        %v701 = vlaneseq
        %v702 = vshrl.u32 %v701, 7
        %v703 = vsub.s32 4, %v702
        %v704 = vrot.slane %v585, %v703
        %v705 = vlaneseq
        %v706 = vshrl.u32 %v705, 7
        %v707 = vsub.s32 6, %v706
        %v708 = vrot.slane %v585, %v707
        %v709 = vlaneseq
        %v710 = vshrl.u32 %v709, 7
        %v711 = vsub.s32 0, %v710
        %v712 = vrot.slane %v586, %v711
        %v713 = vlaneseq
        %v714 = vshrl.u32 %v713, 7
        %v715 = vsub.s32 2, %v714
        %v716 = vrot.slane %v586, %v715
        %v717 = vlaneseq
        %v718 = vshrl.u32 %v717, 7
        %v719 = vsub.s32 4, %v718
        %v720 = vrot.slane %v586, %v719
        %v721 = vlaneseq
        %v722 = vshrl.u32 %v721, 7
        %v723 = vsub.s32 6, %v722
        %v724 = vrot.slane %v586, %v723
        %v725 = vlaneseq
        %v726 = vshrl.u32 %v725, 7
        %v727 = vsub.s32 0, %v726
        %v728 = vrot.slane %v587, %v727
        %v729 = vlaneseq
        %v730 = vshrl.u32 %v729, 7
        %v731 = vsub.s32 2, %v730
        %v732 = vrot.slane %v587, %v731
        %v733 = vlaneseq
        %v734 = vshrl.u32 %v733, 7
        %v735 = vsub.s32 4, %v734
        %v736 = vrot.slane %v587, %v735
        %v737 = vlaneseq
        %v738 = vshrl.u32 %v737, 7
        %v739 = vsub.s32 6, %v738
        %v740 = vrot.slane %v587, %v739
        %v741 = vlaneseq
        %v742 = vshrl.u32 %v741, 7
        %v743 = vsub.s32 0, %v742
        %v744 = vrot.slane %v588, %v743
        %v745 = vlaneseq
        %v746 = vshrl.u32 %v745, 7
        %v747 = vsub.s32 2, %v746
        %v748 = vrot.slane %v588, %v747
        %v749 = vlaneseq
        %v750 = vshrl.u32 %v749, 7
        %v751 = vsub.s32 4, %v750
        %v752 = vrot.slane %v588, %v751
        %v753 = vlaneseq
        %v754 = vshrl.u32 %v753, 7
        %v755 = vsub.s32 6, %v754
        %v756 = vrot.slane %v588, %v755
        %v757 = vlaneseq
        %v758 = vshrl.u32 %v757, 7
        %v759 = vsub.s32 0, %v758
        %v760 = vrot.slane %v589, %v759
        %v761 = vlaneseq
        %v762 = vshrl.u32 %v761, 7
        %v763 = vsub.s32 2, %v762
        %v764 = vrot.slane %v589, %v763
        %v765 = vlaneseq
        %v766 = vshrl.u32 %v765, 7
        %v767 = vsub.s32 4, %v766
        %v768 = vrot.slane %v589, %v767
        %v769 = vlaneseq
        %v770 = vshrl.u32 %v769, 7
        %v771 = vsub.s32 6, %v770
        %v772 = vrot.slane %v589, %v771
        %v773 = vlaneseq
        %v774 = vshrl.u32 %v773, 7
        %v775 = vsub.s32 0, %v774
        %v776 = vrot.slane %v590, %v775
        %v777 = vlaneseq
        %v778 = vshrl.u32 %v777, 7
        %v779 = vsub.s32 2, %v778
        %v780 = vrot.slane %v590, %v779
        %v781 = vlaneseq
        %v782 = vshrl.u32 %v781, 7
        %v783 = vsub.s32 4, %v782
        %v784 = vrot.slane %v590, %v783
        %v785 = vlaneseq
        %v786 = vshrl.u32 %v785, 7
        %v787 = vsub.s32 6, %v786
        %v788 = vrot.slane %v590, %v787
        %v789 = vlaneseq
        %v790 = vshrl.u32 %v789, 7
        %v791 = vsub.s32 0, %v790
        %v792 = vrot.slane %v591, %v791
        %v793 = vlaneseq
        %v794 = vshrl.u32 %v793, 7
        %v795 = vsub.s32 2, %v794
        %v796 = vrot.slane %v591, %v795
        %v797 = vlaneseq
        %v798 = vshrl.u32 %v797, 7
        %v799 = vsub.s32 4, %v798
        %v800 = vrot.slane %v591, %v799
        %v801 = vlaneseq
        %v802 = vshrl.u32 %v801, 7
        %v803 = vsub.s32 6, %v802
        %v804 = vrot.slane %v591, %v803
        %v805 = vlaneseq
        %v806 = vshrl.u32 %v805, 7
        %v807 = vsub.s32 0, %v806
        %v808 = vrot.slane %v592, %v807
        %v809 = vlaneseq
        %v810 = vshrl.u32 %v809, 7
        %v811 = vsub.s32 2, %v810
        %v812 = vrot.slane %v592, %v811
        %v813 = vlaneseq
        %v814 = vshrl.u32 %v813, 7
        %v815 = vsub.s32 4, %v814
        %v816 = vrot.slane %v592, %v815
        %v817 = vlaneseq
        %v818 = vshrl.u32 %v817, 7
        %v819 = vsub.s32 6, %v818
        %v820 = vrot.slane %v592, %v819
        %v821 = vlaneseq
        %v822 = vshrl.u32 %v821, 7
        %v823 = vsub.s32 0, %v822
        %v824 = vrot.slane %v593, %v823
        %v825 = vlaneseq
        %v826 = vshrl.u32 %v825, 7
        %v827 = vsub.s32 2, %v826
        %v828 = vrot.slane %v593, %v827
        %v829 = vlaneseq
        %v830 = vshrl.u32 %v829, 7
        %v831 = vsub.s32 4, %v830
        %v832 = vrot.slane %v593, %v831
        %v833 = vlaneseq
        %v834 = vshrl.u32 %v833, 7
        %v835 = vsub.s32 6, %v834
        %v836 = vrot.slane %v593, %v835
        %v837 = vlaneseq
        %v838 = vshrl.u32 %v837, 7
        %v839 = vsub.s32 0, %v838
        %v840 = vrot.slane %v594, %v839
        %v841 = vlaneseq
        %v842 = vshrl.u32 %v841, 7
        %v843 = vsub.s32 2, %v842
        %v844 = vrot.slane %v594, %v843
        %v845 = vlaneseq
        %v846 = vshrl.u32 %v845, 7
        %v847 = vsub.s32 4, %v846
        %v848 = vrot.slane %v594, %v847
        %v849 = vlaneseq
        %v850 = vshrl.u32 %v849, 7
        %v851 = vsub.s32 6, %v850
        %v852 = vrot.slane %v594, %v851
        %v853 = vlaneseq
        %v854 = vshrl.u32 %v853, 7
        %v855 = vsub.s32 0, %v854
        %v856 = vrot.slane %v595, %v855
        %v857 = vlaneseq
        %v858 = vshrl.u32 %v857, 7
        %v859 = vsub.s32 2, %v858
        %v860 = vrot.slane %v595, %v859
        %v861 = vlaneseq
        %v862 = vshrl.u32 %v861, 7
        %v863 = vsub.s32 4, %v862
        %v864 = vrot.slane %v595, %v863
        %v865 = vlaneseq
        %v866 = vshrl.u32 %v865, 7
        %v867 = vsub.s32 6, %v866
        %v868 = vrot.slane %v595, %v867
        %v869 = vlaneseq
        %v870 = vshrl.u32 %v869, 7
        %v871 = vsub.s32 0, %v870
        %v872 = vrot.slane %v596, %v871
        %v873 = vlaneseq
        %v874 = vshrl.u32 %v873, 7
        %v875 = vsub.s32 2, %v874
        %v876 = vrot.slane %v596, %v875
        %v877 = vlaneseq
        %v878 = vshrl.u32 %v877, 7
        %v879 = vsub.s32 4, %v878
        %v880 = vrot.slane %v596, %v879
        %v881 = vlaneseq
        %v882 = vshrl.u32 %v881, 7
        %v883 = vsub.s32 6, %v882
        %v884 = vrot.slane %v596, %v883
        %v885 = vlaneseq
        %v886 = vshrl.u32 %v885, 7
        %v887 = vsub.s32 0, %v886
        %v888 = vrot.slane %v597, %v887
        %v889 = vlaneseq
        %v890 = vshrl.u32 %v889, 7
        %v891 = vsub.s32 2, %v890
        %v892 = vrot.slane %v597, %v891
        %v893 = vlaneseq
        %v894 = vshrl.u32 %v893, 7
        %v895 = vsub.s32 4, %v894
        %v896 = vrot.slane %v597, %v895
        %v897 = vlaneseq
        %v898 = vshrl.u32 %v897, 7
        %v899 = vsub.s32 6, %v898
        %v900 = vrot.slane %v597, %v899
        %v901 = vlaneseq
        %v902 = vshrl.u32 %v901, 7
        %v903 = vsub.s32 0, %v902
        %v904 = vrot.slane %v598, %v903
        %v905 = vlaneseq
        %v906 = vshrl.u32 %v905, 7
        %v907 = vsub.s32 2, %v906
        %v908 = vrot.slane %v598, %v907
        %v909 = vlaneseq
        %v910 = vshrl.u32 %v909, 7
        %v911 = vsub.s32 4, %v910
        %v912 = vrot.slane %v598, %v911
        %v913 = vlaneseq
        %v914 = vshrl.u32 %v913, 7
        %v915 = vsub.s32 6, %v914
        %v916 = vrot.slane %v598, %v915
        %v917 = vlaneseq
        %v918 = vshrl.u32 %v917, 7
        %v919 = vsub.s32 0, %v918
        %v920 = vrot.slane %v599, %v919
        %v921 = vlaneseq
        %v922 = vshrl.u32 %v921, 7
        %v923 = vsub.s32 2, %v922
        %v924 = vrot.slane %v599, %v923
        %v925 = vlaneseq
        %v926 = vshrl.u32 %v925, 7
        %v927 = vsub.s32 4, %v926
        %v928 = vrot.slane %v599, %v927
        %v929 = vlaneseq
        %v930 = vshrl.u32 %v929, 7
        %v931 = vsub.s32 6, %v930
        %v932 = vrot.slane %v599, %v931
        %v933 = vlaneseq
        %v934 = vshrl.u32 %v933, 7
        %v935 = vsub.s32 0, %v934
        %v936 = vrot.slane %v600, %v935
        %v937 = vlaneseq
        %v938 = vshrl.u32 %v937, 7
        %v939 = vsub.s32 2, %v938
        %v940 = vrot.slane %v600, %v939
        %v941 = vlaneseq
        %v942 = vshrl.u32 %v941, 7
        %v943 = vsub.s32 4, %v942
        %v944 = vrot.slane %v600, %v943
        %v945 = vlaneseq
        %v946 = vshrl.u32 %v945, 7
        %v947 = vsub.s32 6, %v946
        %v948 = vrot.slane %v600, %v947
        %v949 = vlaneseq
        %v950 = vshrl.u32 %v949, 7
        %v951 = vsub.s32 0, %v950
        %v952 = vrot.slane %v601, %v951
        %v953 = vlaneseq
        %v954 = vshrl.u32 %v953, 7
        %v955 = vsub.s32 2, %v954
        %v956 = vrot.slane %v601, %v955
        %v957 = vlaneseq
        %v958 = vshrl.u32 %v957, 7
        %v959 = vsub.s32 4, %v958
        %v960 = vrot.slane %v601, %v959
        %v961 = vlaneseq
        %v962 = vshrl.u32 %v961, 7
        %v963 = vsub.s32 6, %v962
        %v964 = vrot.slane %v601, %v963
        %v965 = vlaneseq
        %v966 = vshrl.u32 %v965, 7
        %v967 = vsub.s32 0, %v966
        %v968 = vrot.slane %v602, %v967
        %v969 = vlaneseq
        %v970 = vshrl.u32 %v969, 7
        %v971 = vsub.s32 2, %v970
        %v972 = vrot.slane %v602, %v971
        %v973 = vlaneseq
        %v974 = vshrl.u32 %v973, 7
        %v975 = vsub.s32 4, %v974
        %v976 = vrot.slane %v602, %v975
        %v977 = vlaneseq
        %v978 = vshrl.u32 %v977, 7
        %v979 = vsub.s32 6, %v978
        %v980 = vrot.slane %v602, %v979
        %v981 = vlaneseq
        %v982 = vshrl.u32 %v981, 7
        %v983 = vsub.s32 0, %v982
        %v984 = vrot.slane %v603, %v983
        %v985 = vlaneseq
        %v986 = vshrl.u32 %v985, 7
        %v987 = vsub.s32 2, %v986
        %v988 = vrot.slane %v603, %v987
        %v989 = vlaneseq
        %v990 = vshrl.u32 %v989, 7
        %v991 = vsub.s32 4, %v990
        %v992 = vrot.slane %v603, %v991
        %v993 = vlaneseq
        %v994 = vshrl.u32 %v993, 7
        %v995 = vsub.s32 6, %v994
        %v996 = vrot.slane %v603, %v995
        %v997 = vlaneseq
        %v998 = vshrl.u32 %v997, 7
        %v999 = vsub.s32 0, %v998
        %v1000 = vrot.slane %v604, %v999
        %v1001 = vlaneseq
        %v1002 = vshrl.u32 %v1001, 7
        %v1003 = vsub.s32 2, %v1002
        %v1004 = vrot.slane %v604, %v1003
        %v1005 = vlaneseq
        %v1006 = vshrl.u32 %v1005, 7
        %v1007 = vsub.s32 4, %v1006
        %v1008 = vrot.slane %v604, %v1007
        %v1009 = vlaneseq
        %v1010 = vshrl.u32 %v1009, 7
        %v1011 = vsub.s32 6, %v1010
        %v1012 = vrot.slane %v604, %v1011
        %v1109 = vlaneseq
        %v1110 = vshrl.u32 %v1109, 7
        %v1111 = vsub.s32 0, %v1110
        %v1112 = vrot.slane %v632, %v1111
        %v1113 = vlaneseq
        %v1114 = vshrl.u32 %v1113, 7
        %v1115 = vsub.s32 0, %v1114
        %v1116 = vrot.slane %v636, %v1115
        %v1117 = vlaneseq
        %v1118 = vshrl.u32 %v1117, 7
        %v1119 = vsub.s32 0, %v1118
        %v1120 = vrot.slane %v640, %v1119
        %v1121 = vlaneseq
        %v1122 = vshrl.u32 %v1121, 7
        %v1123 = vsub.s32 0, %v1122
        %v1124 = vrot.slane %v644, %v1123
        %v1125 = vlaneseq
        %v1126 = vshrl.u32 %v1125, 7
        %v1127 = vsub.s32 0, %v1126
        %v1128 = vrot.slane %v648, %v1127
        %v1129 = vlaneseq
        %v1130 = vshrl.u32 %v1129, 7
        %v1131 = vsub.s32 0, %v1130
        %v1132 = vrot.slane %v652, %v1131
        %v1133 = vlaneseq
        %v1134 = vshrl.u32 %v1133, 7
        %v1135 = vsub.s32 0, %v1134
        %v1136 = vrot.slane %v656, %v1135
        %v1137 = vlaneseq
        %v1138 = vshrl.u32 %v1137, 7
        %v1139 = vsub.s32 0, %v1138
        %v1140 = vrot.slane %v660, %v1139
        %v1141 = vlaneseq
        %v1142 = vshrl.u32 %v1141, 7
        %v1143 = vsub.s32 0, %v1142
        %v1144 = vrot.slane %v664, %v1143
        %v1145 = vlaneseq
        %v1146 = vshrl.u32 %v1145, 7
        %v1147 = vsub.s32 0, %v1146
        %v1148 = vrot.slane %v668, %v1147
        %v1149 = vlaneseq
        %v1150 = vshrl.u32 %v1149, 7
        %v1151 = vsub.s32 0, %v1150
        %v1152 = vrot.slane %v672, %v1151
        %v1153 = vlaneseq
        %v1154 = vshrl.u32 %v1153, 7
        %v1155 = vsub.s32 0, %v1154
        %v1156 = vrot.slane %v676, %v1155
        %v1157 = vlaneseq
        %v1158 = vshrl.u32 %v1157, 7
        %v1159 = vsub.s32 0, %v1158
        %v1160 = vrot.slane %v680, %v1159
        %v1161 = vlaneseq
        %v1162 = vshrl.u32 %v1161, 7
        %v1163 = vsub.s32 0, %v1162
        %v1164 = vrot.slane %v684, %v1163
        %v1165 = vlaneseq
        %v1166 = vshrl.u32 %v1165, 7
        %v1167 = vsub.s32 0, %v1166
        %v1168 = vrot.slane %v688, %v1167
        %v1169 = vlaneseq
        %v1170 = vshrl.u32 %v1169, 7
        %v1171 = vsub.s32 0, %v1170
        %v1172 = vrot.slane %v692, %v1171
        %v1173 = vlaneseq
        %v1174 = vshrl.u32 %v1173, 7
        %v1175 = vsub.s32 0, %v1174
        %v1176 = vrot.slane %v696, %v1175
        %v1177 = vlaneseq
        %v1178 = vshrl.u32 %v1177, 7
        %v1179 = vsub.s32 0, %v1178
        %v1180 = vrot.slane %v700, %v1179
        %v1181 = vlaneseq
        %v1182 = vshrl.u32 %v1181, 7
        %v1183 = vsub.s32 0, %v1182
        %v1184 = vrot.slane %v704, %v1183
        %v1185 = vlaneseq
        %v1186 = vshrl.u32 %v1185, 7
        %v1187 = vsub.s32 0, %v1186
        %v1188 = vrot.slane %v708, %v1187
        %v1189 = vlaneseq
        %v1190 = vshrl.u32 %v1189, 7
        %v1191 = vsub.s32 0, %v1190
        %v1192 = vrot.slane %v712, %v1191
        %v1193 = vlaneseq
        %v1194 = vshrl.u32 %v1193, 7
        %v1195 = vsub.s32 0, %v1194
        %v1196 = vrot.slane %v716, %v1195
        %v1197 = vlaneseq
        %v1198 = vshrl.u32 %v1197, 7
        %v1199 = vsub.s32 0, %v1198
        %v1200 = vrot.slane %v720, %v1199
        %v1201 = vlaneseq
        %v1202 = vshrl.u32 %v1201, 7
        %v1203 = vsub.s32 0, %v1202
        %v1204 = vrot.slane %v724, %v1203
        %v1205 = vlaneseq
        %v1206 = vshrl.u32 %v1205, 7
        %v1207 = vsub.s32 0, %v1206
        %v1208 = vrot.slane %v728, %v1207
        %v1209 = vlaneseq
        %v1210 = vshrl.u32 %v1209, 7
        %v1211 = vsub.s32 0, %v1210
        %v1212 = vrot.slane %v732, %v1211
        %v1213 = vlaneseq
        %v1214 = vshrl.u32 %v1213, 7
        %v1215 = vsub.s32 0, %v1214
        %v1216 = vrot.slane %v736, %v1215
        %v1217 = vlaneseq
        %v1218 = vshrl.u32 %v1217, 7
        %v1219 = vsub.s32 0, %v1218
        %v1220 = vrot.slane %v740, %v1219
        %v1221 = vlaneseq
        %v1222 = vshrl.u32 %v1221, 7
        %v1223 = vsub.s32 0, %v1222
        %v1224 = vrot.slane %v744, %v1223
        %v1225 = vlaneseq
        %v1226 = vshrl.u32 %v1225, 7
        %v1227 = vsub.s32 0, %v1226
        %v1228 = vrot.slane %v748, %v1227
        %v1229 = vlaneseq
        %v1230 = vshrl.u32 %v1229, 7
        %v1231 = vsub.s32 0, %v1230
        %v1232 = vrot.slane %v752, %v1231
        %v1233 = vlaneseq
        %v1234 = vshrl.u32 %v1233, 7
        %v1235 = vsub.s32 0, %v1234
        %v1236 = vrot.slane %v756, %v1235
        %v1237 = vlaneseq
        %v1238 = vshrl.u32 %v1237, 7
        %v1239 = vsub.s32 0, %v1238
        %v1240 = vrot.slane %v760, %v1239
        %v1241 = vlaneseq
        %v1242 = vshrl.u32 %v1241, 7
        %v1243 = vsub.s32 0, %v1242
        %v1244 = vrot.slane %v764, %v1243
        %v1245 = vlaneseq
        %v1246 = vshrl.u32 %v1245, 7
        %v1247 = vsub.s32 0, %v1246
        %v1248 = vrot.slane %v768, %v1247
        %v1249 = vlaneseq
        %v1250 = vshrl.u32 %v1249, 7
        %v1251 = vsub.s32 0, %v1250
        %v1252 = vrot.slane %v772, %v1251
        %v1253 = vlaneseq
        %v1254 = vshrl.u32 %v1253, 7
        %v1255 = vsub.s32 0, %v1254
        %v1256 = vrot.slane %v776, %v1255
        %v1257 = vlaneseq
        %v1258 = vshrl.u32 %v1257, 7
        %v1259 = vsub.s32 0, %v1258
        %v1260 = vrot.slane %v780, %v1259
        %v1261 = vlaneseq
        %v1262 = vshrl.u32 %v1261, 7
        %v1263 = vsub.s32 0, %v1262
        %v1264 = vrot.slane %v784, %v1263
        %v1265 = vlaneseq
        %v1266 = vshrl.u32 %v1265, 7
        %v1267 = vsub.s32 0, %v1266
        %v1268 = vrot.slane %v788, %v1267
        %v1269 = vlaneseq
        %v1270 = vshrl.u32 %v1269, 7
        %v1271 = vsub.s32 0, %v1270
        %v1272 = vrot.slane %v792, %v1271
        %v1273 = vlaneseq
        %v1274 = vshrl.u32 %v1273, 7
        %v1275 = vsub.s32 0, %v1274
        %v1276 = vrot.slane %v796, %v1275
        %v1277 = vlaneseq
        %v1278 = vshrl.u32 %v1277, 7
        %v1279 = vsub.s32 0, %v1278
        %v1280 = vrot.slane %v800, %v1279
        %v1281 = vlaneseq
        %v1282 = vshrl.u32 %v1281, 7
        %v1283 = vsub.s32 0, %v1282
        %v1284 = vrot.slane %v804, %v1283
        %v1285 = vlaneseq
        %v1286 = vshrl.u32 %v1285, 7
        %v1287 = vsub.s32 0, %v1286
        %v1288 = vrot.slane %v808, %v1287
        %v1289 = vlaneseq
        %v1290 = vshrl.u32 %v1289, 7
        %v1291 = vsub.s32 0, %v1290
        %v1292 = vrot.slane %v812, %v1291
        %v1293 = vlaneseq
        %v1294 = vshrl.u32 %v1293, 7
        %v1295 = vsub.s32 0, %v1294
        %v1296 = vrot.slane %v816, %v1295
        %v1297 = vlaneseq
        %v1298 = vshrl.u32 %v1297, 7
        %v1299 = vsub.s32 0, %v1298
        %v1300 = vrot.slane %v820, %v1299
        %v1301 = vlaneseq
        %v1302 = vshrl.u32 %v1301, 7
        %v1303 = vsub.s32 0, %v1302
        %v1304 = vrot.slane %v824, %v1303
        %v1305 = vlaneseq
        %v1306 = vshrl.u32 %v1305, 7
        %v1307 = vsub.s32 0, %v1306
        %v1308 = vrot.slane %v828, %v1307
        %v1309 = vlaneseq
        %v1310 = vshrl.u32 %v1309, 7
        %v1311 = vsub.s32 0, %v1310
        %v1312 = vrot.slane %v832, %v1311
        %v1313 = vlaneseq
        %v1314 = vshrl.u32 %v1313, 7
        %v1315 = vsub.s32 0, %v1314
        %v1316 = vrot.slane %v836, %v1315
        %v1317 = vlaneseq
        %v1318 = vshrl.u32 %v1317, 7
        %v1319 = vsub.s32 0, %v1318
        %v1320 = vrot.slane %v840, %v1319
        %v1321 = vlaneseq
        %v1322 = vshrl.u32 %v1321, 7
        %v1323 = vsub.s32 0, %v1322
        %v1324 = vrot.slane %v844, %v1323
        %v1325 = vlaneseq
        %v1326 = vshrl.u32 %v1325, 7
        %v1327 = vsub.s32 0, %v1326
        %v1328 = vrot.slane %v848, %v1327
        %v1329 = vlaneseq
        %v1330 = vshrl.u32 %v1329, 7
        %v1331 = vsub.s32 0, %v1330
        %v1332 = vrot.slane %v852, %v1331
        %v1333 = vlaneseq
        %v1334 = vshrl.u32 %v1333, 7
        %v1335 = vsub.s32 0, %v1334
        %v1336 = vrot.slane %v856, %v1335
        %v1337 = vlaneseq
        %v1338 = vshrl.u32 %v1337, 7
        %v1339 = vsub.s32 0, %v1338
        %v1340 = vrot.slane %v860, %v1339
        %v1341 = vlaneseq
        %v1342 = vshrl.u32 %v1341, 7
        %v1343 = vsub.s32 0, %v1342
        %v1344 = vrot.slane %v864, %v1343
        %v1345 = vlaneseq
        %v1346 = vshrl.u32 %v1345, 7
        %v1347 = vsub.s32 0, %v1346
        %v1348 = vrot.slane %v868, %v1347
        %v1349 = vlaneseq
        %v1350 = vshrl.u32 %v1349, 7
        %v1351 = vsub.s32 0, %v1350
        %v1352 = vrot.slane %v872, %v1351
        %v1353 = vlaneseq
        %v1354 = vshrl.u32 %v1353, 7
        %v1355 = vsub.s32 0, %v1354
        %v1356 = vrot.slane %v876, %v1355
        %v1357 = vlaneseq
        %v1358 = vshrl.u32 %v1357, 7
        %v1359 = vsub.s32 0, %v1358
        %v1360 = vrot.slane %v880, %v1359
        %v1361 = vlaneseq
        %v1362 = vshrl.u32 %v1361, 7
        %v1363 = vsub.s32 0, %v1362
        %v1364 = vrot.slane %v884, %v1363
        %v1365 = vlaneseq
        %v1366 = vshrl.u32 %v1365, 7
        %v1367 = vsub.s32 0, %v1366
        %v1368 = vrot.slane %v888, %v1367
        %v1369 = vlaneseq
        %v1370 = vshrl.u32 %v1369, 7
        %v1371 = vsub.s32 0, %v1370
        %v1372 = vrot.slane %v892, %v1371
        %v1373 = vlaneseq
        %v1374 = vshrl.u32 %v1373, 7
        %v1375 = vsub.s32 0, %v1374
        %v1376 = vrot.slane %v896, %v1375
        %v1377 = vlaneseq
        %v1378 = vshrl.u32 %v1377, 7
        %v1379 = vsub.s32 0, %v1378
        %v1380 = vrot.slane %v900, %v1379
        %v1381 = vlaneseq
        %v1382 = vshrl.u32 %v1381, 7
        %v1383 = vsub.s32 0, %v1382
        %v1384 = vrot.slane %v904, %v1383
        %v1385 = vlaneseq
        %v1386 = vshrl.u32 %v1385, 7
        %v1387 = vsub.s32 0, %v1386
        %v1388 = vrot.slane %v908, %v1387
        %v1389 = vlaneseq
        %v1390 = vshrl.u32 %v1389, 7
        %v1391 = vsub.s32 0, %v1390
        %v1392 = vrot.slane %v912, %v1391
        %v1393 = vlaneseq
        %v1394 = vshrl.u32 %v1393, 7
        %v1395 = vsub.s32 0, %v1394
        %v1396 = vrot.slane %v916, %v1395
        %v1397 = vlaneseq
        %v1398 = vshrl.u32 %v1397, 7
        %v1399 = vsub.s32 0, %v1398
        %v1400 = vrot.slane %v920, %v1399
        %v1401 = vlaneseq
        %v1402 = vshrl.u32 %v1401, 7
        %v1403 = vsub.s32 0, %v1402
        %v1404 = vrot.slane %v924, %v1403
        %v1405 = vlaneseq
        %v1406 = vshrl.u32 %v1405, 7
        %v1407 = vsub.s32 0, %v1406
        %v1408 = vrot.slane %v928, %v1407
        %v1409 = vlaneseq
        %v1410 = vshrl.u32 %v1409, 7
        %v1411 = vsub.s32 0, %v1410
        %v1412 = vrot.slane %v932, %v1411
        %v1413 = vlaneseq
        %v1414 = vshrl.u32 %v1413, 7
        %v1415 = vsub.s32 0, %v1414
        %v1416 = vrot.slane %v936, %v1415
        %v1417 = vlaneseq
        %v1418 = vshrl.u32 %v1417, 7
        %v1419 = vsub.s32 0, %v1418
        %v1420 = vrot.slane %v940, %v1419
        %v1421 = vlaneseq
        %v1422 = vshrl.u32 %v1421, 7
        %v1423 = vsub.s32 0, %v1422
        %v1424 = vrot.slane %v944, %v1423
        %v1425 = vlaneseq
        %v1426 = vshrl.u32 %v1425, 7
        %v1427 = vsub.s32 0, %v1426
        %v1428 = vrot.slane %v948, %v1427
        %v1429 = vlaneseq
        %v1430 = vshrl.u32 %v1429, 7
        %v1431 = vsub.s32 0, %v1430
        %v1432 = vrot.slane %v952, %v1431
        %v1433 = vlaneseq
        %v1434 = vshrl.u32 %v1433, 7
        %v1435 = vsub.s32 0, %v1434
        %v1436 = vrot.slane %v956, %v1435
        %v1437 = vlaneseq
        %v1438 = vshrl.u32 %v1437, 7
        %v1439 = vsub.s32 0, %v1438
        %v1440 = vrot.slane %v960, %v1439
        %v1441 = vlaneseq
        %v1442 = vshrl.u32 %v1441, 7
        %v1443 = vsub.s32 0, %v1442
        %v1444 = vrot.slane %v964, %v1443
        %v1445 = vlaneseq
        %v1446 = vshrl.u32 %v1445, 7
        %v1447 = vsub.s32 0, %v1446
        %v1448 = vrot.slane %v968, %v1447
        %v1449 = vlaneseq
        %v1450 = vshrl.u32 %v1449, 7
        %v1451 = vsub.s32 0, %v1450
        %v1452 = vrot.slane %v972, %v1451
        %v1453 = vlaneseq
        %v1454 = vshrl.u32 %v1453, 7
        %v1455 = vsub.s32 0, %v1454
        %v1456 = vrot.slane %v976, %v1455
        %v1457 = vlaneseq
        %v1458 = vshrl.u32 %v1457, 7
        %v1459 = vsub.s32 0, %v1458
        %v1460 = vrot.slane %v980, %v1459
        %v1461 = vlaneseq
        %v1462 = vshrl.u32 %v1461, 7
        %v1463 = vsub.s32 0, %v1462
        %v1464 = vrot.slane %v984, %v1463
        %v1465 = vlaneseq
        %v1466 = vshrl.u32 %v1465, 7
        %v1467 = vsub.s32 0, %v1466
        %v1468 = vrot.slane %v988, %v1467
        %v1469 = vlaneseq
        %v1470 = vshrl.u32 %v1469, 7
        %v1471 = vsub.s32 0, %v1470
        %v1472 = vrot.slane %v992, %v1471
        %v1473 = vlaneseq
        %v1474 = vshrl.u32 %v1473, 7
        %v1475 = vsub.s32 0, %v1474
        %v1476 = vrot.slane %v996, %v1475
        %v1477 = vlaneseq
        %v1478 = vshrl.u32 %v1477, 7
        %v1479 = vsub.s32 0, %v1478
        %v1480 = vrot.slane %v1000, %v1479
        %v1481 = vlaneseq
        %v1482 = vshrl.u32 %v1481, 7
        %v1483 = vsub.s32 0, %v1482
        %v1484 = vrot.slane %v1004, %v1483
        %v1485 = vlaneseq
        %v1486 = vshrl.u32 %v1485, 7
        %v1487 = vsub.s32 0, %v1486
        %v1488 = vrot.slane %v1008, %v1487
        %v1489 = vlaneseq
        %v1490 = vshrl.u32 %v1489, 7
        %v1491 = vsub.s32 0, %v1490
        %v1492 = vrot.slane %v1012, %v1491
        %v1685 = vunpack.c.l.b16 %v377
        %v1686 = vunpack.c.h.b16 %v377
        %v1687 = vunpack.c.l.b16 %v378
        %v1688 = vunpack.c.h.b16 %v378
        %v1689 = vunpack.c.l.b16 %v379
        %v1690 = vunpack.c.h.b16 %v379
        %v1691 = vunpack.c.l.b16 %v380
        %v1692 = vunpack.c.h.b16 %v380
        %v1693 = vunpack.c.l.b16 %v381
        %v1694 = vunpack.c.h.b16 %v381
        %v1695 = vunpack.c.l.b16 %v382
        %v1696 = vunpack.c.h.b16 %v382
        %v1697 = vunpack.c.l.b16 %v383
        %v1698 = vunpack.c.h.b16 %v383
        %v1699 = vunpack.c.l.b16 %v384
        %v1700 = vunpack.c.h.b16 %v384
        %v1701 = vunpack.c.l.b16 %v385
        %v1702 = vunpack.c.h.b16 %v385
        %v1703 = vunpack.c.l.b16 %v386
        %v1704 = vunpack.c.h.b16 %v386
        %v1705 = vunpack.c.l.b16 %v387
        %v1706 = vunpack.c.h.b16 %v387
        %v1707 = vunpack.c.l.b16 %v388
        %v1708 = vunpack.c.h.b16 %v388
        %v1709 = vunpack.c.l.b16 %v389
        %v1710 = vunpack.c.h.b16 %v389
        %v1711 = vunpack.c.l.b16 %v390
        %v1712 = vunpack.c.h.b16 %v390
        %v1713 = vunpack.c.l.b16 %v391
        %v1714 = vunpack.c.h.b16 %v391
        %v1715 = vunpack.c.l.b16 %v392
        %v1716 = vunpack.c.h.b16 %v392
        %v1717 = vunpack.c.l.b16 %v393
        %v1718 = vunpack.c.h.b16 %v393
        %v1719 = vunpack.c.l.b16 %v394
        %v1720 = vunpack.c.h.b16 %v394
        %v1721 = vunpack.c.l.b16 %v395
        %v1722 = vunpack.c.h.b16 %v395
        %v1723 = vunpack.c.l.b16 %v396
        %v1724 = vunpack.c.h.b16 %v396
        %v1725 = vunpack.c.l.b16 %v397
        %v1726 = vunpack.c.h.b16 %v397
        %v1727 = vunpack.c.l.b16 %v398
        %v1728 = vunpack.c.h.b16 %v398
        %v1729 = vunpack.c.l.b16 %v399
        %v1730 = vunpack.c.h.b16 %v399
        %v1731 = vunpack.c.l.b16 %v400
        %v1732 = vunpack.c.h.b16 %v400
        %v1733 = vunpack.c.l.b16 %v401
        %v1734 = vunpack.c.h.b16 %v401
        %v1735 = vunpack.c.l.b16 %v402
        %v1736 = vunpack.c.h.b16 %v402
        %v1737 = vunpack.c.l.b16 %v403
        %v1738 = vunpack.c.h.b16 %v403
        %v1739 = vunpack.c.l.b16 %v404
        %v1740 = vunpack.c.h.b16 %v404
        %v1741 = vunpack.c.l.b16 %v405
        %v1742 = vunpack.c.h.b16 %v405
        %v1743 = vunpack.c.l.b16 %v406
        %v1744 = vunpack.c.h.b16 %v406
        %v1745 = vunpack.c.l.b16 %v407
        %v1746 = vunpack.c.h.b16 %v407
        %v1747 = vunpack.c.l.b16 %v408
        %v1748 = vunpack.c.h.b16 %v408
        %v1749 = vunpack.c.l.b16 %v409
        %v1750 = vunpack.c.h.b16 %v409
        %v1751 = vunpack.c.l.b16 %v410
        %v1752 = vunpack.c.h.b16 %v410
        %v1753 = vunpack.c.l.b16 %v411
        %v1754 = vunpack.c.h.b16 %v411
        %v1755 = vunpack.c.l.b16 %v412
        %v1756 = vunpack.c.h.b16 %v412
        %v1757 = vunpack.c.l.b16 %v413
        %v1758 = vunpack.c.h.b16 %v413
        %v1759 = vunpack.c.l.b16 %v414
        %v1760 = vunpack.c.h.b16 %v414
        %v1761 = vunpack.c.l.b16 %v415
        %v1762 = vunpack.c.h.b16 %v415
        %v1763 = vunpack.c.l.b16 %v416
        %v1764 = vunpack.c.h.b16 %v416
        %v1765 = vunpack.c.l.b16 %v417
        %v1766 = vunpack.c.h.b16 %v417
        %v1767 = vunpack.c.l.b16 %v418
        %v1768 = vunpack.c.h.b16 %v418
        %v1769 = vunpack.c.l.b16 %v419
        %v1770 = vunpack.c.h.b16 %v419
        %v1771 = vunpack.c.l.b16 %v420
        %v1772 = vunpack.c.h.b16 %v420
        %v1773 = vunpack.c.l.b16 %v421
        %v1774 = vunpack.c.h.b16 %v421
        %v1775 = vunpack.c.l.b16 %v422
        %v1776 = vunpack.c.h.b16 %v422
        %v1777 = vunpack.c.l.b16 %v423
        %v1778 = vunpack.c.h.b16 %v423
        %v1779 = vunpack.c.l.b16 %v424
        %v1780 = vunpack.c.h.b16 %v424
        %v1781 = vunpack.c.l.b16 %v425
        %v1782 = vunpack.c.h.b16 %v425
        %v1783 = vunpack.c.l.b16 %v426
        %v1784 = vunpack.c.h.b16 %v426
        %v1785 = vunpack.c.l.b16 %v427
        %v1786 = vunpack.c.h.b16 %v427
        %v1787 = vunpack.c.l.b16 %v428
        %v1788 = vunpack.c.h.b16 %v428
        %v1789 = vunpack.c.l.b16 %v429
        %v1790 = vunpack.c.h.b16 %v429
        %v1791 = vunpack.c.l.b16 %v430
        %v1792 = vunpack.c.h.b16 %v430
        %v1793 = vunpack.c.l.b16 %v431
        %v1794 = vunpack.c.h.b16 %v431
        %v1795 = vunpack.c.l.b16 %v432
        %v1796 = vunpack.c.h.b16 %v432
        %v1797 = vunpack.c.l.b16 %v433
        %v1798 = vunpack.c.h.b16 %v433
        %v1799 = vunpack.c.l.b16 %v434
        %v1800 = vunpack.c.h.b16 %v434
        %v1801 = vunpack.c.l.b16 %v435
        %v1802 = vunpack.c.h.b16 %v435
        %v1803 = vunpack.c.l.b16 %v436
        %v1804 = vunpack.c.h.b16 %v436
        %v1805 = vunpack.c.l.b16 %v437
        %v1806 = vunpack.c.h.b16 %v437
        %v1807 = vunpack.c.l.b16 %v438
        %v1808 = vunpack.c.h.b16 %v438
        %v1809 = vunpack.c.l.b16 %v439
        %v1810 = vunpack.c.h.b16 %v439
        %v1811 = vunpack.c.l.b16 %v440
        %v1812 = vunpack.c.h.b16 %v440
        %v1813 = vunpack.c.l.b16 %v441
        %v1814 = vunpack.c.h.b16 %v441
        %v1815 = vunpack.c.l.b16 %v442
        %v1816 = vunpack.c.h.b16 %v442
        %v1817 = vunpack.c.l.b16 %v443
        %v1818 = vunpack.c.h.b16 %v443
        %v1819 = vunpack.c.l.b16 %v444
        %v1820 = vunpack.c.h.b16 %v444
        %v1821 = vunpack.c.l.b16 %v445
        %v1822 = vunpack.c.h.b16 %v445
        %v1823 = vunpack.c.l.b16 %v446
        %v1824 = vunpack.c.h.b16 %v446
        %v1825 = vunpack.c.l.b16 %v447
        %v1826 = vunpack.c.h.b16 %v447
        %v1827 = vunpack.c.l.b16 %v448
        %v1828 = vunpack.c.h.b16 %v448
        %v1829 = vunpack.c.l.b16 %v449
        %v1830 = vunpack.c.h.b16 %v449
        %v1831 = vunpack.c.l.b16 %v450
        %v1832 = vunpack.c.h.b16 %v450
        %v1833 = vunpack.c.l.b16 %v451
        %v1834 = vunpack.c.h.b16 %v451
        %v1835 = vunpack.c.l.b16 %v452
        %v1836 = vunpack.c.h.b16 %v452
        %v1837 = vunpack.c.l.b16 %v453
        %v1838 = vunpack.c.h.b16 %v453
        %v1839 = vunpack.c.l.b16 %v454
        %v1840 = vunpack.c.h.b16 %v454
        %v1841 = vunpack.c.l.b16 %v455
        %v1842 = vunpack.c.h.b16 %v455
        %v1843 = vunpack.c.l.b16 %v456
        %v1844 = vunpack.c.h.b16 %v456
        %v1845 = vunpack.c.l.b16 %v457
        %v1846 = vunpack.c.h.b16 %v457
        %v1847 = vunpack.c.l.b16 %v458
        %v1848 = vunpack.c.h.b16 %v458
        %v1849 = vunpack.c.l.b16 %v459
        %v1850 = vunpack.c.h.b16 %v459
        %v1851 = vunpack.c.l.b16 %v460
        %v1852 = vunpack.c.h.b16 %v460
        %v1853 = vunpack.c.l.b16 %v461
        %v1854 = vunpack.c.h.b16 %v461
        %v1855 = vunpack.c.l.b16 %v462
        %v1856 = vunpack.c.h.b16 %v462
        %v1857 = vunpack.c.l.b16 %v463
        %v1858 = vunpack.c.h.b16 %v463
        %v1859 = vunpack.c.l.b16 %v464
        %v1860 = vunpack.c.h.b16 %v464
        %v1861 = vunpack.c.l.b16 %v465
        %v1862 = vunpack.c.h.b16 %v465
        %v1863 = vunpack.c.l.b16 %v466
        %v1864 = vunpack.c.h.b16 %v466
        %v1865 = vunpack.c.l.b16 %v467
        %v1866 = vunpack.c.h.b16 %v467
        %v1867 = vunpack.c.l.b16 %v468
        %v1868 = vunpack.c.h.b16 %v468
        %v1869 = vunpack.c.l.b16 %v469
        %v1870 = vunpack.c.h.b16 %v469
        %v1871 = vunpack.c.l.b16 %v470
        %v1872 = vunpack.c.h.b16 %v470
        %v1873 = vunpack.c.l.b16 %v471
        %v1874 = vunpack.c.h.b16 %v471
        %v1875 = vunpack.c.l.b16 %v472
        %v1876 = vunpack.c.h.b16 %v472
        %v1877 = vunpack.c.l.b16 %v473
        %v1878 = vunpack.c.h.b16 %v473
        %v1879 = vunpack.c.l.b16 %v474
        %v1880 = vunpack.c.h.b16 %v474
        %v1881 = vunpack.c.l.b16 %v475
        %v1882 = vunpack.c.h.b16 %v475
        %v1883 = vunpack.c.l.b16 %v476
        %v1884 = vunpack.c.h.b16 %v476
        %v1885 = vunpack.c.l.b16 %v477
        %v1886 = vunpack.c.h.b16 %v477
        %v1887 = vunpack.c.l.b16 %v478
        %v1888 = vunpack.c.h.b16 %v478
        %v1889 = vunpack.c.l.b16 %v479
        %v1890 = vunpack.c.h.b16 %v479
        %v1891 = vunpack.c.l.b16 %v480
        %v1892 = vunpack.c.h.b16 %v480
        %v1893 = vunpack.c.l.b16 %v481
        %v1894 = vunpack.c.h.b16 %v481
        %v1895 = vunpack.c.l.b16 %v482
        %v1896 = vunpack.c.h.b16 %v482
        %v1897 = vunpack.c.l.b16 %v483
        %v1898 = vunpack.c.h.b16 %v483
        %v1899 = vunpack.c.l.b16 %v484
        %v1900 = vunpack.c.h.b16 %v484
        %v1901 = vunpack.c.l.b16 %v485
        %v1902 = vunpack.c.h.b16 %v485
        %v1903 = vunpack.c.l.b16 %v486
        %v1904 = vunpack.c.h.b16 %v486
        %v1905 = vunpack.c.l.b16 %v487
        %v1906 = vunpack.c.h.b16 %v487
        %v1907 = vunpack.c.l.b16 %v488
        %v1908 = vunpack.c.h.b16 %v488
        %v1909 = vunpack.c.l.b16 %v489
        %v1910 = vunpack.c.h.b16 %v489
        %v1911 = vunpack.c.l.b16 %v490
        %v1912 = vunpack.c.h.b16 %v490
        %v1913 = vunpack.c.l.b16 %v491
        %v1914 = vunpack.c.h.b16 %v491
        %v1915 = vunpack.c.l.b16 %v492
        %v1916 = vunpack.c.h.b16 %v492
        %v1917 = vunpack.c.l.b16 %v493
        %v1918 = vunpack.c.h.b16 %v493
        %v1919 = vunpack.c.l.b16 %v494
        %v1920 = vunpack.c.h.b16 %v494
        %v1921 = vunpack.c.l.b16 %v495
        %v1922 = vunpack.c.h.b16 %v495
        %v1923 = vunpack.c.l.b16 %v496
        %v1924 = vunpack.c.h.b16 %v496
        %v1925 = vunpack.c.l.b16 %v497
        %v1926 = vunpack.c.h.b16 %v497
        %v1927 = vunpack.c.l.b16 %v498
        %v1928 = vunpack.c.h.b16 %v498
        %v1929 = vunpack.c.l.b16 %v499
        %v1930 = vunpack.c.h.b16 %v499
        %v1931 = vunpack.c.l.b16 %v500
        %v1932 = vunpack.c.h.b16 %v500
        %v1933 = vunpack.c.l.b16 %v501
        %v1934 = vunpack.c.h.b16 %v501
        %v1935 = vunpack.c.l.b16 %v502
        %v1936 = vunpack.c.h.b16 %v502
        %v1937 = vunpack.c.l.b16 %v503
        %v1938 = vunpack.c.h.b16 %v503
        %v1939 = vunpack.c.l.b16 %v504
        %v1940 = vunpack.c.h.b16 %v504
        %v1941 = vunpack.c.l.b16 %v505
        %v1942 = vunpack.c.h.b16 %v505
        %v1943 = vunpack.c.l.b16 %v506
        %v1944 = vunpack.c.h.b16 %v506
        %v1945 = vunpack.c.l.b16 %v507
        %v1946 = vunpack.c.h.b16 %v507
        %v1947 = vunpack.c.l.b16 %v508
        %v1948 = vunpack.c.h.b16 %v508
        %v1949 = vunpack.c.l.b16 %v509
        %v1950 = vunpack.c.h.b16 %v509
        %v1951 = vunpack.c.l.b16 %v510
        %v1952 = vunpack.c.h.b16 %v510
        %v1953 = vunpack.c.l.b16 %v511
        %v1954 = vunpack.c.h.b16 %v511
        %v1955 = vunpack.c.l.b16 %v512
        %v1956 = vunpack.c.h.b16 %v512
        %v1957 = vunpack.c.l.b16 %v513
        %v1958 = vunpack.c.h.b16 %v513
        %v1959 = vunpack.c.l.b16 %v514
        %v1960 = vunpack.c.h.b16 %v514
        %v1961 = vunpack.c.l.b16 %v515
        %v1962 = vunpack.c.h.b16 %v515
        %v1963 = vunpack.c.l.b16 %v516
        %v1964 = vunpack.c.h.b16 %v516
        %v1965 = vunpack.c.l.b16 %v517
        %v1966 = vunpack.c.h.b16 %v517
        %v1967 = vunpack.c.l.b16 %v518
        %v1968 = vunpack.c.h.b16 %v518
        %v1969 = vunpack.c.l.b16 %v519
        %v1970 = vunpack.c.h.b16 %v519
        %v1971 = vunpack.c.l.b16 %v520
        %v1972 = vunpack.c.h.b16 %v520
        %v1973 = vunpack.c.l.b16 %v521
        %v1974 = vunpack.c.h.b16 %v521
        %v1975 = vunpack.c.l.b16 %v522
        %v1976 = vunpack.c.h.b16 %v522
        %v1977 = vunpack.c.l.b16 %v523
        %v1978 = vunpack.c.h.b16 %v523
        %v1979 = vunpack.c.l.b16 %v524
        %v1980 = vunpack.c.h.b16 %v524
        %v1981 = vunpack.c.l.b16 %v525
        %v1982 = vunpack.c.h.b16 %v525
        %v1983 = vunpack.c.l.b16 %v526
        %v1984 = vunpack.c.h.b16 %v526
        %v1985 = vunpack.c.l.b16 %v527
        %v1986 = vunpack.c.h.b16 %v527
        %v1987 = vunpack.c.l.b16 %v528
        %v1988 = vunpack.c.h.b16 %v528
        %v1989 = vunpack.c.l.b16 %v529
        %v1990 = vunpack.c.h.b16 %v529
        %v1991 = vunpack.c.l.b16 %v530
        %v1992 = vunpack.c.h.b16 %v530
        %v1993 = vunpack.c.l.b16 %v531
        %v1994 = vunpack.c.h.b16 %v531
        %v1995 = vunpack.c.l.b16 %v532
        %v1996 = vunpack.c.h.b16 %v532
        %v1997 = vunpack.c.l.b16 %v533
        %v1998 = vunpack.c.h.b16 %v533
        %v1999 = vunpack.c.l.b16 %v534
        %v2000 = vunpack.c.h.b16 %v534
        %v2001 = vunpack.c.l.b16 %v535
        %v2002 = vunpack.c.h.b16 %v535
        %v2003 = vunpack.c.l.b16 %v536
        %v2004 = vunpack.c.h.b16 %v536
        %v2005 = vunpack.c.l.b16 %v537
        %v2006 = vunpack.c.h.b16 %v537
        %v2007 = vunpack.c.l.b16 %v538
        %v2008 = vunpack.c.h.b16 %v538
        %v2009 = vunpack.c.l.b16 %v539
        %v2010 = vunpack.c.h.b16 %v539
        %v2011 = vunpack.c.l.b16 %v540
        %v2012 = vunpack.c.h.b16 %v540
        %v2013 = vunpack.c.l.b16 %v541
        %v2014 = vunpack.c.h.b16 %v541
        %v2015 = vunpack.c.l.b16 %v542
        %v2016 = vunpack.c.h.b16 %v542
        %v2017 = vunpack.c.l.b16 %v543
        %v2018 = vunpack.c.h.b16 %v543
        %v2019 = vunpack.c.l.b16 %v544
        %v2020 = vunpack.c.h.b16 %v544
        %v2021 = vunpack.c.l.b16 %v545
        %v2022 = vunpack.c.h.b16 %v545
        %v2023 = vunpack.c.l.b16 %v546
        %v2024 = vunpack.c.h.b16 %v546
        %v2025 = vunpack.c.l.b16 %v547
        %v2026 = vunpack.c.h.b16 %v547
        %v2027 = vunpack.c.l.b16 %v548
        %v2028 = vunpack.c.h.b16 %v548
        %v2029 = vunpack.c.l.b16 %v549
        %v2030 = vunpack.c.h.b16 %v549
        %v2031 = vunpack.c.l.b16 %v550
        %v2032 = vunpack.c.h.b16 %v550
        %v2033 = vunpack.c.l.b16 %v551
        %v2034 = vunpack.c.h.b16 %v551
        %v2035 = vunpack.c.l.b16 %v552
        %v2036 = vunpack.c.h.b16 %v552
        %v2037 = vunpack.c.l.b16 %v553
        %v2038 = vunpack.c.h.b16 %v553
        %v2039 = vunpack.c.l.b16 %v554
        %v2040 = vunpack.c.h.b16 %v554
        %v2041 = vunpack.c.l.b16 %v555
        %v2042 = vunpack.c.h.b16 %v555
        %v2043 = vunpack.c.l.b16 %v556
        %v2044 = vunpack.c.h.b16 %v556
        %v2045 = vunpack.c.l.b16 %v557
        %v2046 = vunpack.c.h.b16 %v557
        %v2047 = vunpack.c.l.b16 %v558
        %v2048 = vunpack.c.h.b16 %v558
        %v2049 = vunpack.c.l.b16 %v559
        %v2050 = vunpack.c.h.b16 %v559
        %v2051 = vunpack.c.l.b16 %v560
        %v2052 = vunpack.c.h.b16 %v560
        %v2053 = vunpack.c.l.b16 %v561
        %v2054 = vunpack.c.h.b16 %v561
        %v2055 = vunpack.c.l.b16 %v562
        %v2056 = vunpack.c.h.b16 %v562
        %v2057 = vunpack.c.l.b16 %v563
        %v2058 = vunpack.c.h.b16 %v563
        %v2059 = vunpack.c.l.b16 %v564
        %v2060 = vunpack.c.h.b16 %v564
        %v2061 = vunpack.c.l.b16 %v565
        %v2062 = vunpack.c.h.b16 %v565
        %v2063 = vunpack.c.l.b16 %v566
        %v2064 = vunpack.c.h.b16 %v566
        %v2065 = vunpack.c.l.b16 %v567
        %v2066 = vunpack.c.h.b16 %v567
        %v2067 = vunpack.c.l.b16 %v568
        %v2068 = vunpack.c.h.b16 %v568
        %v2069 = vpack.c.b16 %v1781, %v1685
        %v2070 = vpack.c.b16 %v1782, %v1686
        %v2071 = vpack.c.b16 %v1783, %v1687
        %v2072 = vpack.c.b16 %v1784, %v1688
        %v2073 = vpack.c.b16 %v1785, %v1689
        %v2074 = vpack.c.b16 %v1786, %v1690
        %v2075 = vpack.c.b16 %v1787, %v1691
        %v2076 = vpack.c.b16 %v1788, %v1692
        %v2077 = vpack.c.b16 %v1789, %v1693
        %v2078 = vpack.c.b16 %v1790, %v1694
        %v2079 = vpack.c.b16 %v1791, %v1695
        %v2080 = vpack.c.b16 %v1792, %v1696
        %v2081 = vpack.c.b16 %v1793, %v1697
        %v2082 = vpack.c.b16 %v1794, %v1698
        %v2083 = vpack.c.b16 %v1795, %v1699
        %v2084 = vpack.c.b16 %v1796, %v1700
        %v2085 = vpack.c.b16 %v1797, %v1701
        %v2086 = vpack.c.b16 %v1798, %v1702
        %v2087 = vpack.c.b16 %v1799, %v1703
        %v2088 = vpack.c.b16 %v1800, %v1704
        %v2089 = vpack.c.b16 %v1801, %v1705
        %v2090 = vpack.c.b16 %v1802, %v1706
        %v2091 = vpack.c.b16 %v1803, %v1707
        %v2092 = vpack.c.b16 %v1804, %v1708
        %v2093 = vpack.c.b16 %v1805, %v1709
        %v2094 = vpack.c.b16 %v1806, %v1710
        %v2095 = vpack.c.b16 %v1807, %v1711
        %v2096 = vpack.c.b16 %v1808, %v1712
        %v2097 = vpack.c.b16 %v1809, %v1713
        %v2098 = vpack.c.b16 %v1810, %v1714
        %v2099 = vpack.c.b16 %v1811, %v1715
        %v2100 = vpack.c.b16 %v1812, %v1716
        %v2101 = vpack.c.b16 %v1813, %v1717
        %v2102 = vpack.c.b16 %v1814, %v1718
        %v2103 = vpack.c.b16 %v1815, %v1719
        %v2104 = vpack.c.b16 %v1816, %v1720
        %v2105 = vpack.c.b16 %v1817, %v1721
        %v2106 = vpack.c.b16 %v1818, %v1722
        %v2107 = vpack.c.b16 %v1819, %v1723
        %v2108 = vpack.c.b16 %v1820, %v1724
        %v2109 = vpack.c.b16 %v1821, %v1725
        %v2110 = vpack.c.b16 %v1822, %v1726
        %v2111 = vpack.c.b16 %v1823, %v1727
        %v2112 = vpack.c.b16 %v1824, %v1728
        %v2113 = vpack.c.b16 %v1825, %v1729
        %v2114 = vpack.c.b16 %v1826, %v1730
        %v2115 = vpack.c.b16 %v1827, %v1731
        %v2116 = vpack.c.b16 %v1828, %v1732
        %v2117 = vpack.c.b16 %v1829, %v1733
        %v2118 = vpack.c.b16 %v1830, %v1734
        %v2119 = vpack.c.b16 %v1831, %v1735
        %v2120 = vpack.c.b16 %v1832, %v1736
        %v2121 = vpack.c.b16 %v1833, %v1737
        %v2122 = vpack.c.b16 %v1834, %v1738
        %v2123 = vpack.c.b16 %v1835, %v1739
        %v2124 = vpack.c.b16 %v1836, %v1740
        %v2125 = vpack.c.b16 %v1837, %v1741
        %v2126 = vpack.c.b16 %v1838, %v1742
        %v2127 = vpack.c.b16 %v1839, %v1743
        %v2128 = vpack.c.b16 %v1840, %v1744
        %v2129 = vpack.c.b16 %v1841, %v1745
        %v2130 = vpack.c.b16 %v1842, %v1746
        %v2131 = vpack.c.b16 %v1843, %v1747
        %v2132 = vpack.c.b16 %v1844, %v1748
        %v2133 = vpack.c.b16 %v1845, %v1749
        %v2134 = vpack.c.b16 %v1846, %v1750
        %v2135 = vpack.c.b16 %v1847, %v1751
        %v2136 = vpack.c.b16 %v1848, %v1752
        %v2137 = vpack.c.b16 %v1849, %v1753
        %v2138 = vpack.c.b16 %v1850, %v1754
        %v2139 = vpack.c.b16 %v1851, %v1755
        %v2140 = vpack.c.b16 %v1852, %v1756
        %v2141 = vpack.c.b16 %v1853, %v1757
        %v2142 = vpack.c.b16 %v1854, %v1758
        %v2143 = vpack.c.b16 %v1855, %v1759
        %v2144 = vpack.c.b16 %v1856, %v1760
        %v2145 = vpack.c.b16 %v1857, %v1761
        %v2146 = vpack.c.b16 %v1858, %v1762
        %v2147 = vpack.c.b16 %v1859, %v1763
        %v2148 = vpack.c.b16 %v1860, %v1764
        %v2149 = vpack.c.b16 %v1861, %v1765
        %v2150 = vpack.c.b16 %v1862, %v1766
        %v2151 = vpack.c.b16 %v1863, %v1767
        %v2152 = vpack.c.b16 %v1864, %v1768
        %v2153 = vpack.c.b16 %v1865, %v1769
        %v2154 = vpack.c.b16 %v1866, %v1770
        %v2155 = vpack.c.b16 %v1867, %v1771
        %v2156 = vpack.c.b16 %v1868, %v1772
        %v2157 = vpack.c.b16 %v1869, %v1773
        %v2158 = vpack.c.b16 %v1870, %v1774
        %v2159 = vpack.c.b16 %v1871, %v1775
        %v2160 = vpack.c.b16 %v1872, %v1776
        %v2161 = vpack.c.b16 %v1873, %v1777
        %v2162 = vpack.c.b16 %v1874, %v1778
        %v2163 = vpack.c.b16 %v1875, %v1779
        %v2164 = vpack.c.b16 %v1876, %v1780
        %v2165 = vpack.c.b16 %v1973, %v1877
        %v2166 = vpack.c.b16 %v1974, %v1878
        %v2167 = vpack.c.b16 %v1975, %v1879
        %v2168 = vpack.c.b16 %v1976, %v1880
        %v2169 = vpack.c.b16 %v1977, %v1881
        %v2170 = vpack.c.b16 %v1978, %v1882
        %v2171 = vpack.c.b16 %v1979, %v1883
        %v2172 = vpack.c.b16 %v1980, %v1884
        %v2173 = vpack.c.b16 %v1981, %v1885
        %v2174 = vpack.c.b16 %v1982, %v1886
        %v2175 = vpack.c.b16 %v1983, %v1887
        %v2176 = vpack.c.b16 %v1984, %v1888
        %v2177 = vpack.c.b16 %v1985, %v1889
        %v2178 = vpack.c.b16 %v1986, %v1890
        %v2179 = vpack.c.b16 %v1987, %v1891
        %v2180 = vpack.c.b16 %v1988, %v1892
        %v2181 = vpack.c.b16 %v1989, %v1893
        %v2182 = vpack.c.b16 %v1990, %v1894
        %v2183 = vpack.c.b16 %v1991, %v1895
        %v2184 = vpack.c.b16 %v1992, %v1896
        %v2185 = vpack.c.b16 %v1993, %v1897
        %v2186 = vpack.c.b16 %v1994, %v1898
        %v2187 = vpack.c.b16 %v1995, %v1899
        %v2188 = vpack.c.b16 %v1996, %v1900
        %v2189 = vpack.c.b16 %v1997, %v1901
        %v2190 = vpack.c.b16 %v1998, %v1902
        %v2191 = vpack.c.b16 %v1999, %v1903
        %v2192 = vpack.c.b16 %v2000, %v1904
        %v2193 = vpack.c.b16 %v2001, %v1905
        %v2194 = vpack.c.b16 %v2002, %v1906
        %v2195 = vpack.c.b16 %v2003, %v1907
        %v2196 = vpack.c.b16 %v2004, %v1908
        %v2197 = vpack.c.b16 %v2005, %v1909
        %v2198 = vpack.c.b16 %v2006, %v1910
        %v2199 = vpack.c.b16 %v2007, %v1911
        %v2200 = vpack.c.b16 %v2008, %v1912
        %v2201 = vpack.c.b16 %v2009, %v1913
        %v2202 = vpack.c.b16 %v2010, %v1914
        %v2203 = vpack.c.b16 %v2011, %v1915
        %v2204 = vpack.c.b16 %v2012, %v1916
        %v2205 = vpack.c.b16 %v2013, %v1917
        %v2206 = vpack.c.b16 %v2014, %v1918
        %v2207 = vpack.c.b16 %v2015, %v1919
        %v2208 = vpack.c.b16 %v2016, %v1920
        %v2209 = vpack.c.b16 %v2017, %v1921
        %v2210 = vpack.c.b16 %v2018, %v1922
        %v2211 = vpack.c.b16 %v2019, %v1923
        %v2212 = vpack.c.b16 %v2020, %v1924
        %v2213 = vpack.c.b16 %v2021, %v1925
        %v2214 = vpack.c.b16 %v2022, %v1926
        %v2215 = vpack.c.b16 %v2023, %v1927
        %v2216 = vpack.c.b16 %v2024, %v1928
        %v2217 = vpack.c.b16 %v2025, %v1929
        %v2218 = vpack.c.b16 %v2026, %v1930
        %v2219 = vpack.c.b16 %v2027, %v1931
        %v2220 = vpack.c.b16 %v2028, %v1932
        %v2221 = vpack.c.b16 %v2029, %v1933
        %v2222 = vpack.c.b16 %v2030, %v1934
        %v2223 = vpack.c.b16 %v2031, %v1935
        %v2224 = vpack.c.b16 %v2032, %v1936
        %v2225 = vpack.c.b16 %v2033, %v1937
        %v2226 = vpack.c.b16 %v2034, %v1938
        %v2227 = vpack.c.b16 %v2035, %v1939
        %v2228 = vpack.c.b16 %v2036, %v1940
        %v2229 = vpack.c.b16 %v2037, %v1941
        %v2230 = vpack.c.b16 %v2038, %v1942
        %v2231 = vpack.c.b16 %v2039, %v1943
        %v2232 = vpack.c.b16 %v2040, %v1944
        %v2233 = vpack.c.b16 %v2041, %v1945
        %v2234 = vpack.c.b16 %v2042, %v1946
        %v2235 = vpack.c.b16 %v2043, %v1947
        %v2236 = vpack.c.b16 %v2044, %v1948
        %v2237 = vpack.c.b16 %v2045, %v1949
        %v2238 = vpack.c.b16 %v2046, %v1950
        %v2239 = vpack.c.b16 %v2047, %v1951
        %v2240 = vpack.c.b16 %v2048, %v1952
        %v2241 = vpack.c.b16 %v2049, %v1953
        %v2242 = vpack.c.b16 %v2050, %v1954
        %v2243 = vpack.c.b16 %v2051, %v1955
        %v2244 = vpack.c.b16 %v2052, %v1956
        %v2245 = vpack.c.b16 %v2053, %v1957
        %v2246 = vpack.c.b16 %v2054, %v1958
        %v2247 = vpack.c.b16 %v2055, %v1959
        %v2248 = vpack.c.b16 %v2056, %v1960
        %v2249 = vpack.c.b16 %v2057, %v1961
        %v2250 = vpack.c.b16 %v2058, %v1962
        %v2251 = vpack.c.b16 %v2059, %v1963
        %v2252 = vpack.c.b16 %v2060, %v1964
        %v2253 = vpack.c.b16 %v2061, %v1965
        %v2254 = vpack.c.b16 %v2062, %v1966
        %v2255 = vpack.c.b16 %v2063, %v1967
        %v2256 = vpack.c.b16 %v2064, %v1968
        %v2257 = vpack.c.b16 %v2065, %v1969
        %v2258 = vpack.c.b16 %v2066, %v1970
        %v2259 = vpack.c.b16 %v2067, %v1971
        %v2260 = vpack.c.b16 %v2068, %v1972
        %vm2453 = vcmask 261120
        %v2455 = vsel %vm2453, %v376, 0
        %2457 = vmatprep.subr.bf16.mxu0 %v2070
        %2458 = vmatpush1.bf16.msra.mxu0 %v2069
        %2459 = vmatprep.subr.bf16.mxu0 %v2166
        %2460 = vmatpush1.bf16.msra.mxu0 %v2165
        %2461 = vmatprep.subr.bf16.mxu0 0
        %2462 = vmatpush1.bf16.msra.mxu0 0
        %2463 = vmatprep.subr.bf16.mxu0 0
        %2464 = vmatpush1.bf16.msra.mxu0 0
        %2465 = vmatprep.subr.bf16.mxu0 0
        %2466 = vmatpush1.bf16.msra.mxu0 0
        %2467 = vmatprep.subr.bf16.mxu0 0
        %2468 = vmatpush1.bf16.msra.mxu0 0
        %2469 = vmatprep.subr.bf16.mxu0 0
        %2470 = vmatpush1.bf16.msra.mxu0 0
        %2471 = vmatprep.subr.bf16.mxu0 0
        %2472 = vmatpush1.bf16.msra.mxu0 0
        %2473 = vmatprep.subr.bf16.mxu0 0
        %2474 = vmatpush1.bf16.msra.mxu0 0
        %2475 = vmatprep.subr.bf16.mxu0 0
        %2476 = vmatpush1.bf16.msra.mxu0 0
        %2477 = vmatprep.subr.bf16.mxu0 0
        %2478 = vmatpush1.bf16.msra.mxu0 0
        %2479 = vmatprep.subr.bf16.mxu0 0
        %2480 = vmatpush1.bf16.msra.mxu0 0
        %2481 = vmatprep.subr.bf16.mxu0 0
        %2482 = vmatpush1.bf16.msra.mxu0 0
        %2483 = vmatprep.subr.bf16.mxu0 0
        %2484 = vmatpush1.bf16.msra.mxu0 0
        %2485 = vmatprep.subr.bf16.mxu0 0
        %2486 = vmatpush1.bf16.msra.mxu0 0
        %2487 = vmatprep.subr.bf16.mxu0 0
        %2488 = vmatpush1.bf16.msra.mxu0 0
        %2489 = vmatprep.mubr.bf16.mxu0 0
        %2490 = vmatmul.mubr.bf16.gmra.mrb[0].mxu0 %v2455
        %v2491 = vpop.f32.mrb[0].mxu0
        %v2492 = vadd.f32 %v1112, %v2491
        %v2493 = vpop.f32.mrb[0].mxu0
        %v2494 = vadd.f32 %v1116, %v2493
        %v2495 = vpop.f32.mrb[0].mxu0
        %v2496 = vpop.f32.mrb[0].mxu0
        %2497 = vdwg.mxu0
        %2498 = vmatprep.subr.bf16.mxu0 %v2072
        %2499 = vmatpush1.bf16.msra.mxu0 %v2071
        %2500 = vmatprep.subr.bf16.mxu0 %v2168
        %2501 = vmatpush1.bf16.msra.mxu0 %v2167
        %2502 = vmatprep.subr.bf16.mxu0 0
        %2503 = vmatpush1.bf16.msra.mxu0 0
        %2504 = vmatprep.subr.bf16.mxu0 0
        %2505 = vmatpush1.bf16.msra.mxu0 0
        %2506 = vmatprep.subr.bf16.mxu0 0
        %2507 = vmatpush1.bf16.msra.mxu0 0
        %2508 = vmatprep.subr.bf16.mxu0 0
        %2509 = vmatpush1.bf16.msra.mxu0 0
        %2510 = vmatprep.subr.bf16.mxu0 0
        %2511 = vmatpush1.bf16.msra.mxu0 0
        %2512 = vmatprep.subr.bf16.mxu0 0
        %2513 = vmatpush1.bf16.msra.mxu0 0
        %2514 = vmatprep.subr.bf16.mxu0 0
        %2515 = vmatpush1.bf16.msra.mxu0 0
        %2516 = vmatprep.subr.bf16.mxu0 0
        %2517 = vmatpush1.bf16.msra.mxu0 0
        %2518 = vmatprep.subr.bf16.mxu0 0
        %2519 = vmatpush1.bf16.msra.mxu0 0
        %2520 = vmatprep.subr.bf16.mxu0 0
        %2521 = vmatpush1.bf16.msra.mxu0 0
        %2522 = vmatprep.subr.bf16.mxu0 0
        %2523 = vmatpush1.bf16.msra.mxu0 0
        %2524 = vmatprep.subr.bf16.mxu0 0
        %2525 = vmatpush1.bf16.msra.mxu0 0
        %2526 = vmatprep.subr.bf16.mxu0 0
        %2527 = vmatpush1.bf16.msra.mxu0 0
        %2528 = vmatprep.subr.bf16.mxu0 0
        %2529 = vmatpush1.bf16.msra.mxu0 0
        %2530 = vmatprep.mubr.bf16.mxu0 0
        %2531 = vmatmul.mubr.bf16.gmra.mrb[0].mxu0 %v2455
        %v2532 = vpop.f32.mrb[0].mxu0
        %v2533 = vadd.f32 %v1120, %v2532
        %v2534 = vpop.f32.mrb[0].mxu0
        %v2535 = vadd.f32 %v1124, %v2534
        %v2536 = vpop.f32.mrb[0].mxu0
        %v2537 = vpop.f32.mrb[0].mxu0
        %2538 = vdwg.mxu0
        %2539 = vmatprep.subr.bf16.mxu0 %v2074
        %2540 = vmatpush1.bf16.msra.mxu0 %v2073
        %2541 = vmatprep.subr.bf16.mxu0 %v2170
        %2542 = vmatpush1.bf16.msra.mxu0 %v2169
        %2543 = vmatprep.subr.bf16.mxu0 0
        %2544 = vmatpush1.bf16.msra.mxu0 0
        %2545 = vmatprep.subr.bf16.mxu0 0
        %2546 = vmatpush1.bf16.msra.mxu0 0
        %2547 = vmatprep.subr.bf16.mxu0 0
        %2548 = vmatpush1.bf16.msra.mxu0 0
        %2549 = vmatprep.subr.bf16.mxu0 0
        %2550 = vmatpush1.bf16.msra.mxu0 0
        %2551 = vmatprep.subr.bf16.mxu0 0
        %2552 = vmatpush1.bf16.msra.mxu0 0
        %2553 = vmatprep.subr.bf16.mxu0 0
        %2554 = vmatpush1.bf16.msra.mxu0 0
        %2555 = vmatprep.subr.bf16.mxu0 0
        %2556 = vmatpush1.bf16.msra.mxu0 0
        %2557 = vmatprep.subr.bf16.mxu0 0
        %2558 = vmatpush1.bf16.msra.mxu0 0
        %2559 = vmatprep.subr.bf16.mxu0 0
        %2560 = vmatpush1.bf16.msra.mxu0 0
        %2561 = vmatprep.subr.bf16.mxu0 0
        %2562 = vmatpush1.bf16.msra.mxu0 0
        %2563 = vmatprep.subr.bf16.mxu0 0
        %2564 = vmatpush1.bf16.msra.mxu0 0
        %2565 = vmatprep.subr.bf16.mxu0 0
        %2566 = vmatpush1.bf16.msra.mxu0 0
        %2567 = vmatprep.subr.bf16.mxu0 0
        %2568 = vmatpush1.bf16.msra.mxu0 0
        %2569 = vmatprep.subr.bf16.mxu0 0
        %2570 = vmatpush1.bf16.msra.mxu0 0
        %2571 = vmatprep.mubr.bf16.mxu0 0
        %2572 = vmatmul.mubr.bf16.gmra.mrb[0].mxu0 %v2455
        %v2573 = vpop.f32.mrb[0].mxu0
        %v2574 = vadd.f32 %v1128, %v2573
        %v2575 = vpop.f32.mrb[0].mxu0
        %v2576 = vadd.f32 %v1132, %v2575
        %v2577 = vpop.f32.mrb[0].mxu0
        %v2578 = vpop.f32.mrb[0].mxu0
        %2579 = vdwg.mxu0
        %2580 = vmatprep.subr.bf16.mxu0 %v2076
        %2581 = vmatpush1.bf16.msra.mxu0 %v2075
        %2582 = vmatprep.subr.bf16.mxu0 %v2172
        %2583 = vmatpush1.bf16.msra.mxu0 %v2171
        %2584 = vmatprep.subr.bf16.mxu0 0
        %2585 = vmatpush1.bf16.msra.mxu0 0
        %2586 = vmatprep.subr.bf16.mxu0 0
        %2587 = vmatpush1.bf16.msra.mxu0 0
        %2588 = vmatprep.subr.bf16.mxu0 0
        %2589 = vmatpush1.bf16.msra.mxu0 0
        %2590 = vmatprep.subr.bf16.mxu0 0
        %2591 = vmatpush1.bf16.msra.mxu0 0
        %2592 = vmatprep.subr.bf16.mxu0 0
        %2593 = vmatpush1.bf16.msra.mxu0 0
        %2594 = vmatprep.subr.bf16.mxu0 0
        %2595 = vmatpush1.bf16.msra.mxu0 0
        %2596 = vmatprep.subr.bf16.mxu0 0
        %2597 = vmatpush1.bf16.msra.mxu0 0
        %2598 = vmatprep.subr.bf16.mxu0 0
        %2599 = vmatpush1.bf16.msra.mxu0 0
        %2600 = vmatprep.subr.bf16.mxu0 0
        %2601 = vmatpush1.bf16.msra.mxu0 0
        %2602 = vmatprep.subr.bf16.mxu0 0
        %2603 = vmatpush1.bf16.msra.mxu0 0
        %2604 = vmatprep.subr.bf16.mxu0 0
        %2605 = vmatpush1.bf16.msra.mxu0 0
        %2606 = vmatprep.subr.bf16.mxu0 0
        %2607 = vmatpush1.bf16.msra.mxu0 0
        %2608 = vmatprep.subr.bf16.mxu0 0
        %2609 = vmatpush1.bf16.msra.mxu0 0
        %2610 = vmatprep.subr.bf16.mxu0 0
        %2611 = vmatpush1.bf16.msra.mxu0 0
        %2612 = vmatprep.mubr.bf16.mxu0 0
        %2613 = vmatmul.mubr.bf16.gmra.mrb[0].mxu0 %v2455
        %v2614 = vpop.f32.mrb[0].mxu0
        %v2615 = vadd.f32 %v1136, %v2614
        %v2616 = vpop.f32.mrb[0].mxu0
        %v2617 = vadd.f32 %v1140, %v2616
        %v2618 = vpop.f32.mrb[0].mxu0
        %v2619 = vpop.f32.mrb[0].mxu0
        %2620 = vdwg.mxu0
        %2621 = vmatprep.subr.bf16.mxu0 %v2078
        %2622 = vmatpush1.bf16.msra.mxu0 %v2077
        %2623 = vmatprep.subr.bf16.mxu0 %v2174
        %2624 = vmatpush1.bf16.msra.mxu0 %v2173
        %2625 = vmatprep.subr.bf16.mxu0 0
        %2626 = vmatpush1.bf16.msra.mxu0 0
        %2627 = vmatprep.subr.bf16.mxu0 0
        %2628 = vmatpush1.bf16.msra.mxu0 0
        %2629 = vmatprep.subr.bf16.mxu0 0
        %2630 = vmatpush1.bf16.msra.mxu0 0
        %2631 = vmatprep.subr.bf16.mxu0 0
        %2632 = vmatpush1.bf16.msra.mxu0 0
        %2633 = vmatprep.subr.bf16.mxu0 0
        %2634 = vmatpush1.bf16.msra.mxu0 0
        %2635 = vmatprep.subr.bf16.mxu0 0
        %2636 = vmatpush1.bf16.msra.mxu0 0
        %2637 = vmatprep.subr.bf16.mxu0 0
        %2638 = vmatpush1.bf16.msra.mxu0 0
        %2639 = vmatprep.subr.bf16.mxu0 0
        %2640 = vmatpush1.bf16.msra.mxu0 0
        %2641 = vmatprep.subr.bf16.mxu0 0
        %2642 = vmatpush1.bf16.msra.mxu0 0
        %2643 = vmatprep.subr.bf16.mxu0 0
        %2644 = vmatpush1.bf16.msra.mxu0 0
        %2645 = vmatprep.subr.bf16.mxu0 0
        %2646 = vmatpush1.bf16.msra.mxu0 0
        %2647 = vmatprep.subr.bf16.mxu0 0
        %2648 = vmatpush1.bf16.msra.mxu0 0
        %2649 = vmatprep.subr.bf16.mxu0 0
        %2650 = vmatpush1.bf16.msra.mxu0 0
        %2651 = vmatprep.subr.bf16.mxu0 0
        %2652 = vmatpush1.bf16.msra.mxu0 0
        %2653 = vmatprep.mubr.bf16.mxu0 0
        %2654 = vmatmul.mubr.bf16.gmra.mrb[0].mxu0 %v2455
        %v2655 = vpop.f32.mrb[0].mxu0
        %v2656 = vadd.f32 %v1144, %v2655
        %v2657 = vpop.f32.mrb[0].mxu0
        %v2658 = vadd.f32 %v1148, %v2657
        %v2659 = vpop.f32.mrb[0].mxu0
        %v2660 = vpop.f32.mrb[0].mxu0
        %2661 = vdwg.mxu0
        %2662 = vmatprep.subr.bf16.mxu0 %v2080
        %2663 = vmatpush1.bf16.msra.mxu0 %v2079
        %2664 = vmatprep.subr.bf16.mxu0 %v2176
        %2665 = vmatpush1.bf16.msra.mxu0 %v2175
        %2666 = vmatprep.subr.bf16.mxu0 0
        %2667 = vmatpush1.bf16.msra.mxu0 0
        %2668 = vmatprep.subr.bf16.mxu0 0
        %2669 = vmatpush1.bf16.msra.mxu0 0
        %2670 = vmatprep.subr.bf16.mxu0 0
        %2671 = vmatpush1.bf16.msra.mxu0 0
        %2672 = vmatprep.subr.bf16.mxu0 0
        %2673 = vmatpush1.bf16.msra.mxu0 0
        %2674 = vmatprep.subr.bf16.mxu0 0
        %2675 = vmatpush1.bf16.msra.mxu0 0
        %2676 = vmatprep.subr.bf16.mxu0 0
        %2677 = vmatpush1.bf16.msra.mxu0 0
        %2678 = vmatprep.subr.bf16.mxu0 0
        %2679 = vmatpush1.bf16.msra.mxu0 0
        %2680 = vmatprep.subr.bf16.mxu0 0
        %2681 = vmatpush1.bf16.msra.mxu0 0
        %2682 = vmatprep.subr.bf16.mxu0 0
        %2683 = vmatpush1.bf16.msra.mxu0 0
        %2684 = vmatprep.subr.bf16.mxu0 0
        %2685 = vmatpush1.bf16.msra.mxu0 0
        %2686 = vmatprep.subr.bf16.mxu0 0
        %2687 = vmatpush1.bf16.msra.mxu0 0
        %2688 = vmatprep.subr.bf16.mxu0 0
        %2689 = vmatpush1.bf16.msra.mxu0 0
        %2690 = vmatprep.subr.bf16.mxu0 0
        %2691 = vmatpush1.bf16.msra.mxu0 0
        %2692 = vmatprep.subr.bf16.mxu0 0
        %2693 = vmatpush1.bf16.msra.mxu0 0
        %2694 = vmatprep.mubr.bf16.mxu0 0
        %2695 = vmatmul.mubr.bf16.gmra.mrb[0].mxu0 %v2455
        %v2696 = vpop.f32.mrb[0].mxu0
        %v2697 = vadd.f32 %v1152, %v2696
        %v2698 = vpop.f32.mrb[0].mxu0
        %v2699 = vadd.f32 %v1156, %v2698
        %v2700 = vpop.f32.mrb[0].mxu0
        %v2701 = vpop.f32.mrb[0].mxu0
        %2702 = vdwg.mxu0
        %2703 = vmatprep.subr.bf16.mxu0 %v2082
        %2704 = vmatpush1.bf16.msra.mxu0 %v2081
        %2705 = vmatprep.subr.bf16.mxu0 %v2178
        %2706 = vmatpush1.bf16.msra.mxu0 %v2177
        %2707 = vmatprep.subr.bf16.mxu0 0
        %2708 = vmatpush1.bf16.msra.mxu0 0
        %2709 = vmatprep.subr.bf16.mxu0 0
        %2710 = vmatpush1.bf16.msra.mxu0 0
        %2711 = vmatprep.subr.bf16.mxu0 0
        %2712 = vmatpush1.bf16.msra.mxu0 0
        %2713 = vmatprep.subr.bf16.mxu0 0
        %2714 = vmatpush1.bf16.msra.mxu0 0
        %2715 = vmatprep.subr.bf16.mxu0 0
        %2716 = vmatpush1.bf16.msra.mxu0 0
        %2717 = vmatprep.subr.bf16.mxu0 0
        %2718 = vmatpush1.bf16.msra.mxu0 0
        %2719 = vmatprep.subr.bf16.mxu0 0
        %2720 = vmatpush1.bf16.msra.mxu0 0
        %2721 = vmatprep.subr.bf16.mxu0 0
        %2722 = vmatpush1.bf16.msra.mxu0 0
        %2723 = vmatprep.subr.bf16.mxu0 0
        %2724 = vmatpush1.bf16.msra.mxu0 0
        %2725 = vmatprep.subr.bf16.mxu0 0
        %2726 = vmatpush1.bf16.msra.mxu0 0
        %2727 = vmatprep.subr.bf16.mxu0 0
        %2728 = vmatpush1.bf16.msra.mxu0 0
        %2729 = vmatprep.subr.bf16.mxu0 0
        %2730 = vmatpush1.bf16.msra.mxu0 0
        %2731 = vmatprep.subr.bf16.mxu0 0
        %2732 = vmatpush1.bf16.msra.mxu0 0
        %2733 = vmatprep.subr.bf16.mxu0 0
        %2734 = vmatpush1.bf16.msra.mxu0 0
        %2735 = vmatprep.mubr.bf16.mxu0 0
        %2736 = vmatmul.mubr.bf16.gmra.mrb[0].mxu0 %v2455
        %v2737 = vpop.f32.mrb[0].mxu0
        %v2738 = vadd.f32 %v1160, %v2737
        %v2739 = vpop.f32.mrb[0].mxu0
        %v2740 = vadd.f32 %v1164, %v2739
        %v2741 = vpop.f32.mrb[0].mxu0
        %v2742 = vpop.f32.mrb[0].mxu0
        %2743 = vdwg.mxu0
        %2744 = vmatprep.subr.bf16.mxu0 %v2084
        %2745 = vmatpush1.bf16.msra.mxu0 %v2083
        %2746 = vmatprep.subr.bf16.mxu0 %v2180
        %2747 = vmatpush1.bf16.msra.mxu0 %v2179
        %2748 = vmatprep.subr.bf16.mxu0 0
        %2749 = vmatpush1.bf16.msra.mxu0 0
        %2750 = vmatprep.subr.bf16.mxu0 0
        %2751 = vmatpush1.bf16.msra.mxu0 0
        %2752 = vmatprep.subr.bf16.mxu0 0
        %2753 = vmatpush1.bf16.msra.mxu0 0
        %2754 = vmatprep.subr.bf16.mxu0 0
        %2755 = vmatpush1.bf16.msra.mxu0 0
        %2756 = vmatprep.subr.bf16.mxu0 0
        %2757 = vmatpush1.bf16.msra.mxu0 0
        %2758 = vmatprep.subr.bf16.mxu0 0
        %2759 = vmatpush1.bf16.msra.mxu0 0
        %2760 = vmatprep.subr.bf16.mxu0 0
        %2761 = vmatpush1.bf16.msra.mxu0 0
        %2762 = vmatprep.subr.bf16.mxu0 0
        %2763 = vmatpush1.bf16.msra.mxu0 0
        %2764 = vmatprep.subr.bf16.mxu0 0
        %2765 = vmatpush1.bf16.msra.mxu0 0
        %2766 = vmatprep.subr.bf16.mxu0 0
        %2767 = vmatpush1.bf16.msra.mxu0 0
        %2768 = vmatprep.subr.bf16.mxu0 0
        %2769 = vmatpush1.bf16.msra.mxu0 0
        %2770 = vmatprep.subr.bf16.mxu0 0
        %2771 = vmatpush1.bf16.msra.mxu0 0
        %2772 = vmatprep.subr.bf16.mxu0 0
        %2773 = vmatpush1.bf16.msra.mxu0 0
        %2774 = vmatprep.subr.bf16.mxu0 0
        %2775 = vmatpush1.bf16.msra.mxu0 0
        %2776 = vmatprep.mubr.bf16.mxu0 0
        %2777 = vmatmul.mubr.bf16.gmra.mrb[0].mxu0 %v2455
        %v2778 = vpop.f32.mrb[0].mxu0
        %v2779 = vadd.f32 %v1168, %v2778
        %v2780 = vpop.f32.mrb[0].mxu0
        %v2781 = vadd.f32 %v1172, %v2780
        %v2782 = vpop.f32.mrb[0].mxu0
        %v2783 = vpop.f32.mrb[0].mxu0
        %2784 = vdwg.mxu0
        %2785 = vmatprep.subr.bf16.mxu0 %v2086
        %2786 = vmatpush1.bf16.msra.mxu0 %v2085
        %2787 = vmatprep.subr.bf16.mxu0 %v2182
        %2788 = vmatpush1.bf16.msra.mxu0 %v2181
        %2789 = vmatprep.subr.bf16.mxu0 0
        %2790 = vmatpush1.bf16.msra.mxu0 0
        %2791 = vmatprep.subr.bf16.mxu0 0
        %2792 = vmatpush1.bf16.msra.mxu0 0
        %2793 = vmatprep.subr.bf16.mxu0 0
        %2794 = vmatpush1.bf16.msra.mxu0 0
        %2795 = vmatprep.subr.bf16.mxu0 0
        %2796 = vmatpush1.bf16.msra.mxu0 0
        %2797 = vmatprep.subr.bf16.mxu0 0
        %2798 = vmatpush1.bf16.msra.mxu0 0
        %2799 = vmatprep.subr.bf16.mxu0 0
        %2800 = vmatpush1.bf16.msra.mxu0 0
        %2801 = vmatprep.subr.bf16.mxu0 0
        %2802 = vmatpush1.bf16.msra.mxu0 0
        %2803 = vmatprep.subr.bf16.mxu0 0
        %2804 = vmatpush1.bf16.msra.mxu0 0
        %2805 = vmatprep.subr.bf16.mxu0 0
        %2806 = vmatpush1.bf16.msra.mxu0 0
        %2807 = vmatprep.subr.bf16.mxu0 0
        %2808 = vmatpush1.bf16.msra.mxu0 0
        %2809 = vmatprep.subr.bf16.mxu0 0
        %2810 = vmatpush1.bf16.msra.mxu0 0
        %2811 = vmatprep.subr.bf16.mxu0 0
        %2812 = vmatpush1.bf16.msra.mxu0 0
        %2813 = vmatprep.subr.bf16.mxu0 0
        %2814 = vmatpush1.bf16.msra.mxu0 0
        %2815 = vmatprep.subr.bf16.mxu0 0
        %2816 = vmatpush1.bf16.msra.mxu0 0
        %2817 = vmatprep.mubr.bf16.mxu0 0
        %2818 = vmatmul.mubr.bf16.gmra.mrb[0].mxu0 %v2455
        %v2819 = vpop.f32.mrb[0].mxu0
        %v2820 = vadd.f32 %v1176, %v2819
        %v2821 = vpop.f32.mrb[0].mxu0
        %v2822 = vadd.f32 %v1180, %v2821
        %v2823 = vpop.f32.mrb[0].mxu0
        %v2824 = vpop.f32.mrb[0].mxu0
        %2825 = vdwg.mxu0
        %2826 = vmatprep.subr.bf16.mxu0 %v2088
        %2827 = vmatpush1.bf16.msra.mxu0 %v2087
        %2828 = vmatprep.subr.bf16.mxu0 %v2184
        %2829 = vmatpush1.bf16.msra.mxu0 %v2183
        %2830 = vmatprep.subr.bf16.mxu0 0
        %2831 = vmatpush1.bf16.msra.mxu0 0
        %2832 = vmatprep.subr.bf16.mxu0 0
        %2833 = vmatpush1.bf16.msra.mxu0 0
        %2834 = vmatprep.subr.bf16.mxu0 0
        %2835 = vmatpush1.bf16.msra.mxu0 0
        %2836 = vmatprep.subr.bf16.mxu0 0
        %2837 = vmatpush1.bf16.msra.mxu0 0
        %2838 = vmatprep.subr.bf16.mxu0 0
        %2839 = vmatpush1.bf16.msra.mxu0 0
        %2840 = vmatprep.subr.bf16.mxu0 0
        %2841 = vmatpush1.bf16.msra.mxu0 0
        %2842 = vmatprep.subr.bf16.mxu0 0
        %2843 = vmatpush1.bf16.msra.mxu0 0
        %2844 = vmatprep.subr.bf16.mxu0 0
        %2845 = vmatpush1.bf16.msra.mxu0 0
        %2846 = vmatprep.subr.bf16.mxu0 0
        %2847 = vmatpush1.bf16.msra.mxu0 0
        %2848 = vmatprep.subr.bf16.mxu0 0
        %2849 = vmatpush1.bf16.msra.mxu0 0
        %2850 = vmatprep.subr.bf16.mxu0 0
        %2851 = vmatpush1.bf16.msra.mxu0 0
        %2852 = vmatprep.subr.bf16.mxu0 0
        %2853 = vmatpush1.bf16.msra.mxu0 0
        %2854 = vmatprep.subr.bf16.mxu0 0
        %2855 = vmatpush1.bf16.msra.mxu0 0
        %2856 = vmatprep.subr.bf16.mxu0 0
        %2857 = vmatpush1.bf16.msra.mxu0 0
        %2858 = vmatprep.mubr.bf16.mxu0 0
        %2859 = vmatmul.mubr.bf16.gmra.mrb[0].mxu0 %v2455
        %v2860 = vpop.f32.mrb[0].mxu0
        %v2861 = vadd.f32 %v1184, %v2860
        %v2862 = vpop.f32.mrb[0].mxu0
        %v2863 = vadd.f32 %v1188, %v2862
        %v2864 = vpop.f32.mrb[0].mxu0
        %v2865 = vpop.f32.mrb[0].mxu0
        %2866 = vdwg.mxu0
        %2867 = vmatprep.subr.bf16.mxu0 %v2090
        %2868 = vmatpush1.bf16.msra.mxu0 %v2089
        %2869 = vmatprep.subr.bf16.mxu0 %v2186
        %2870 = vmatpush1.bf16.msra.mxu0 %v2185
        %2871 = vmatprep.subr.bf16.mxu0 0
        %2872 = vmatpush1.bf16.msra.mxu0 0
        %2873 = vmatprep.subr.bf16.mxu0 0
        %2874 = vmatpush1.bf16.msra.mxu0 0
        %2875 = vmatprep.subr.bf16.mxu0 0
        %2876 = vmatpush1.bf16.msra.mxu0 0
        %2877 = vmatprep.subr.bf16.mxu0 0
        %2878 = vmatpush1.bf16.msra.mxu0 0
        %2879 = vmatprep.subr.bf16.mxu0 0
        %2880 = vmatpush1.bf16.msra.mxu0 0
        %2881 = vmatprep.subr.bf16.mxu0 0
        %2882 = vmatpush1.bf16.msra.mxu0 0
        %2883 = vmatprep.subr.bf16.mxu0 0
        %2884 = vmatpush1.bf16.msra.mxu0 0
        %2885 = vmatprep.subr.bf16.mxu0 0
        %2886 = vmatpush1.bf16.msra.mxu0 0
        %2887 = vmatprep.subr.bf16.mxu0 0
        %2888 = vmatpush1.bf16.msra.mxu0 0
        %2889 = vmatprep.subr.bf16.mxu0 0
        %2890 = vmatpush1.bf16.msra.mxu0 0
        %2891 = vmatprep.subr.bf16.mxu0 0
        %2892 = vmatpush1.bf16.msra.mxu0 0
        %2893 = vmatprep.subr.bf16.mxu0 0
        %2894 = vmatpush1.bf16.msra.mxu0 0
        %2895 = vmatprep.subr.bf16.mxu0 0
        %2896 = vmatpush1.bf16.msra.mxu0 0
        %2897 = vmatprep.subr.bf16.mxu0 0
        %2898 = vmatpush1.bf16.msra.mxu0 0
        %2899 = vmatprep.mubr.bf16.mxu0 0
        %2900 = vmatmul.mubr.bf16.gmra.mrb[0].mxu0 %v2455
        %v2901 = vpop.f32.mrb[0].mxu0
        %v2902 = vadd.f32 %v1192, %v2901
        %v2903 = vpop.f32.mrb[0].mxu0
        %v2904 = vadd.f32 %v1196, %v2903
        %v2905 = vpop.f32.mrb[0].mxu0
        %v2906 = vpop.f32.mrb[0].mxu0
        %2907 = vdwg.mxu0
        %2908 = vmatprep.subr.bf16.mxu0 %v2092
        %2909 = vmatpush1.bf16.msra.mxu0 %v2091
        %2910 = vmatprep.subr.bf16.mxu0 %v2188
        %2911 = vmatpush1.bf16.msra.mxu0 %v2187
        %2912 = vmatprep.subr.bf16.mxu0 0
        %2913 = vmatpush1.bf16.msra.mxu0 0
        %2914 = vmatprep.subr.bf16.mxu0 0
        %2915 = vmatpush1.bf16.msra.mxu0 0
        %2916 = vmatprep.subr.bf16.mxu0 0
        %2917 = vmatpush1.bf16.msra.mxu0 0
        %2918 = vmatprep.subr.bf16.mxu0 0
        %2919 = vmatpush1.bf16.msra.mxu0 0
        %2920 = vmatprep.subr.bf16.mxu0 0
        %2921 = vmatpush1.bf16.msra.mxu0 0
        %2922 = vmatprep.subr.bf16.mxu0 0
        %2923 = vmatpush1.bf16.msra.mxu0 0
        %2924 = vmatprep.subr.bf16.mxu0 0
        %2925 = vmatpush1.bf16.msra.mxu0 0
        %2926 = vmatprep.subr.bf16.mxu0 0
        %2927 = vmatpush1.bf16.msra.mxu0 0
        %2928 = vmatprep.subr.bf16.mxu0 0
        %2929 = vmatpush1.bf16.msra.mxu0 0
        %2930 = vmatprep.subr.bf16.mxu0 0
        %2931 = vmatpush1.bf16.msra.mxu0 0
        %2932 = vmatprep.subr.bf16.mxu0 0
        %2933 = vmatpush1.bf16.msra.mxu0 0
        %2934 = vmatprep.subr.bf16.mxu0 0
        %2935 = vmatpush1.bf16.msra.mxu0 0
        %2936 = vmatprep.subr.bf16.mxu0 0
        %2937 = vmatpush1.bf16.msra.mxu0 0
        %2938 = vmatprep.subr.bf16.mxu0 0
        %2939 = vmatpush1.bf16.msra.mxu0 0
        %2940 = vmatprep.mubr.bf16.mxu0 0
        %2941 = vmatmul.mubr.bf16.gmra.mrb[0].mxu0 %v2455
        %v2942 = vpop.f32.mrb[0].mxu0
        %v2943 = vadd.f32 %v1200, %v2942
        %v2944 = vpop.f32.mrb[0].mxu0
        %v2945 = vadd.f32 %v1204, %v2944
        %v2946 = vpop.f32.mrb[0].mxu0
        %v2947 = vpop.f32.mrb[0].mxu0
        %2948 = vdwg.mxu0
        %2949 = vmatprep.subr.bf16.mxu0 %v2094
        %2950 = vmatpush1.bf16.msra.mxu0 %v2093
        %2951 = vmatprep.subr.bf16.mxu0 %v2190
        %2952 = vmatpush1.bf16.msra.mxu0 %v2189
        %2953 = vmatprep.subr.bf16.mxu0 0
        %2954 = vmatpush1.bf16.msra.mxu0 0
        %2955 = vmatprep.subr.bf16.mxu0 0
        %2956 = vmatpush1.bf16.msra.mxu0 0
        %2957 = vmatprep.subr.bf16.mxu0 0
        %2958 = vmatpush1.bf16.msra.mxu0 0
        %2959 = vmatprep.subr.bf16.mxu0 0
        %2960 = vmatpush1.bf16.msra.mxu0 0
        %2961 = vmatprep.subr.bf16.mxu0 0
        %2962 = vmatpush1.bf16.msra.mxu0 0
        %2963 = vmatprep.subr.bf16.mxu0 0
        %2964 = vmatpush1.bf16.msra.mxu0 0
        %2965 = vmatprep.subr.bf16.mxu0 0
        %2966 = vmatpush1.bf16.msra.mxu0 0
        %2967 = vmatprep.subr.bf16.mxu0 0
        %2968 = vmatpush1.bf16.msra.mxu0 0
        %2969 = vmatprep.subr.bf16.mxu0 0
        %2970 = vmatpush1.bf16.msra.mxu0 0
        %2971 = vmatprep.subr.bf16.mxu0 0
        %2972 = vmatpush1.bf16.msra.mxu0 0
        %2973 = vmatprep.subr.bf16.mxu0 0
        %2974 = vmatpush1.bf16.msra.mxu0 0
        %2975 = vmatprep.subr.bf16.mxu0 0
        %2976 = vmatpush1.bf16.msra.mxu0 0
        %2977 = vmatprep.subr.bf16.mxu0 0
        %2978 = vmatpush1.bf16.msra.mxu0 0
        %2979 = vmatprep.subr.bf16.mxu0 0
        %2980 = vmatpush1.bf16.msra.mxu0 0
        %2981 = vmatprep.mubr.bf16.mxu0 0
        %2982 = vmatmul.mubr.bf16.gmra.mrb[0].mxu0 %v2455
        %v2983 = vpop.f32.mrb[0].mxu0
        %v2984 = vadd.f32 %v1208, %v2983
        %v2985 = vpop.f32.mrb[0].mxu0
        %v2986 = vadd.f32 %v1212, %v2985
        %v2987 = vpop.f32.mrb[0].mxu0
        %v2988 = vpop.f32.mrb[0].mxu0
        %2989 = vdwg.mxu0
        %2990 = vmatprep.subr.bf16.mxu0 %v2096
        %2991 = vmatpush1.bf16.msra.mxu0 %v2095
        %2992 = vmatprep.subr.bf16.mxu0 %v2192
        %2993 = vmatpush1.bf16.msra.mxu0 %v2191
        %2994 = vmatprep.subr.bf16.mxu0 0
        %2995 = vmatpush1.bf16.msra.mxu0 0
        %2996 = vmatprep.subr.bf16.mxu0 0
        %2997 = vmatpush1.bf16.msra.mxu0 0
        %2998 = vmatprep.subr.bf16.mxu0 0
        %2999 = vmatpush1.bf16.msra.mxu0 0
        %3000 = vmatprep.subr.bf16.mxu0 0
        %3001 = vmatpush1.bf16.msra.mxu0 0
        %3002 = vmatprep.subr.bf16.mxu0 0
        %3003 = vmatpush1.bf16.msra.mxu0 0
        %3004 = vmatprep.subr.bf16.mxu0 0
        %3005 = vmatpush1.bf16.msra.mxu0 0
        %3006 = vmatprep.subr.bf16.mxu0 0
        %3007 = vmatpush1.bf16.msra.mxu0 0
        %3008 = vmatprep.subr.bf16.mxu0 0
        %3009 = vmatpush1.bf16.msra.mxu0 0
        %3010 = vmatprep.subr.bf16.mxu0 0
        %3011 = vmatpush1.bf16.msra.mxu0 0
        %3012 = vmatprep.subr.bf16.mxu0 0
        %3013 = vmatpush1.bf16.msra.mxu0 0
        %3014 = vmatprep.subr.bf16.mxu0 0
        %3015 = vmatpush1.bf16.msra.mxu0 0
        %3016 = vmatprep.subr.bf16.mxu0 0
        %3017 = vmatpush1.bf16.msra.mxu0 0
        %3018 = vmatprep.subr.bf16.mxu0 0
        %3019 = vmatpush1.bf16.msra.mxu0 0
        %3020 = vmatprep.subr.bf16.mxu0 0
        %3021 = vmatpush1.bf16.msra.mxu0 0
        %3022 = vmatprep.mubr.bf16.mxu0 0
        %3023 = vmatmul.mubr.bf16.gmra.mrb[0].mxu0 %v2455
        %v3024 = vpop.f32.mrb[0].mxu0
        %v3025 = vadd.f32 %v1216, %v3024
        %v3026 = vpop.f32.mrb[0].mxu0
        %v3027 = vadd.f32 %v1220, %v3026
        %v3028 = vpop.f32.mrb[0].mxu0
        %v3029 = vpop.f32.mrb[0].mxu0
        %3030 = vdwg.mxu0
        %3031 = vmatprep.subr.bf16.mxu0 %v2098
        %3032 = vmatpush1.bf16.msra.mxu0 %v2097
        %3033 = vmatprep.subr.bf16.mxu0 %v2194
        %3034 = vmatpush1.bf16.msra.mxu0 %v2193
        %3035 = vmatprep.subr.bf16.mxu0 0
        %3036 = vmatpush1.bf16.msra.mxu0 0
        %3037 = vmatprep.subr.bf16.mxu0 0
        %3038 = vmatpush1.bf16.msra.mxu0 0
        %3039 = vmatprep.subr.bf16.mxu0 0
        %3040 = vmatpush1.bf16.msra.mxu0 0
        %3041 = vmatprep.subr.bf16.mxu0 0
        %3042 = vmatpush1.bf16.msra.mxu0 0
        %3043 = vmatprep.subr.bf16.mxu0 0
        %3044 = vmatpush1.bf16.msra.mxu0 0
        %3045 = vmatprep.subr.bf16.mxu0 0
        %3046 = vmatpush1.bf16.msra.mxu0 0
        %3047 = vmatprep.subr.bf16.mxu0 0
        %3048 = vmatpush1.bf16.msra.mxu0 0
        %3049 = vmatprep.subr.bf16.mxu0 0
        %3050 = vmatpush1.bf16.msra.mxu0 0
        %3051 = vmatprep.subr.bf16.mxu0 0
        %3052 = vmatpush1.bf16.msra.mxu0 0
        %3053 = vmatprep.subr.bf16.mxu0 0
        %3054 = vmatpush1.bf16.msra.mxu0 0
        %3055 = vmatprep.subr.bf16.mxu0 0
        %3056 = vmatpush1.bf16.msra.mxu0 0
        %3057 = vmatprep.subr.bf16.mxu0 0
        %3058 = vmatpush1.bf16.msra.mxu0 0
        %3059 = vmatprep.subr.bf16.mxu0 0
        %3060 = vmatpush1.bf16.msra.mxu0 0
        %3061 = vmatprep.subr.bf16.mxu0 0
        %3062 = vmatpush1.bf16.msra.mxu0 0
        %3063 = vmatprep.mubr.bf16.mxu0 0
        %3064 = vmatmul.mubr.bf16.gmra.mrb[0].mxu0 %v2455
        %v3065 = vpop.f32.mrb[0].mxu0
        %v3066 = vadd.f32 %v1224, %v3065
        %v3067 = vpop.f32.mrb[0].mxu0
        %v3068 = vadd.f32 %v1228, %v3067
        %v3069 = vpop.f32.mrb[0].mxu0
        %v3070 = vpop.f32.mrb[0].mxu0
        %3071 = vdwg.mxu0
        %3072 = vmatprep.subr.bf16.mxu0 %v2100
        %3073 = vmatpush1.bf16.msra.mxu0 %v2099
        %3074 = vmatprep.subr.bf16.mxu0 %v2196
        %3075 = vmatpush1.bf16.msra.mxu0 %v2195
        %3076 = vmatprep.subr.bf16.mxu0 0
        %3077 = vmatpush1.bf16.msra.mxu0 0
        %3078 = vmatprep.subr.bf16.mxu0 0
        %3079 = vmatpush1.bf16.msra.mxu0 0
        %3080 = vmatprep.subr.bf16.mxu0 0
        %3081 = vmatpush1.bf16.msra.mxu0 0
        %3082 = vmatprep.subr.bf16.mxu0 0
        %3083 = vmatpush1.bf16.msra.mxu0 0
        %3084 = vmatprep.subr.bf16.mxu0 0
        %3085 = vmatpush1.bf16.msra.mxu0 0
        %3086 = vmatprep.subr.bf16.mxu0 0
        %3087 = vmatpush1.bf16.msra.mxu0 0
        %3088 = vmatprep.subr.bf16.mxu0 0
        %3089 = vmatpush1.bf16.msra.mxu0 0
        %3090 = vmatprep.subr.bf16.mxu0 0
        %3091 = vmatpush1.bf16.msra.mxu0 0
        %3092 = vmatprep.subr.bf16.mxu0 0
        %3093 = vmatpush1.bf16.msra.mxu0 0
        %3094 = vmatprep.subr.bf16.mxu0 0
        %3095 = vmatpush1.bf16.msra.mxu0 0
        %3096 = vmatprep.subr.bf16.mxu0 0
        %3097 = vmatpush1.bf16.msra.mxu0 0
        %3098 = vmatprep.subr.bf16.mxu0 0
        %3099 = vmatpush1.bf16.msra.mxu0 0
        %3100 = vmatprep.subr.bf16.mxu0 0
        %3101 = vmatpush1.bf16.msra.mxu0 0
        %3102 = vmatprep.subr.bf16.mxu0 0
        %3103 = vmatpush1.bf16.msra.mxu0 0
        %3104 = vmatprep.mubr.bf16.mxu0 0
        %3105 = vmatmul.mubr.bf16.gmra.mrb[0].mxu0 %v2455
        %v3106 = vpop.f32.mrb[0].mxu0
        %v3107 = vadd.f32 %v1232, %v3106
        %v3108 = vpop.f32.mrb[0].mxu0
        %v3109 = vadd.f32 %v1236, %v3108
        %v3110 = vpop.f32.mrb[0].mxu0
        %v3111 = vpop.f32.mrb[0].mxu0
        %3112 = vdwg.mxu0
        %3113 = vmatprep.subr.bf16.mxu0 %v2102
        %3114 = vmatpush1.bf16.msra.mxu0 %v2101
        %3115 = vmatprep.subr.bf16.mxu0 %v2198
        %3116 = vmatpush1.bf16.msra.mxu0 %v2197
        %3117 = vmatprep.subr.bf16.mxu0 0
        %3118 = vmatpush1.bf16.msra.mxu0 0
        %3119 = vmatprep.subr.bf16.mxu0 0
        %3120 = vmatpush1.bf16.msra.mxu0 0
        %3121 = vmatprep.subr.bf16.mxu0 0
        %3122 = vmatpush1.bf16.msra.mxu0 0
        %3123 = vmatprep.subr.bf16.mxu0 0
        %3124 = vmatpush1.bf16.msra.mxu0 0
        %3125 = vmatprep.subr.bf16.mxu0 0
        %3126 = vmatpush1.bf16.msra.mxu0 0
        %3127 = vmatprep.subr.bf16.mxu0 0
        %3128 = vmatpush1.bf16.msra.mxu0 0
        %3129 = vmatprep.subr.bf16.mxu0 0
        %3130 = vmatpush1.bf16.msra.mxu0 0
        %3131 = vmatprep.subr.bf16.mxu0 0
        %3132 = vmatpush1.bf16.msra.mxu0 0
        %3133 = vmatprep.subr.bf16.mxu0 0
        %3134 = vmatpush1.bf16.msra.mxu0 0
        %3135 = vmatprep.subr.bf16.mxu0 0
        %3136 = vmatpush1.bf16.msra.mxu0 0
        %3137 = vmatprep.subr.bf16.mxu0 0
        %3138 = vmatpush1.bf16.msra.mxu0 0
        %3139 = vmatprep.subr.bf16.mxu0 0
        %3140 = vmatpush1.bf16.msra.mxu0 0
        %3141 = vmatprep.subr.bf16.mxu0 0
        %3142 = vmatpush1.bf16.msra.mxu0 0
        %3143 = vmatprep.subr.bf16.mxu0 0
        %3144 = vmatpush1.bf16.msra.mxu0 0
        %3145 = vmatprep.mubr.bf16.mxu0 0
        %3146 = vmatmul.mubr.bf16.gmra.mrb[0].mxu0 %v2455
        %v3147 = vpop.f32.mrb[0].mxu0
        %v3148 = vadd.f32 %v1240, %v3147
        %v3149 = vpop.f32.mrb[0].mxu0
        %v3150 = vadd.f32 %v1244, %v3149
        %v3151 = vpop.f32.mrb[0].mxu0
        %v3152 = vpop.f32.mrb[0].mxu0
        %3153 = vdwg.mxu0
        %3154 = vmatprep.subr.bf16.mxu0 %v2104
        %3155 = vmatpush1.bf16.msra.mxu0 %v2103
        %3156 = vmatprep.subr.bf16.mxu0 %v2200
        %3157 = vmatpush1.bf16.msra.mxu0 %v2199
        %3158 = vmatprep.subr.bf16.mxu0 0
        %3159 = vmatpush1.bf16.msra.mxu0 0
        %3160 = vmatprep.subr.bf16.mxu0 0
        %3161 = vmatpush1.bf16.msra.mxu0 0
        %3162 = vmatprep.subr.bf16.mxu0 0
        %3163 = vmatpush1.bf16.msra.mxu0 0
        %3164 = vmatprep.subr.bf16.mxu0 0
        %3165 = vmatpush1.bf16.msra.mxu0 0
        %3166 = vmatprep.subr.bf16.mxu0 0
        %3167 = vmatpush1.bf16.msra.mxu0 0
        %3168 = vmatprep.subr.bf16.mxu0 0
        %3169 = vmatpush1.bf16.msra.mxu0 0
        %3170 = vmatprep.subr.bf16.mxu0 0
        %3171 = vmatpush1.bf16.msra.mxu0 0
        %3172 = vmatprep.subr.bf16.mxu0 0
        %3173 = vmatpush1.bf16.msra.mxu0 0
        %3174 = vmatprep.subr.bf16.mxu0 0
        %3175 = vmatpush1.bf16.msra.mxu0 0
        %3176 = vmatprep.subr.bf16.mxu0 0
        %3177 = vmatpush1.bf16.msra.mxu0 0
        %3178 = vmatprep.subr.bf16.mxu0 0
        %3179 = vmatpush1.bf16.msra.mxu0 0
        %3180 = vmatprep.subr.bf16.mxu0 0
        %3181 = vmatpush1.bf16.msra.mxu0 0
        %3182 = vmatprep.subr.bf16.mxu0 0
        %3183 = vmatpush1.bf16.msra.mxu0 0
        %3184 = vmatprep.subr.bf16.mxu0 0
        %3185 = vmatpush1.bf16.msra.mxu0 0
        %3186 = vmatprep.mubr.bf16.mxu0 0
        %3187 = vmatmul.mubr.bf16.gmra.mrb[0].mxu0 %v2455
        %v3188 = vpop.f32.mrb[0].mxu0
        %v3189 = vadd.f32 %v1248, %v3188
        %v3190 = vpop.f32.mrb[0].mxu0
        %v3191 = vadd.f32 %v1252, %v3190
        %v3192 = vpop.f32.mrb[0].mxu0
        %v3193 = vpop.f32.mrb[0].mxu0
        %3194 = vdwg.mxu0
        %3195 = vmatprep.subr.bf16.mxu0 %v2106
        %3196 = vmatpush1.bf16.msra.mxu0 %v2105
        %3197 = vmatprep.subr.bf16.mxu0 %v2202
        %3198 = vmatpush1.bf16.msra.mxu0 %v2201
        %3199 = vmatprep.subr.bf16.mxu0 0
        %3200 = vmatpush1.bf16.msra.mxu0 0
        %3201 = vmatprep.subr.bf16.mxu0 0
        %3202 = vmatpush1.bf16.msra.mxu0 0
        %3203 = vmatprep.subr.bf16.mxu0 0
        %3204 = vmatpush1.bf16.msra.mxu0 0
        %3205 = vmatprep.subr.bf16.mxu0 0
        %3206 = vmatpush1.bf16.msra.mxu0 0
        %3207 = vmatprep.subr.bf16.mxu0 0
        %3208 = vmatpush1.bf16.msra.mxu0 0
        %3209 = vmatprep.subr.bf16.mxu0 0
        %3210 = vmatpush1.bf16.msra.mxu0 0
        %3211 = vmatprep.subr.bf16.mxu0 0
        %3212 = vmatpush1.bf16.msra.mxu0 0
        %3213 = vmatprep.subr.bf16.mxu0 0
        %3214 = vmatpush1.bf16.msra.mxu0 0
        %3215 = vmatprep.subr.bf16.mxu0 0
        %3216 = vmatpush1.bf16.msra.mxu0 0
        %3217 = vmatprep.subr.bf16.mxu0 0
        %3218 = vmatpush1.bf16.msra.mxu0 0
        %3219 = vmatprep.subr.bf16.mxu0 0
        %3220 = vmatpush1.bf16.msra.mxu0 0
        %3221 = vmatprep.subr.bf16.mxu0 0
        %3222 = vmatpush1.bf16.msra.mxu0 0
        %3223 = vmatprep.subr.bf16.mxu0 0
        %3224 = vmatpush1.bf16.msra.mxu0 0
        %3225 = vmatprep.subr.bf16.mxu0 0
        %3226 = vmatpush1.bf16.msra.mxu0 0
        %3227 = vmatprep.mubr.bf16.mxu0 0
        %3228 = vmatmul.mubr.bf16.gmra.mrb[0].mxu0 %v2455
        %v3229 = vpop.f32.mrb[0].mxu0
        %v3230 = vadd.f32 %v1256, %v3229
        %v3231 = vpop.f32.mrb[0].mxu0
        %v3232 = vadd.f32 %v1260, %v3231
        %v3233 = vpop.f32.mrb[0].mxu0
        %v3234 = vpop.f32.mrb[0].mxu0
        %3235 = vdwg.mxu0
        %3236 = vmatprep.subr.bf16.mxu0 %v2108
        %3237 = vmatpush1.bf16.msra.mxu0 %v2107
        %3238 = vmatprep.subr.bf16.mxu0 %v2204
        %3239 = vmatpush1.bf16.msra.mxu0 %v2203
        %3240 = vmatprep.subr.bf16.mxu0 0
        %3241 = vmatpush1.bf16.msra.mxu0 0
        %3242 = vmatprep.subr.bf16.mxu0 0
        %3243 = vmatpush1.bf16.msra.mxu0 0
        %3244 = vmatprep.subr.bf16.mxu0 0
        %3245 = vmatpush1.bf16.msra.mxu0 0
        %3246 = vmatprep.subr.bf16.mxu0 0
        %3247 = vmatpush1.bf16.msra.mxu0 0
        %3248 = vmatprep.subr.bf16.mxu0 0
        %3249 = vmatpush1.bf16.msra.mxu0 0
        %3250 = vmatprep.subr.bf16.mxu0 0
        %3251 = vmatpush1.bf16.msra.mxu0 0
        %3252 = vmatprep.subr.bf16.mxu0 0
        %3253 = vmatpush1.bf16.msra.mxu0 0
        %3254 = vmatprep.subr.bf16.mxu0 0
        %3255 = vmatpush1.bf16.msra.mxu0 0
        %3256 = vmatprep.subr.bf16.mxu0 0
        %3257 = vmatpush1.bf16.msra.mxu0 0
        %3258 = vmatprep.subr.bf16.mxu0 0
        %3259 = vmatpush1.bf16.msra.mxu0 0
        %3260 = vmatprep.subr.bf16.mxu0 0
        %3261 = vmatpush1.bf16.msra.mxu0 0
        %3262 = vmatprep.subr.bf16.mxu0 0
        %3263 = vmatpush1.bf16.msra.mxu0 0
        %3264 = vmatprep.subr.bf16.mxu0 0
        %3265 = vmatpush1.bf16.msra.mxu0 0
        %3266 = vmatprep.subr.bf16.mxu0 0
        %3267 = vmatpush1.bf16.msra.mxu0 0
        %3268 = vmatprep.mubr.bf16.mxu0 0
        %3269 = vmatmul.mubr.bf16.gmra.mrb[0].mxu0 %v2455
        %v3270 = vpop.f32.mrb[0].mxu0
        %v3271 = vadd.f32 %v1264, %v3270
        %v3272 = vpop.f32.mrb[0].mxu0
        %v3273 = vadd.f32 %v1268, %v3272
        %v3274 = vpop.f32.mrb[0].mxu0
        %v3275 = vpop.f32.mrb[0].mxu0
        %3276 = vdwg.mxu0
        %3277 = vmatprep.subr.bf16.mxu0 %v2110
        %3278 = vmatpush1.bf16.msra.mxu0 %v2109
        %3279 = vmatprep.subr.bf16.mxu0 %v2206
        %3280 = vmatpush1.bf16.msra.mxu0 %v2205
        %3281 = vmatprep.subr.bf16.mxu0 0
        %3282 = vmatpush1.bf16.msra.mxu0 0
        %3283 = vmatprep.subr.bf16.mxu0 0
        %3284 = vmatpush1.bf16.msra.mxu0 0
        %3285 = vmatprep.subr.bf16.mxu0 0
        %3286 = vmatpush1.bf16.msra.mxu0 0
        %3287 = vmatprep.subr.bf16.mxu0 0
        %3288 = vmatpush1.bf16.msra.mxu0 0
        %3289 = vmatprep.subr.bf16.mxu0 0
        %3290 = vmatpush1.bf16.msra.mxu0 0
        %3291 = vmatprep.subr.bf16.mxu0 0
        %3292 = vmatpush1.bf16.msra.mxu0 0
        %3293 = vmatprep.subr.bf16.mxu0 0
        %3294 = vmatpush1.bf16.msra.mxu0 0
        %3295 = vmatprep.subr.bf16.mxu0 0
        %3296 = vmatpush1.bf16.msra.mxu0 0
        %3297 = vmatprep.subr.bf16.mxu0 0
        %3298 = vmatpush1.bf16.msra.mxu0 0
        %3299 = vmatprep.subr.bf16.mxu0 0
        %3300 = vmatpush1.bf16.msra.mxu0 0
        %3301 = vmatprep.subr.bf16.mxu0 0
        %3302 = vmatpush1.bf16.msra.mxu0 0
        %3303 = vmatprep.subr.bf16.mxu0 0
        %3304 = vmatpush1.bf16.msra.mxu0 0
        %3305 = vmatprep.subr.bf16.mxu0 0
        %3306 = vmatpush1.bf16.msra.mxu0 0
        %3307 = vmatprep.subr.bf16.mxu0 0
        %3308 = vmatpush1.bf16.msra.mxu0 0
        %3309 = vmatprep.mubr.bf16.mxu0 0
        %3310 = vmatmul.mubr.bf16.gmra.mrb[0].mxu0 %v2455
        %v3311 = vpop.f32.mrb[0].mxu0
        %v3312 = vadd.f32 %v1272, %v3311
        %v3313 = vpop.f32.mrb[0].mxu0
        %v3314 = vadd.f32 %v1276, %v3313
        %v3315 = vpop.f32.mrb[0].mxu0
        %v3316 = vpop.f32.mrb[0].mxu0
        %3317 = vdwg.mxu0
        %3318 = vmatprep.subr.bf16.mxu0 %v2112
        %3319 = vmatpush1.bf16.msra.mxu0 %v2111
        %3320 = vmatprep.subr.bf16.mxu0 %v2208
        %3321 = vmatpush1.bf16.msra.mxu0 %v2207
        %3322 = vmatprep.subr.bf16.mxu0 0
        %3323 = vmatpush1.bf16.msra.mxu0 0
        %3324 = vmatprep.subr.bf16.mxu0 0
        %3325 = vmatpush1.bf16.msra.mxu0 0
        %3326 = vmatprep.subr.bf16.mxu0 0
        %3327 = vmatpush1.bf16.msra.mxu0 0
        %3328 = vmatprep.subr.bf16.mxu0 0
        %3329 = vmatpush1.bf16.msra.mxu0 0
        %3330 = vmatprep.subr.bf16.mxu0 0
        %3331 = vmatpush1.bf16.msra.mxu0 0
        %3332 = vmatprep.subr.bf16.mxu0 0
        %3333 = vmatpush1.bf16.msra.mxu0 0
        %3334 = vmatprep.subr.bf16.mxu0 0
        %3335 = vmatpush1.bf16.msra.mxu0 0
        %3336 = vmatprep.subr.bf16.mxu0 0
        %3337 = vmatpush1.bf16.msra.mxu0 0
        %3338 = vmatprep.subr.bf16.mxu0 0
        %3339 = vmatpush1.bf16.msra.mxu0 0
        %3340 = vmatprep.subr.bf16.mxu0 0
        %3341 = vmatpush1.bf16.msra.mxu0 0
        %3342 = vmatprep.subr.bf16.mxu0 0
        %3343 = vmatpush1.bf16.msra.mxu0 0
        %3344 = vmatprep.subr.bf16.mxu0 0
        %3345 = vmatpush1.bf16.msra.mxu0 0
        %3346 = vmatprep.subr.bf16.mxu0 0
        %3347 = vmatpush1.bf16.msra.mxu0 0
        %3348 = vmatprep.subr.bf16.mxu0 0
        %3349 = vmatpush1.bf16.msra.mxu0 0
        %3350 = vmatprep.mubr.bf16.mxu0 0
        %3351 = vmatmul.mubr.bf16.gmra.mrb[0].mxu0 %v2455
        %v3352 = vpop.f32.mrb[0].mxu0
        %v3353 = vadd.f32 %v1280, %v3352
        %v3354 = vpop.f32.mrb[0].mxu0
        %v3355 = vadd.f32 %v1284, %v3354
        %v3356 = vpop.f32.mrb[0].mxu0
        %v3357 = vpop.f32.mrb[0].mxu0
        %3358 = vdwg.mxu0
        %3359 = vmatprep.subr.bf16.mxu0 %v2114
        %3360 = vmatpush1.bf16.msra.mxu0 %v2113
        %3361 = vmatprep.subr.bf16.mxu0 %v2210
        %3362 = vmatpush1.bf16.msra.mxu0 %v2209
        %3363 = vmatprep.subr.bf16.mxu0 0
        %3364 = vmatpush1.bf16.msra.mxu0 0
        %3365 = vmatprep.subr.bf16.mxu0 0
        %3366 = vmatpush1.bf16.msra.mxu0 0
        %3367 = vmatprep.subr.bf16.mxu0 0
        %3368 = vmatpush1.bf16.msra.mxu0 0
        %3369 = vmatprep.subr.bf16.mxu0 0
        %3370 = vmatpush1.bf16.msra.mxu0 0
        %3371 = vmatprep.subr.bf16.mxu0 0
        %3372 = vmatpush1.bf16.msra.mxu0 0
        %3373 = vmatprep.subr.bf16.mxu0 0
        %3374 = vmatpush1.bf16.msra.mxu0 0
        %3375 = vmatprep.subr.bf16.mxu0 0
        %3376 = vmatpush1.bf16.msra.mxu0 0
        %3377 = vmatprep.subr.bf16.mxu0 0
        %3378 = vmatpush1.bf16.msra.mxu0 0
        %3379 = vmatprep.subr.bf16.mxu0 0
        %3380 = vmatpush1.bf16.msra.mxu0 0
        %3381 = vmatprep.subr.bf16.mxu0 0
        %3382 = vmatpush1.bf16.msra.mxu0 0
        %3383 = vmatprep.subr.bf16.mxu0 0
        %3384 = vmatpush1.bf16.msra.mxu0 0
        %3385 = vmatprep.subr.bf16.mxu0 0
        %3386 = vmatpush1.bf16.msra.mxu0 0
        %3387 = vmatprep.subr.bf16.mxu0 0
        %3388 = vmatpush1.bf16.msra.mxu0 0
        %3389 = vmatprep.subr.bf16.mxu0 0
        %3390 = vmatpush1.bf16.msra.mxu0 0
        %3391 = vmatprep.mubr.bf16.mxu0 0
        %3392 = vmatmul.mubr.bf16.gmra.mrb[0].mxu0 %v2455
        %v3393 = vpop.f32.mrb[0].mxu0
        %v3394 = vadd.f32 %v1288, %v3393
        %v3395 = vpop.f32.mrb[0].mxu0
        %v3396 = vadd.f32 %v1292, %v3395
        %v3397 = vpop.f32.mrb[0].mxu0
        %v3398 = vpop.f32.mrb[0].mxu0
        %3399 = vdwg.mxu0
        %3400 = vmatprep.subr.bf16.mxu0 %v2116
        %3401 = vmatpush1.bf16.msra.mxu0 %v2115
        %3402 = vmatprep.subr.bf16.mxu0 %v2212
        %3403 = vmatpush1.bf16.msra.mxu0 %v2211
        %3404 = vmatprep.subr.bf16.mxu0 0
        %3405 = vmatpush1.bf16.msra.mxu0 0
        %3406 = vmatprep.subr.bf16.mxu0 0
        %3407 = vmatpush1.bf16.msra.mxu0 0
        %3408 = vmatprep.subr.bf16.mxu0 0
        %3409 = vmatpush1.bf16.msra.mxu0 0
        %3410 = vmatprep.subr.bf16.mxu0 0
        %3411 = vmatpush1.bf16.msra.mxu0 0
        %3412 = vmatprep.subr.bf16.mxu0 0
        %3413 = vmatpush1.bf16.msra.mxu0 0
        %3414 = vmatprep.subr.bf16.mxu0 0
        %3415 = vmatpush1.bf16.msra.mxu0 0
        %3416 = vmatprep.subr.bf16.mxu0 0
        %3417 = vmatpush1.bf16.msra.mxu0 0
        %3418 = vmatprep.subr.bf16.mxu0 0
        %3419 = vmatpush1.bf16.msra.mxu0 0
        %3420 = vmatprep.subr.bf16.mxu0 0
        %3421 = vmatpush1.bf16.msra.mxu0 0
        %3422 = vmatprep.subr.bf16.mxu0 0
        %3423 = vmatpush1.bf16.msra.mxu0 0
        %3424 = vmatprep.subr.bf16.mxu0 0
        %3425 = vmatpush1.bf16.msra.mxu0 0
        %3426 = vmatprep.subr.bf16.mxu0 0
        %3427 = vmatpush1.bf16.msra.mxu0 0
        %3428 = vmatprep.subr.bf16.mxu0 0
        %3429 = vmatpush1.bf16.msra.mxu0 0
        %3430 = vmatprep.subr.bf16.mxu0 0
        %3431 = vmatpush1.bf16.msra.mxu0 0
        %3432 = vmatprep.mubr.bf16.mxu0 0
        %3433 = vmatmul.mubr.bf16.gmra.mrb[0].mxu0 %v2455
        %v3434 = vpop.f32.mrb[0].mxu0
        %v3435 = vadd.f32 %v1296, %v3434
        %v3436 = vpop.f32.mrb[0].mxu0
        %v3437 = vadd.f32 %v1300, %v3436
        %v3438 = vpop.f32.mrb[0].mxu0
        %v3439 = vpop.f32.mrb[0].mxu0
        %3440 = vdwg.mxu0
        %3441 = vmatprep.subr.bf16.mxu0 %v2118
        %3442 = vmatpush1.bf16.msra.mxu0 %v2117
        %3443 = vmatprep.subr.bf16.mxu0 %v2214
        %3444 = vmatpush1.bf16.msra.mxu0 %v2213
        %3445 = vmatprep.subr.bf16.mxu0 0
        %3446 = vmatpush1.bf16.msra.mxu0 0
        %3447 = vmatprep.subr.bf16.mxu0 0
        %3448 = vmatpush1.bf16.msra.mxu0 0
        %3449 = vmatprep.subr.bf16.mxu0 0
        %3450 = vmatpush1.bf16.msra.mxu0 0
        %3451 = vmatprep.subr.bf16.mxu0 0
        %3452 = vmatpush1.bf16.msra.mxu0 0
        %3453 = vmatprep.subr.bf16.mxu0 0
        %3454 = vmatpush1.bf16.msra.mxu0 0
        %3455 = vmatprep.subr.bf16.mxu0 0
        %3456 = vmatpush1.bf16.msra.mxu0 0
        %3457 = vmatprep.subr.bf16.mxu0 0
        %3458 = vmatpush1.bf16.msra.mxu0 0
        %3459 = vmatprep.subr.bf16.mxu0 0
        %3460 = vmatpush1.bf16.msra.mxu0 0
        %3461 = vmatprep.subr.bf16.mxu0 0
        %3462 = vmatpush1.bf16.msra.mxu0 0
        %3463 = vmatprep.subr.bf16.mxu0 0
        %3464 = vmatpush1.bf16.msra.mxu0 0
        %3465 = vmatprep.subr.bf16.mxu0 0
        %3466 = vmatpush1.bf16.msra.mxu0 0
        %3467 = vmatprep.subr.bf16.mxu0 0
        %3468 = vmatpush1.bf16.msra.mxu0 0
        %3469 = vmatprep.subr.bf16.mxu0 0
        %3470 = vmatpush1.bf16.msra.mxu0 0
        %3471 = vmatprep.subr.bf16.mxu0 0
        %3472 = vmatpush1.bf16.msra.mxu0 0
        %3473 = vmatprep.mubr.bf16.mxu0 0
        %3474 = vmatmul.mubr.bf16.gmra.mrb[0].mxu0 %v2455
        %v3475 = vpop.f32.mrb[0].mxu0
        %v3476 = vadd.f32 %v1304, %v3475
        %v3477 = vpop.f32.mrb[0].mxu0
        %v3478 = vadd.f32 %v1308, %v3477
        %v3479 = vpop.f32.mrb[0].mxu0
        %v3480 = vpop.f32.mrb[0].mxu0
        %3481 = vdwg.mxu0
        %3482 = vmatprep.subr.bf16.mxu0 %v2120
        %3483 = vmatpush1.bf16.msra.mxu0 %v2119
        %3484 = vmatprep.subr.bf16.mxu0 %v2216
        %3485 = vmatpush1.bf16.msra.mxu0 %v2215
        %3486 = vmatprep.subr.bf16.mxu0 0
        %3487 = vmatpush1.bf16.msra.mxu0 0
        %3488 = vmatprep.subr.bf16.mxu0 0
        %3489 = vmatpush1.bf16.msra.mxu0 0
        %3490 = vmatprep.subr.bf16.mxu0 0
        %3491 = vmatpush1.bf16.msra.mxu0 0
        %3492 = vmatprep.subr.bf16.mxu0 0
        %3493 = vmatpush1.bf16.msra.mxu0 0
        %3494 = vmatprep.subr.bf16.mxu0 0
        %3495 = vmatpush1.bf16.msra.mxu0 0
        %3496 = vmatprep.subr.bf16.mxu0 0
        %3497 = vmatpush1.bf16.msra.mxu0 0
        %3498 = vmatprep.subr.bf16.mxu0 0
        %3499 = vmatpush1.bf16.msra.mxu0 0
        %3500 = vmatprep.subr.bf16.mxu0 0
        %3501 = vmatpush1.bf16.msra.mxu0 0
        %3502 = vmatprep.subr.bf16.mxu0 0
        %3503 = vmatpush1.bf16.msra.mxu0 0
        %3504 = vmatprep.subr.bf16.mxu0 0
        %3505 = vmatpush1.bf16.msra.mxu0 0
        %3506 = vmatprep.subr.bf16.mxu0 0
        %3507 = vmatpush1.bf16.msra.mxu0 0
        %3508 = vmatprep.subr.bf16.mxu0 0
        %3509 = vmatpush1.bf16.msra.mxu0 0
        %3510 = vmatprep.subr.bf16.mxu0 0
        %3511 = vmatpush1.bf16.msra.mxu0 0
        %3512 = vmatprep.subr.bf16.mxu0 0
        %3513 = vmatpush1.bf16.msra.mxu0 0
        %3514 = vmatprep.mubr.bf16.mxu0 0
        %3515 = vmatmul.mubr.bf16.gmra.mrb[0].mxu0 %v2455
        %v3516 = vpop.f32.mrb[0].mxu0
        %v3517 = vadd.f32 %v1312, %v3516
        %v3518 = vpop.f32.mrb[0].mxu0
        %v3519 = vadd.f32 %v1316, %v3518
        %v3520 = vpop.f32.mrb[0].mxu0
        %v3521 = vpop.f32.mrb[0].mxu0
        %3522 = vdwg.mxu0
        %3523 = vmatprep.subr.bf16.mxu0 %v2122
        %3524 = vmatpush1.bf16.msra.mxu0 %v2121
        %3525 = vmatprep.subr.bf16.mxu0 %v2218
        %3526 = vmatpush1.bf16.msra.mxu0 %v2217
        %3527 = vmatprep.subr.bf16.mxu0 0
        %3528 = vmatpush1.bf16.msra.mxu0 0
        %3529 = vmatprep.subr.bf16.mxu0 0
        %3530 = vmatpush1.bf16.msra.mxu0 0
        %3531 = vmatprep.subr.bf16.mxu0 0
        %3532 = vmatpush1.bf16.msra.mxu0 0
        %3533 = vmatprep.subr.bf16.mxu0 0
        %3534 = vmatpush1.bf16.msra.mxu0 0
        %3535 = vmatprep.subr.bf16.mxu0 0
        %3536 = vmatpush1.bf16.msra.mxu0 0
        %3537 = vmatprep.subr.bf16.mxu0 0
        %3538 = vmatpush1.bf16.msra.mxu0 0
        %3539 = vmatprep.subr.bf16.mxu0 0
        %3540 = vmatpush1.bf16.msra.mxu0 0
        %3541 = vmatprep.subr.bf16.mxu0 0
        %3542 = vmatpush1.bf16.msra.mxu0 0
        %3543 = vmatprep.subr.bf16.mxu0 0
        %3544 = vmatpush1.bf16.msra.mxu0 0
        %3545 = vmatprep.subr.bf16.mxu0 0
        %3546 = vmatpush1.bf16.msra.mxu0 0
        %3547 = vmatprep.subr.bf16.mxu0 0
        %3548 = vmatpush1.bf16.msra.mxu0 0
        %3549 = vmatprep.subr.bf16.mxu0 0
        %3550 = vmatpush1.bf16.msra.mxu0 0
        %3551 = vmatprep.subr.bf16.mxu0 0
        %3552 = vmatpush1.bf16.msra.mxu0 0
        %3553 = vmatprep.subr.bf16.mxu0 0
        %3554 = vmatpush1.bf16.msra.mxu0 0
        %3555 = vmatprep.mubr.bf16.mxu0 0
        %3556 = vmatmul.mubr.bf16.gmra.mrb[0].mxu0 %v2455
        %v3557 = vpop.f32.mrb[0].mxu0
        %v3558 = vadd.f32 %v1320, %v3557
        %v3559 = vpop.f32.mrb[0].mxu0
        %v3560 = vadd.f32 %v1324, %v3559
        %v3561 = vpop.f32.mrb[0].mxu0
        %v3562 = vpop.f32.mrb[0].mxu0
        %3563 = vdwg.mxu0
        %3564 = vmatprep.subr.bf16.mxu0 %v2124
        %3565 = vmatpush1.bf16.msra.mxu0 %v2123
        %3566 = vmatprep.subr.bf16.mxu0 %v2220
        %3567 = vmatpush1.bf16.msra.mxu0 %v2219
        %3568 = vmatprep.subr.bf16.mxu0 0
        %3569 = vmatpush1.bf16.msra.mxu0 0
        %3570 = vmatprep.subr.bf16.mxu0 0
        %3571 = vmatpush1.bf16.msra.mxu0 0
        %3572 = vmatprep.subr.bf16.mxu0 0
        %3573 = vmatpush1.bf16.msra.mxu0 0
        %3574 = vmatprep.subr.bf16.mxu0 0
        %3575 = vmatpush1.bf16.msra.mxu0 0
        %3576 = vmatprep.subr.bf16.mxu0 0
        %3577 = vmatpush1.bf16.msra.mxu0 0
        %3578 = vmatprep.subr.bf16.mxu0 0
        %3579 = vmatpush1.bf16.msra.mxu0 0
        %3580 = vmatprep.subr.bf16.mxu0 0
        %3581 = vmatpush1.bf16.msra.mxu0 0
        %3582 = vmatprep.subr.bf16.mxu0 0
        %3583 = vmatpush1.bf16.msra.mxu0 0
        %3584 = vmatprep.subr.bf16.mxu0 0
        %3585 = vmatpush1.bf16.msra.mxu0 0
        %3586 = vmatprep.subr.bf16.mxu0 0
        %3587 = vmatpush1.bf16.msra.mxu0 0
        %3588 = vmatprep.subr.bf16.mxu0 0
        %3589 = vmatpush1.bf16.msra.mxu0 0
        %3590 = vmatprep.subr.bf16.mxu0 0
        %3591 = vmatpush1.bf16.msra.mxu0 0
        %3592 = vmatprep.subr.bf16.mxu0 0
        %3593 = vmatpush1.bf16.msra.mxu0 0
        %3594 = vmatprep.subr.bf16.mxu0 0
        %3595 = vmatpush1.bf16.msra.mxu0 0
        %3596 = vmatprep.mubr.bf16.mxu0 0
        %3597 = vmatmul.mubr.bf16.gmra.mrb[0].mxu0 %v2455
        %v3598 = vpop.f32.mrb[0].mxu0
        %v3599 = vadd.f32 %v1328, %v3598
        %v3600 = vpop.f32.mrb[0].mxu0
        %v3601 = vadd.f32 %v1332, %v3600
        %v3602 = vpop.f32.mrb[0].mxu0
        %v3603 = vpop.f32.mrb[0].mxu0
        %3604 = vdwg.mxu0
        %3605 = vmatprep.subr.bf16.mxu0 %v2126
        %3606 = vmatpush1.bf16.msra.mxu0 %v2125
        %3607 = vmatprep.subr.bf16.mxu0 %v2222
        %3608 = vmatpush1.bf16.msra.mxu0 %v2221
        %3609 = vmatprep.subr.bf16.mxu0 0
        %3610 = vmatpush1.bf16.msra.mxu0 0
        %3611 = vmatprep.subr.bf16.mxu0 0
        %3612 = vmatpush1.bf16.msra.mxu0 0
        %3613 = vmatprep.subr.bf16.mxu0 0
        %3614 = vmatpush1.bf16.msra.mxu0 0
        %3615 = vmatprep.subr.bf16.mxu0 0
        %3616 = vmatpush1.bf16.msra.mxu0 0
        %3617 = vmatprep.subr.bf16.mxu0 0
        %3618 = vmatpush1.bf16.msra.mxu0 0
        %3619 = vmatprep.subr.bf16.mxu0 0
        %3620 = vmatpush1.bf16.msra.mxu0 0
        %3621 = vmatprep.subr.bf16.mxu0 0
        %3622 = vmatpush1.bf16.msra.mxu0 0
        %3623 = vmatprep.subr.bf16.mxu0 0
        %3624 = vmatpush1.bf16.msra.mxu0 0
        %3625 = vmatprep.subr.bf16.mxu0 0
        %3626 = vmatpush1.bf16.msra.mxu0 0
        %3627 = vmatprep.subr.bf16.mxu0 0
        %3628 = vmatpush1.bf16.msra.mxu0 0
        %3629 = vmatprep.subr.bf16.mxu0 0
        %3630 = vmatpush1.bf16.msra.mxu0 0
        %3631 = vmatprep.subr.bf16.mxu0 0
        %3632 = vmatpush1.bf16.msra.mxu0 0
        %3633 = vmatprep.subr.bf16.mxu0 0
        %3634 = vmatpush1.bf16.msra.mxu0 0
        %3635 = vmatprep.subr.bf16.mxu0 0
        %3636 = vmatpush1.bf16.msra.mxu0 0
        %3637 = vmatprep.mubr.bf16.mxu0 0
        %3638 = vmatmul.mubr.bf16.gmra.mrb[0].mxu0 %v2455
        %v3639 = vpop.f32.mrb[0].mxu0
        %v3640 = vadd.f32 %v1336, %v3639
        %v3641 = vpop.f32.mrb[0].mxu0
        %v3642 = vadd.f32 %v1340, %v3641
        %v3643 = vpop.f32.mrb[0].mxu0
        %v3644 = vpop.f32.mrb[0].mxu0
        %3645 = vdwg.mxu0
        %3646 = vmatprep.subr.bf16.mxu0 %v2128
        %3647 = vmatpush1.bf16.msra.mxu0 %v2127
        %3648 = vmatprep.subr.bf16.mxu0 %v2224
        %3649 = vmatpush1.bf16.msra.mxu0 %v2223
        %3650 = vmatprep.subr.bf16.mxu0 0
        %3651 = vmatpush1.bf16.msra.mxu0 0
        %3652 = vmatprep.subr.bf16.mxu0 0
        %3653 = vmatpush1.bf16.msra.mxu0 0
        %3654 = vmatprep.subr.bf16.mxu0 0
        %3655 = vmatpush1.bf16.msra.mxu0 0
        %3656 = vmatprep.subr.bf16.mxu0 0
        %3657 = vmatpush1.bf16.msra.mxu0 0
        %3658 = vmatprep.subr.bf16.mxu0 0
        %3659 = vmatpush1.bf16.msra.mxu0 0
        %3660 = vmatprep.subr.bf16.mxu0 0
        %3661 = vmatpush1.bf16.msra.mxu0 0
        %3662 = vmatprep.subr.bf16.mxu0 0
        %3663 = vmatpush1.bf16.msra.mxu0 0
        %3664 = vmatprep.subr.bf16.mxu0 0
        %3665 = vmatpush1.bf16.msra.mxu0 0
        %3666 = vmatprep.subr.bf16.mxu0 0
        %3667 = vmatpush1.bf16.msra.mxu0 0
        %3668 = vmatprep.subr.bf16.mxu0 0
        %3669 = vmatpush1.bf16.msra.mxu0 0
        %3670 = vmatprep.subr.bf16.mxu0 0
        %3671 = vmatpush1.bf16.msra.mxu0 0
        %3672 = vmatprep.subr.bf16.mxu0 0
        %3673 = vmatpush1.bf16.msra.mxu0 0
        %3674 = vmatprep.subr.bf16.mxu0 0
        %3675 = vmatpush1.bf16.msra.mxu0 0
        %3676 = vmatprep.subr.bf16.mxu0 0
        %3677 = vmatpush1.bf16.msra.mxu0 0
        %3678 = vmatprep.mubr.bf16.mxu0 0
        %3679 = vmatmul.mubr.bf16.gmra.mrb[0].mxu0 %v2455
        %v3680 = vpop.f32.mrb[0].mxu0
        %v3681 = vadd.f32 %v1344, %v3680
        %v3682 = vpop.f32.mrb[0].mxu0
        %v3683 = vadd.f32 %v1348, %v3682
        %v3684 = vpop.f32.mrb[0].mxu0
        %v3685 = vpop.f32.mrb[0].mxu0
        %3686 = vdwg.mxu0
        %3687 = vmatprep.subr.bf16.mxu0 %v2130
        %3688 = vmatpush1.bf16.msra.mxu0 %v2129
        %3689 = vmatprep.subr.bf16.mxu0 %v2226
        %3690 = vmatpush1.bf16.msra.mxu0 %v2225
        %3691 = vmatprep.subr.bf16.mxu0 0
        %3692 = vmatpush1.bf16.msra.mxu0 0
        %3693 = vmatprep.subr.bf16.mxu0 0
        %3694 = vmatpush1.bf16.msra.mxu0 0
        %3695 = vmatprep.subr.bf16.mxu0 0
        %3696 = vmatpush1.bf16.msra.mxu0 0
        %3697 = vmatprep.subr.bf16.mxu0 0
        %3698 = vmatpush1.bf16.msra.mxu0 0
        %3699 = vmatprep.subr.bf16.mxu0 0
        %3700 = vmatpush1.bf16.msra.mxu0 0
        %3701 = vmatprep.subr.bf16.mxu0 0
        %3702 = vmatpush1.bf16.msra.mxu0 0
        %3703 = vmatprep.subr.bf16.mxu0 0
        %3704 = vmatpush1.bf16.msra.mxu0 0
        %3705 = vmatprep.subr.bf16.mxu0 0
        %3706 = vmatpush1.bf16.msra.mxu0 0
        %3707 = vmatprep.subr.bf16.mxu0 0
        %3708 = vmatpush1.bf16.msra.mxu0 0
        %3709 = vmatprep.subr.bf16.mxu0 0
        %3710 = vmatpush1.bf16.msra.mxu0 0
        %3711 = vmatprep.subr.bf16.mxu0 0
        %3712 = vmatpush1.bf16.msra.mxu0 0
        %3713 = vmatprep.subr.bf16.mxu0 0
        %3714 = vmatpush1.bf16.msra.mxu0 0
        %3715 = vmatprep.subr.bf16.mxu0 0
        %3716 = vmatpush1.bf16.msra.mxu0 0
        %3717 = vmatprep.subr.bf16.mxu0 0
        %3718 = vmatpush1.bf16.msra.mxu0 0
        %3719 = vmatprep.mubr.bf16.mxu0 0
        %3720 = vmatmul.mubr.bf16.gmra.mrb[0].mxu0 %v2455
        %v3721 = vpop.f32.mrb[0].mxu0
        %v3722 = vadd.f32 %v1352, %v3721
        %v3723 = vpop.f32.mrb[0].mxu0
        %v3724 = vadd.f32 %v1356, %v3723
        %v3725 = vpop.f32.mrb[0].mxu0
        %v3726 = vpop.f32.mrb[0].mxu0
        %3727 = vdwg.mxu0
        %3728 = vmatprep.subr.bf16.mxu0 %v2132
        %3729 = vmatpush1.bf16.msra.mxu0 %v2131
        %3730 = vmatprep.subr.bf16.mxu0 %v2228
        %3731 = vmatpush1.bf16.msra.mxu0 %v2227
        %3732 = vmatprep.subr.bf16.mxu0 0
        %3733 = vmatpush1.bf16.msra.mxu0 0
        %3734 = vmatprep.subr.bf16.mxu0 0
        %3735 = vmatpush1.bf16.msra.mxu0 0
        %3736 = vmatprep.subr.bf16.mxu0 0
        %3737 = vmatpush1.bf16.msra.mxu0 0
        %3738 = vmatprep.subr.bf16.mxu0 0
        %3739 = vmatpush1.bf16.msra.mxu0 0
        %3740 = vmatprep.subr.bf16.mxu0 0
        %3741 = vmatpush1.bf16.msra.mxu0 0
        %3742 = vmatprep.subr.bf16.mxu0 0
        %3743 = vmatpush1.bf16.msra.mxu0 0
        %3744 = vmatprep.subr.bf16.mxu0 0
        %3745 = vmatpush1.bf16.msra.mxu0 0
        %3746 = vmatprep.subr.bf16.mxu0 0
        %3747 = vmatpush1.bf16.msra.mxu0 0
        %3748 = vmatprep.subr.bf16.mxu0 0
        %3749 = vmatpush1.bf16.msra.mxu0 0
        %3750 = vmatprep.subr.bf16.mxu0 0
        %3751 = vmatpush1.bf16.msra.mxu0 0
        %3752 = vmatprep.subr.bf16.mxu0 0
        %3753 = vmatpush1.bf16.msra.mxu0 0
        %3754 = vmatprep.subr.bf16.mxu0 0
        %3755 = vmatpush1.bf16.msra.mxu0 0
        %3756 = vmatprep.subr.bf16.mxu0 0
        %3757 = vmatpush1.bf16.msra.mxu0 0
        %3758 = vmatprep.subr.bf16.mxu0 0
        %3759 = vmatpush1.bf16.msra.mxu0 0
        %3760 = vmatprep.mubr.bf16.mxu0 0
        %3761 = vmatmul.mubr.bf16.gmra.mrb[0].mxu0 %v2455
        %v3762 = vpop.f32.mrb[0].mxu0
        %v3763 = vadd.f32 %v1360, %v3762
        %v3764 = vpop.f32.mrb[0].mxu0
        %v3765 = vadd.f32 %v1364, %v3764
        %v3766 = vpop.f32.mrb[0].mxu0
        %v3767 = vpop.f32.mrb[0].mxu0
        %3768 = vdwg.mxu0
        %3769 = vmatprep.subr.bf16.mxu0 %v2134
        %3770 = vmatpush1.bf16.msra.mxu0 %v2133
        %3771 = vmatprep.subr.bf16.mxu0 %v2230
        %3772 = vmatpush1.bf16.msra.mxu0 %v2229
        %3773 = vmatprep.subr.bf16.mxu0 0
        %3774 = vmatpush1.bf16.msra.mxu0 0
        %3775 = vmatprep.subr.bf16.mxu0 0
        %3776 = vmatpush1.bf16.msra.mxu0 0
        %3777 = vmatprep.subr.bf16.mxu0 0
        %3778 = vmatpush1.bf16.msra.mxu0 0
        %3779 = vmatprep.subr.bf16.mxu0 0
        %3780 = vmatpush1.bf16.msra.mxu0 0
        %3781 = vmatprep.subr.bf16.mxu0 0
        %3782 = vmatpush1.bf16.msra.mxu0 0
        %3783 = vmatprep.subr.bf16.mxu0 0
        %3784 = vmatpush1.bf16.msra.mxu0 0
        %3785 = vmatprep.subr.bf16.mxu0 0
        %3786 = vmatpush1.bf16.msra.mxu0 0
        %3787 = vmatprep.subr.bf16.mxu0 0
        %3788 = vmatpush1.bf16.msra.mxu0 0
        %3789 = vmatprep.subr.bf16.mxu0 0
        %3790 = vmatpush1.bf16.msra.mxu0 0
        %3791 = vmatprep.subr.bf16.mxu0 0
        %3792 = vmatpush1.bf16.msra.mxu0 0
        %3793 = vmatprep.subr.bf16.mxu0 0
        %3794 = vmatpush1.bf16.msra.mxu0 0
        %3795 = vmatprep.subr.bf16.mxu0 0
        %3796 = vmatpush1.bf16.msra.mxu0 0
        %3797 = vmatprep.subr.bf16.mxu0 0
        %3798 = vmatpush1.bf16.msra.mxu0 0
        %3799 = vmatprep.subr.bf16.mxu0 0
        %3800 = vmatpush1.bf16.msra.mxu0 0
        %3801 = vmatprep.mubr.bf16.mxu0 0
        %3802 = vmatmul.mubr.bf16.gmra.mrb[0].mxu0 %v2455
        %v3803 = vpop.f32.mrb[0].mxu0
        %v3804 = vadd.f32 %v1368, %v3803
        %v3805 = vpop.f32.mrb[0].mxu0
        %v3806 = vadd.f32 %v1372, %v3805
        %v3807 = vpop.f32.mrb[0].mxu0
        %v3808 = vpop.f32.mrb[0].mxu0
        %3809 = vdwg.mxu0
        %3810 = vmatprep.subr.bf16.mxu0 %v2136
        %3811 = vmatpush1.bf16.msra.mxu0 %v2135
        %3812 = vmatprep.subr.bf16.mxu0 %v2232
        %3813 = vmatpush1.bf16.msra.mxu0 %v2231
        %3814 = vmatprep.subr.bf16.mxu0 0
        %3815 = vmatpush1.bf16.msra.mxu0 0
        %3816 = vmatprep.subr.bf16.mxu0 0
        %3817 = vmatpush1.bf16.msra.mxu0 0
        %3818 = vmatprep.subr.bf16.mxu0 0
        %3819 = vmatpush1.bf16.msra.mxu0 0
        %3820 = vmatprep.subr.bf16.mxu0 0
        %3821 = vmatpush1.bf16.msra.mxu0 0
        %3822 = vmatprep.subr.bf16.mxu0 0
        %3823 = vmatpush1.bf16.msra.mxu0 0
        %3824 = vmatprep.subr.bf16.mxu0 0
        %3825 = vmatpush1.bf16.msra.mxu0 0
        %3826 = vmatprep.subr.bf16.mxu0 0
        %3827 = vmatpush1.bf16.msra.mxu0 0
        %3828 = vmatprep.subr.bf16.mxu0 0
        %3829 = vmatpush1.bf16.msra.mxu0 0
        %3830 = vmatprep.subr.bf16.mxu0 0
        %3831 = vmatpush1.bf16.msra.mxu0 0
        %3832 = vmatprep.subr.bf16.mxu0 0
        %3833 = vmatpush1.bf16.msra.mxu0 0
        %3834 = vmatprep.subr.bf16.mxu0 0
        %3835 = vmatpush1.bf16.msra.mxu0 0
        %3836 = vmatprep.subr.bf16.mxu0 0
        %3837 = vmatpush1.bf16.msra.mxu0 0
        %3838 = vmatprep.subr.bf16.mxu0 0
        %3839 = vmatpush1.bf16.msra.mxu0 0
        %3840 = vmatprep.subr.bf16.mxu0 0
        %3841 = vmatpush1.bf16.msra.mxu0 0
        %3842 = vmatprep.mubr.bf16.mxu0 0
        %3843 = vmatmul.mubr.bf16.gmra.mrb[0].mxu0 %v2455
        %v3844 = vpop.f32.mrb[0].mxu0
        %v3845 = vadd.f32 %v1376, %v3844
        %v3846 = vpop.f32.mrb[0].mxu0
        %v3847 = vadd.f32 %v1380, %v3846
        %v3848 = vpop.f32.mrb[0].mxu0
        %v3849 = vpop.f32.mrb[0].mxu0
        %3850 = vdwg.mxu0
        %3851 = vmatprep.subr.bf16.mxu0 %v2138
        %3852 = vmatpush1.bf16.msra.mxu0 %v2137
        %3853 = vmatprep.subr.bf16.mxu0 %v2234
        %3854 = vmatpush1.bf16.msra.mxu0 %v2233
        %3855 = vmatprep.subr.bf16.mxu0 0
        %3856 = vmatpush1.bf16.msra.mxu0 0
        %3857 = vmatprep.subr.bf16.mxu0 0
        %3858 = vmatpush1.bf16.msra.mxu0 0
        %3859 = vmatprep.subr.bf16.mxu0 0
        %3860 = vmatpush1.bf16.msra.mxu0 0
        %3861 = vmatprep.subr.bf16.mxu0 0
        %3862 = vmatpush1.bf16.msra.mxu0 0
        %3863 = vmatprep.subr.bf16.mxu0 0
        %3864 = vmatpush1.bf16.msra.mxu0 0
        %3865 = vmatprep.subr.bf16.mxu0 0
        %3866 = vmatpush1.bf16.msra.mxu0 0
        %3867 = vmatprep.subr.bf16.mxu0 0
        %3868 = vmatpush1.bf16.msra.mxu0 0
        %3869 = vmatprep.subr.bf16.mxu0 0
        %3870 = vmatpush1.bf16.msra.mxu0 0
        %3871 = vmatprep.subr.bf16.mxu0 0
        %3872 = vmatpush1.bf16.msra.mxu0 0
        %3873 = vmatprep.subr.bf16.mxu0 0
        %3874 = vmatpush1.bf16.msra.mxu0 0
        %3875 = vmatprep.subr.bf16.mxu0 0
        %3876 = vmatpush1.bf16.msra.mxu0 0
        %3877 = vmatprep.subr.bf16.mxu0 0
        %3878 = vmatpush1.bf16.msra.mxu0 0
        %3879 = vmatprep.subr.bf16.mxu0 0
        %3880 = vmatpush1.bf16.msra.mxu0 0
        %3881 = vmatprep.subr.bf16.mxu0 0
        %3882 = vmatpush1.bf16.msra.mxu0 0
        %3883 = vmatprep.mubr.bf16.mxu0 0
        %3884 = vmatmul.mubr.bf16.gmra.mrb[0].mxu0 %v2455
        %v3885 = vpop.f32.mrb[0].mxu0
        %v3886 = vadd.f32 %v1384, %v3885
        %v3887 = vpop.f32.mrb[0].mxu0
        %v3888 = vadd.f32 %v1388, %v3887
        %v3889 = vpop.f32.mrb[0].mxu0
        %v3890 = vpop.f32.mrb[0].mxu0
        %3891 = vdwg.mxu0
        %3892 = vmatprep.subr.bf16.mxu0 %v2140
        %3893 = vmatpush1.bf16.msra.mxu0 %v2139
        %3894 = vmatprep.subr.bf16.mxu0 %v2236
        %3895 = vmatpush1.bf16.msra.mxu0 %v2235
        %3896 = vmatprep.subr.bf16.mxu0 0
        %3897 = vmatpush1.bf16.msra.mxu0 0
        %3898 = vmatprep.subr.bf16.mxu0 0
        %3899 = vmatpush1.bf16.msra.mxu0 0
        %3900 = vmatprep.subr.bf16.mxu0 0
        %3901 = vmatpush1.bf16.msra.mxu0 0
        %3902 = vmatprep.subr.bf16.mxu0 0
        %3903 = vmatpush1.bf16.msra.mxu0 0
        %3904 = vmatprep.subr.bf16.mxu0 0
        %3905 = vmatpush1.bf16.msra.mxu0 0
        %3906 = vmatprep.subr.bf16.mxu0 0
        %3907 = vmatpush1.bf16.msra.mxu0 0
        %3908 = vmatprep.subr.bf16.mxu0 0
        %3909 = vmatpush1.bf16.msra.mxu0 0
        %3910 = vmatprep.subr.bf16.mxu0 0
        %3911 = vmatpush1.bf16.msra.mxu0 0
        %3912 = vmatprep.subr.bf16.mxu0 0
        %3913 = vmatpush1.bf16.msra.mxu0 0
        %3914 = vmatprep.subr.bf16.mxu0 0
        %3915 = vmatpush1.bf16.msra.mxu0 0
        %3916 = vmatprep.subr.bf16.mxu0 0
        %3917 = vmatpush1.bf16.msra.mxu0 0
        %3918 = vmatprep.subr.bf16.mxu0 0
        %3919 = vmatpush1.bf16.msra.mxu0 0
        %3920 = vmatprep.subr.bf16.mxu0 0
        %3921 = vmatpush1.bf16.msra.mxu0 0
        %3922 = vmatprep.subr.bf16.mxu0 0
        %3923 = vmatpush1.bf16.msra.mxu0 0
        %3924 = vmatprep.mubr.bf16.mxu0 0
        %3925 = vmatmul.mubr.bf16.gmra.mrb[0].mxu0 %v2455
        %v3926 = vpop.f32.mrb[0].mxu0
        %v3927 = vadd.f32 %v1392, %v3926
        %v3928 = vpop.f32.mrb[0].mxu0
        %v3929 = vadd.f32 %v1396, %v3928
        %v3930 = vpop.f32.mrb[0].mxu0
        %v3931 = vpop.f32.mrb[0].mxu0
        %3932 = vdwg.mxu0
        %3933 = vmatprep.subr.bf16.mxu0 %v2142
        %3934 = vmatpush1.bf16.msra.mxu0 %v2141
        %3935 = vmatprep.subr.bf16.mxu0 %v2238
        %3936 = vmatpush1.bf16.msra.mxu0 %v2237
        %3937 = vmatprep.subr.bf16.mxu0 0
        %3938 = vmatpush1.bf16.msra.mxu0 0
        %3939 = vmatprep.subr.bf16.mxu0 0
        %3940 = vmatpush1.bf16.msra.mxu0 0
        %3941 = vmatprep.subr.bf16.mxu0 0
        %3942 = vmatpush1.bf16.msra.mxu0 0
        %3943 = vmatprep.subr.bf16.mxu0 0
        %3944 = vmatpush1.bf16.msra.mxu0 0
        %3945 = vmatprep.subr.bf16.mxu0 0
        %3946 = vmatpush1.bf16.msra.mxu0 0
        %3947 = vmatprep.subr.bf16.mxu0 0
        %3948 = vmatpush1.bf16.msra.mxu0 0
        %3949 = vmatprep.subr.bf16.mxu0 0
        %3950 = vmatpush1.bf16.msra.mxu0 0
        %3951 = vmatprep.subr.bf16.mxu0 0
        %3952 = vmatpush1.bf16.msra.mxu0 0
        %3953 = vmatprep.subr.bf16.mxu0 0
        %3954 = vmatpush1.bf16.msra.mxu0 0
        %3955 = vmatprep.subr.bf16.mxu0 0
        %3956 = vmatpush1.bf16.msra.mxu0 0
        %3957 = vmatprep.subr.bf16.mxu0 0
        %3958 = vmatpush1.bf16.msra.mxu0 0
        %3959 = vmatprep.subr.bf16.mxu0 0
        %3960 = vmatpush1.bf16.msra.mxu0 0
        %3961 = vmatprep.subr.bf16.mxu0 0
        %3962 = vmatpush1.bf16.msra.mxu0 0
        %3963 = vmatprep.subr.bf16.mxu0 0
        %3964 = vmatpush1.bf16.msra.mxu0 0
        %3965 = vmatprep.mubr.bf16.mxu0 0
        %3966 = vmatmul.mubr.bf16.gmra.mrb[0].mxu0 %v2455
        %v3967 = vpop.f32.mrb[0].mxu0
        %v3968 = vadd.f32 %v1400, %v3967
        %v3969 = vpop.f32.mrb[0].mxu0
        %v3970 = vadd.f32 %v1404, %v3969
        %v3971 = vpop.f32.mrb[0].mxu0
        %v3972 = vpop.f32.mrb[0].mxu0
        %3973 = vdwg.mxu0
        %3974 = vmatprep.subr.bf16.mxu0 %v2144
        %3975 = vmatpush1.bf16.msra.mxu0 %v2143
        %3976 = vmatprep.subr.bf16.mxu0 %v2240
        %3977 = vmatpush1.bf16.msra.mxu0 %v2239
        %3978 = vmatprep.subr.bf16.mxu0 0
        %3979 = vmatpush1.bf16.msra.mxu0 0
        %3980 = vmatprep.subr.bf16.mxu0 0
        %3981 = vmatpush1.bf16.msra.mxu0 0
        %3982 = vmatprep.subr.bf16.mxu0 0
        %3983 = vmatpush1.bf16.msra.mxu0 0
        %3984 = vmatprep.subr.bf16.mxu0 0
        %3985 = vmatpush1.bf16.msra.mxu0 0
        %3986 = vmatprep.subr.bf16.mxu0 0
        %3987 = vmatpush1.bf16.msra.mxu0 0
        %3988 = vmatprep.subr.bf16.mxu0 0
        %3989 = vmatpush1.bf16.msra.mxu0 0
        %3990 = vmatprep.subr.bf16.mxu0 0
        %3991 = vmatpush1.bf16.msra.mxu0 0
        %3992 = vmatprep.subr.bf16.mxu0 0
        %3993 = vmatpush1.bf16.msra.mxu0 0
        %3994 = vmatprep.subr.bf16.mxu0 0
        %3995 = vmatpush1.bf16.msra.mxu0 0
        %3996 = vmatprep.subr.bf16.mxu0 0
        %3997 = vmatpush1.bf16.msra.mxu0 0
        %3998 = vmatprep.subr.bf16.mxu0 0
        %3999 = vmatpush1.bf16.msra.mxu0 0
        %4000 = vmatprep.subr.bf16.mxu0 0
        %4001 = vmatpush1.bf16.msra.mxu0 0
        %4002 = vmatprep.subr.bf16.mxu0 0
        %4003 = vmatpush1.bf16.msra.mxu0 0
        %4004 = vmatprep.subr.bf16.mxu0 0
        %4005 = vmatpush1.bf16.msra.mxu0 0
        %4006 = vmatprep.mubr.bf16.mxu0 0
        %4007 = vmatmul.mubr.bf16.gmra.mrb[0].mxu0 %v2455
        %v4008 = vpop.f32.mrb[0].mxu0
        %v4009 = vadd.f32 %v1408, %v4008
        %v4010 = vpop.f32.mrb[0].mxu0
        %v4011 = vadd.f32 %v1412, %v4010
        %v4012 = vpop.f32.mrb[0].mxu0
        %v4013 = vpop.f32.mrb[0].mxu0
        %4014 = vdwg.mxu0
        %4015 = vmatprep.subr.bf16.mxu0 %v2146
        %4016 = vmatpush1.bf16.msra.mxu0 %v2145
        %4017 = vmatprep.subr.bf16.mxu0 %v2242
        %4018 = vmatpush1.bf16.msra.mxu0 %v2241
        %4019 = vmatprep.subr.bf16.mxu0 0
        %4020 = vmatpush1.bf16.msra.mxu0 0
        %4021 = vmatprep.subr.bf16.mxu0 0
        %4022 = vmatpush1.bf16.msra.mxu0 0
        %4023 = vmatprep.subr.bf16.mxu0 0
        %4024 = vmatpush1.bf16.msra.mxu0 0
        %4025 = vmatprep.subr.bf16.mxu0 0
        %4026 = vmatpush1.bf16.msra.mxu0 0
        %4027 = vmatprep.subr.bf16.mxu0 0
        %4028 = vmatpush1.bf16.msra.mxu0 0
        %4029 = vmatprep.subr.bf16.mxu0 0
        %4030 = vmatpush1.bf16.msra.mxu0 0
        %4031 = vmatprep.subr.bf16.mxu0 0
        %4032 = vmatpush1.bf16.msra.mxu0 0
        %4033 = vmatprep.subr.bf16.mxu0 0
        %4034 = vmatpush1.bf16.msra.mxu0 0
        %4035 = vmatprep.subr.bf16.mxu0 0
        %4036 = vmatpush1.bf16.msra.mxu0 0
        %4037 = vmatprep.subr.bf16.mxu0 0
        %4038 = vmatpush1.bf16.msra.mxu0 0
        %4039 = vmatprep.subr.bf16.mxu0 0
        %4040 = vmatpush1.bf16.msra.mxu0 0
        %4041 = vmatprep.subr.bf16.mxu0 0
        %4042 = vmatpush1.bf16.msra.mxu0 0
        %4043 = vmatprep.subr.bf16.mxu0 0
        %4044 = vmatpush1.bf16.msra.mxu0 0
        %4045 = vmatprep.subr.bf16.mxu0 0
        %4046 = vmatpush1.bf16.msra.mxu0 0
        %4047 = vmatprep.mubr.bf16.mxu0 0
        %4048 = vmatmul.mubr.bf16.gmra.mrb[0].mxu0 %v2455
        %v4049 = vpop.f32.mrb[0].mxu0
        %v4050 = vadd.f32 %v1416, %v4049
        %v4051 = vpop.f32.mrb[0].mxu0
        %v4052 = vadd.f32 %v1420, %v4051
        %v4053 = vpop.f32.mrb[0].mxu0
        %v4054 = vpop.f32.mrb[0].mxu0
        %4055 = vdwg.mxu0
        %4056 = vmatprep.subr.bf16.mxu0 %v2148
        %4057 = vmatpush1.bf16.msra.mxu0 %v2147
        %4058 = vmatprep.subr.bf16.mxu0 %v2244
        %4059 = vmatpush1.bf16.msra.mxu0 %v2243
        %4060 = vmatprep.subr.bf16.mxu0 0
        %4061 = vmatpush1.bf16.msra.mxu0 0
        %4062 = vmatprep.subr.bf16.mxu0 0
        %4063 = vmatpush1.bf16.msra.mxu0 0
        %4064 = vmatprep.subr.bf16.mxu0 0
        %4065 = vmatpush1.bf16.msra.mxu0 0
        %4066 = vmatprep.subr.bf16.mxu0 0
        %4067 = vmatpush1.bf16.msra.mxu0 0
        %4068 = vmatprep.subr.bf16.mxu0 0
        %4069 = vmatpush1.bf16.msra.mxu0 0
        %4070 = vmatprep.subr.bf16.mxu0 0
        %4071 = vmatpush1.bf16.msra.mxu0 0
        %4072 = vmatprep.subr.bf16.mxu0 0
        %4073 = vmatpush1.bf16.msra.mxu0 0
        %4074 = vmatprep.subr.bf16.mxu0 0
        %4075 = vmatpush1.bf16.msra.mxu0 0
        %4076 = vmatprep.subr.bf16.mxu0 0
        %4077 = vmatpush1.bf16.msra.mxu0 0
        %4078 = vmatprep.subr.bf16.mxu0 0
        %4079 = vmatpush1.bf16.msra.mxu0 0
        %4080 = vmatprep.subr.bf16.mxu0 0
        %4081 = vmatpush1.bf16.msra.mxu0 0
        %4082 = vmatprep.subr.bf16.mxu0 0
        %4083 = vmatpush1.bf16.msra.mxu0 0
        %4084 = vmatprep.subr.bf16.mxu0 0
        %4085 = vmatpush1.bf16.msra.mxu0 0
        %4086 = vmatprep.subr.bf16.mxu0 0
        %4087 = vmatpush1.bf16.msra.mxu0 0
        %4088 = vmatprep.mubr.bf16.mxu0 0
        %4089 = vmatmul.mubr.bf16.gmra.mrb[0].mxu0 %v2455
        %v4090 = vpop.f32.mrb[0].mxu0
        %v4091 = vadd.f32 %v1424, %v4090
        %v4092 = vpop.f32.mrb[0].mxu0
        %v4093 = vadd.f32 %v1428, %v4092
        %v4094 = vpop.f32.mrb[0].mxu0
        %v4095 = vpop.f32.mrb[0].mxu0
        %4096 = vdwg.mxu0
        %4097 = vmatprep.subr.bf16.mxu0 %v2150
        %4098 = vmatpush1.bf16.msra.mxu0 %v2149
        %4099 = vmatprep.subr.bf16.mxu0 %v2246
        %4100 = vmatpush1.bf16.msra.mxu0 %v2245
        %4101 = vmatprep.subr.bf16.mxu0 0
        %4102 = vmatpush1.bf16.msra.mxu0 0
        %4103 = vmatprep.subr.bf16.mxu0 0
        %4104 = vmatpush1.bf16.msra.mxu0 0
        %4105 = vmatprep.subr.bf16.mxu0 0
        %4106 = vmatpush1.bf16.msra.mxu0 0
        %4107 = vmatprep.subr.bf16.mxu0 0
        %4108 = vmatpush1.bf16.msra.mxu0 0
        %4109 = vmatprep.subr.bf16.mxu0 0
        %4110 = vmatpush1.bf16.msra.mxu0 0
        %4111 = vmatprep.subr.bf16.mxu0 0
        %4112 = vmatpush1.bf16.msra.mxu0 0
        %4113 = vmatprep.subr.bf16.mxu0 0
        %4114 = vmatpush1.bf16.msra.mxu0 0
        %4115 = vmatprep.subr.bf16.mxu0 0
        %4116 = vmatpush1.bf16.msra.mxu0 0
        %4117 = vmatprep.subr.bf16.mxu0 0
        %4118 = vmatpush1.bf16.msra.mxu0 0
        %4119 = vmatprep.subr.bf16.mxu0 0
        %4120 = vmatpush1.bf16.msra.mxu0 0
        %4121 = vmatprep.subr.bf16.mxu0 0
        %4122 = vmatpush1.bf16.msra.mxu0 0
        %4123 = vmatprep.subr.bf16.mxu0 0
        %4124 = vmatpush1.bf16.msra.mxu0 0
        %4125 = vmatprep.subr.bf16.mxu0 0
        %4126 = vmatpush1.bf16.msra.mxu0 0
        %4127 = vmatprep.subr.bf16.mxu0 0
        %4128 = vmatpush1.bf16.msra.mxu0 0
        %4129 = vmatprep.mubr.bf16.mxu0 0
        %4130 = vmatmul.mubr.bf16.gmra.mrb[0].mxu0 %v2455
        %v4131 = vpop.f32.mrb[0].mxu0
        %v4132 = vadd.f32 %v1432, %v4131
        %v4133 = vpop.f32.mrb[0].mxu0
        %v4134 = vadd.f32 %v1436, %v4133
        %v4135 = vpop.f32.mrb[0].mxu0
        %v4136 = vpop.f32.mrb[0].mxu0
        %4137 = vdwg.mxu0
        %4138 = vmatprep.subr.bf16.mxu0 %v2152
        %4139 = vmatpush1.bf16.msra.mxu0 %v2151
        %4140 = vmatprep.subr.bf16.mxu0 %v2248
        %4141 = vmatpush1.bf16.msra.mxu0 %v2247
        %4142 = vmatprep.subr.bf16.mxu0 0
        %4143 = vmatpush1.bf16.msra.mxu0 0
        %4144 = vmatprep.subr.bf16.mxu0 0
        %4145 = vmatpush1.bf16.msra.mxu0 0
        %4146 = vmatprep.subr.bf16.mxu0 0
        %4147 = vmatpush1.bf16.msra.mxu0 0
        %4148 = vmatprep.subr.bf16.mxu0 0
        %4149 = vmatpush1.bf16.msra.mxu0 0
        %4150 = vmatprep.subr.bf16.mxu0 0
        %4151 = vmatpush1.bf16.msra.mxu0 0
        %4152 = vmatprep.subr.bf16.mxu0 0
        %4153 = vmatpush1.bf16.msra.mxu0 0
        %4154 = vmatprep.subr.bf16.mxu0 0
        %4155 = vmatpush1.bf16.msra.mxu0 0
        %4156 = vmatprep.subr.bf16.mxu0 0
        %4157 = vmatpush1.bf16.msra.mxu0 0
        %4158 = vmatprep.subr.bf16.mxu0 0
        %4159 = vmatpush1.bf16.msra.mxu0 0
        %4160 = vmatprep.subr.bf16.mxu0 0
        %4161 = vmatpush1.bf16.msra.mxu0 0
        %4162 = vmatprep.subr.bf16.mxu0 0
        %4163 = vmatpush1.bf16.msra.mxu0 0
        %4164 = vmatprep.subr.bf16.mxu0 0
        %4165 = vmatpush1.bf16.msra.mxu0 0
        %4166 = vmatprep.subr.bf16.mxu0 0
        %4167 = vmatpush1.bf16.msra.mxu0 0
        %4168 = vmatprep.subr.bf16.mxu0 0
        %4169 = vmatpush1.bf16.msra.mxu0 0
        %4170 = vmatprep.mubr.bf16.mxu0 0
        %4171 = vmatmul.mubr.bf16.gmra.mrb[0].mxu0 %v2455
        %v4172 = vpop.f32.mrb[0].mxu0
        %v4173 = vadd.f32 %v1440, %v4172
        %v4174 = vpop.f32.mrb[0].mxu0
        %v4175 = vadd.f32 %v1444, %v4174
        %v4176 = vpop.f32.mrb[0].mxu0
        %v4177 = vpop.f32.mrb[0].mxu0
        %4178 = vdwg.mxu0
        %4179 = vmatprep.subr.bf16.mxu0 %v2154
        %4180 = vmatpush1.bf16.msra.mxu0 %v2153
        %4181 = vmatprep.subr.bf16.mxu0 %v2250
        %4182 = vmatpush1.bf16.msra.mxu0 %v2249
        %4183 = vmatprep.subr.bf16.mxu0 0
        %4184 = vmatpush1.bf16.msra.mxu0 0
        %4185 = vmatprep.subr.bf16.mxu0 0
        %4186 = vmatpush1.bf16.msra.mxu0 0
        %4187 = vmatprep.subr.bf16.mxu0 0
        %4188 = vmatpush1.bf16.msra.mxu0 0
        %4189 = vmatprep.subr.bf16.mxu0 0
        %4190 = vmatpush1.bf16.msra.mxu0 0
        %4191 = vmatprep.subr.bf16.mxu0 0
        %4192 = vmatpush1.bf16.msra.mxu0 0
        %4193 = vmatprep.subr.bf16.mxu0 0
        %4194 = vmatpush1.bf16.msra.mxu0 0
        %4195 = vmatprep.subr.bf16.mxu0 0
        %4196 = vmatpush1.bf16.msra.mxu0 0
        %4197 = vmatprep.subr.bf16.mxu0 0
        %4198 = vmatpush1.bf16.msra.mxu0 0
        %4199 = vmatprep.subr.bf16.mxu0 0
        %4200 = vmatpush1.bf16.msra.mxu0 0
        %4201 = vmatprep.subr.bf16.mxu0 0
        %4202 = vmatpush1.bf16.msra.mxu0 0
        %4203 = vmatprep.subr.bf16.mxu0 0
        %4204 = vmatpush1.bf16.msra.mxu0 0
        %4205 = vmatprep.subr.bf16.mxu0 0
        %4206 = vmatpush1.bf16.msra.mxu0 0
        %4207 = vmatprep.subr.bf16.mxu0 0
        %4208 = vmatpush1.bf16.msra.mxu0 0
        %4209 = vmatprep.subr.bf16.mxu0 0
        %4210 = vmatpush1.bf16.msra.mxu0 0
        %4211 = vmatprep.mubr.bf16.mxu0 0
        %4212 = vmatmul.mubr.bf16.gmra.mrb[0].mxu0 %v2455
        %v4213 = vpop.f32.mrb[0].mxu0
        %v4214 = vadd.f32 %v1448, %v4213
        %v4215 = vpop.f32.mrb[0].mxu0
        %v4216 = vadd.f32 %v1452, %v4215
        %v4217 = vpop.f32.mrb[0].mxu0
        %v4218 = vpop.f32.mrb[0].mxu0
        %4219 = vdwg.mxu0
        %4220 = vmatprep.subr.bf16.mxu0 %v2156
        %4221 = vmatpush1.bf16.msra.mxu0 %v2155
        %4222 = vmatprep.subr.bf16.mxu0 %v2252
        %4223 = vmatpush1.bf16.msra.mxu0 %v2251
        %4224 = vmatprep.subr.bf16.mxu0 0
        %4225 = vmatpush1.bf16.msra.mxu0 0
        %4226 = vmatprep.subr.bf16.mxu0 0
        %4227 = vmatpush1.bf16.msra.mxu0 0
        %4228 = vmatprep.subr.bf16.mxu0 0
        %4229 = vmatpush1.bf16.msra.mxu0 0
        %4230 = vmatprep.subr.bf16.mxu0 0
        %4231 = vmatpush1.bf16.msra.mxu0 0
        %4232 = vmatprep.subr.bf16.mxu0 0
        %4233 = vmatpush1.bf16.msra.mxu0 0
        %4234 = vmatprep.subr.bf16.mxu0 0
        %4235 = vmatpush1.bf16.msra.mxu0 0
        %4236 = vmatprep.subr.bf16.mxu0 0
        %4237 = vmatpush1.bf16.msra.mxu0 0
        %4238 = vmatprep.subr.bf16.mxu0 0
        %4239 = vmatpush1.bf16.msra.mxu0 0
        %4240 = vmatprep.subr.bf16.mxu0 0
        %4241 = vmatpush1.bf16.msra.mxu0 0
        %4242 = vmatprep.subr.bf16.mxu0 0
        %4243 = vmatpush1.bf16.msra.mxu0 0
        %4244 = vmatprep.subr.bf16.mxu0 0
        %4245 = vmatpush1.bf16.msra.mxu0 0
        %4246 = vmatprep.subr.bf16.mxu0 0
        %4247 = vmatpush1.bf16.msra.mxu0 0
        %4248 = vmatprep.subr.bf16.mxu0 0
        %4249 = vmatpush1.bf16.msra.mxu0 0
        %4250 = vmatprep.subr.bf16.mxu0 0
        %4251 = vmatpush1.bf16.msra.mxu0 0
        %4252 = vmatprep.mubr.bf16.mxu0 0
        %4253 = vmatmul.mubr.bf16.gmra.mrb[0].mxu0 %v2455
        %v4254 = vpop.f32.mrb[0].mxu0
        %v4255 = vadd.f32 %v1456, %v4254
        %v4256 = vpop.f32.mrb[0].mxu0
        %v4257 = vadd.f32 %v1460, %v4256
        %v4258 = vpop.f32.mrb[0].mxu0
        %v4259 = vpop.f32.mrb[0].mxu0
        %4260 = vdwg.mxu0
        %4261 = vmatprep.subr.bf16.mxu0 %v2158
        %4262 = vmatpush1.bf16.msra.mxu0 %v2157
        %4263 = vmatprep.subr.bf16.mxu0 %v2254
        %4264 = vmatpush1.bf16.msra.mxu0 %v2253
        %4265 = vmatprep.subr.bf16.mxu0 0
        %4266 = vmatpush1.bf16.msra.mxu0 0
        %4267 = vmatprep.subr.bf16.mxu0 0
        %4268 = vmatpush1.bf16.msra.mxu0 0
        %4269 = vmatprep.subr.bf16.mxu0 0
        %4270 = vmatpush1.bf16.msra.mxu0 0
        %4271 = vmatprep.subr.bf16.mxu0 0
        %4272 = vmatpush1.bf16.msra.mxu0 0
        %4273 = vmatprep.subr.bf16.mxu0 0
        %4274 = vmatpush1.bf16.msra.mxu0 0
        %4275 = vmatprep.subr.bf16.mxu0 0
        %4276 = vmatpush1.bf16.msra.mxu0 0
        %4277 = vmatprep.subr.bf16.mxu0 0
        %4278 = vmatpush1.bf16.msra.mxu0 0
        %4279 = vmatprep.subr.bf16.mxu0 0
        %4280 = vmatpush1.bf16.msra.mxu0 0
        %4281 = vmatprep.subr.bf16.mxu0 0
        %4282 = vmatpush1.bf16.msra.mxu0 0
        %4283 = vmatprep.subr.bf16.mxu0 0
        %4284 = vmatpush1.bf16.msra.mxu0 0
        %4285 = vmatprep.subr.bf16.mxu0 0
        %4286 = vmatpush1.bf16.msra.mxu0 0
        %4287 = vmatprep.subr.bf16.mxu0 0
        %4288 = vmatpush1.bf16.msra.mxu0 0
        %4289 = vmatprep.subr.bf16.mxu0 0
        %4290 = vmatpush1.bf16.msra.mxu0 0
        %4291 = vmatprep.subr.bf16.mxu0 0
        %4292 = vmatpush1.bf16.msra.mxu0 0
        %4293 = vmatprep.mubr.bf16.mxu0 0
        %4294 = vmatmul.mubr.bf16.gmra.mrb[0].mxu0 %v2455
        %v4295 = vpop.f32.mrb[0].mxu0
        %v4296 = vadd.f32 %v1464, %v4295
        %v4297 = vpop.f32.mrb[0].mxu0
        %v4298 = vadd.f32 %v1468, %v4297
        %v4299 = vpop.f32.mrb[0].mxu0
        %v4300 = vpop.f32.mrb[0].mxu0
        %4301 = vdwg.mxu0
        %4302 = vmatprep.subr.bf16.mxu0 %v2160
        %4303 = vmatpush1.bf16.msra.mxu0 %v2159
        %4304 = vmatprep.subr.bf16.mxu0 %v2256
        %4305 = vmatpush1.bf16.msra.mxu0 %v2255
        %4306 = vmatprep.subr.bf16.mxu0 0
        %4307 = vmatpush1.bf16.msra.mxu0 0
        %4308 = vmatprep.subr.bf16.mxu0 0
        %4309 = vmatpush1.bf16.msra.mxu0 0
        %4310 = vmatprep.subr.bf16.mxu0 0
        %4311 = vmatpush1.bf16.msra.mxu0 0
        %4312 = vmatprep.subr.bf16.mxu0 0
        %4313 = vmatpush1.bf16.msra.mxu0 0
        %4314 = vmatprep.subr.bf16.mxu0 0
        %4315 = vmatpush1.bf16.msra.mxu0 0
        %4316 = vmatprep.subr.bf16.mxu0 0
        %4317 = vmatpush1.bf16.msra.mxu0 0
        %4318 = vmatprep.subr.bf16.mxu0 0
        %4319 = vmatpush1.bf16.msra.mxu0 0
        %4320 = vmatprep.subr.bf16.mxu0 0
        %4321 = vmatpush1.bf16.msra.mxu0 0
        %4322 = vmatprep.subr.bf16.mxu0 0
        %4323 = vmatpush1.bf16.msra.mxu0 0
        %4324 = vmatprep.subr.bf16.mxu0 0
        %4325 = vmatpush1.bf16.msra.mxu0 0
        %4326 = vmatprep.subr.bf16.mxu0 0
        %4327 = vmatpush1.bf16.msra.mxu0 0
        %4328 = vmatprep.subr.bf16.mxu0 0
        %4329 = vmatpush1.bf16.msra.mxu0 0
        %4330 = vmatprep.subr.bf16.mxu0 0
        %4331 = vmatpush1.bf16.msra.mxu0 0
        %4332 = vmatprep.subr.bf16.mxu0 0
        %4333 = vmatpush1.bf16.msra.mxu0 0
        %4334 = vmatprep.mubr.bf16.mxu0 0
        %4335 = vmatmul.mubr.bf16.gmra.mrb[0].mxu0 %v2455
        %v4336 = vpop.f32.mrb[0].mxu0
        %v4337 = vadd.f32 %v1472, %v4336
        %v4338 = vpop.f32.mrb[0].mxu0
        %v4339 = vadd.f32 %v1476, %v4338
        %v4340 = vpop.f32.mrb[0].mxu0
        %v4341 = vpop.f32.mrb[0].mxu0
        %4342 = vdwg.mxu0
        %4343 = vmatprep.subr.bf16.mxu0 %v2162
        %4344 = vmatpush1.bf16.msra.mxu0 %v2161
        %4345 = vmatprep.subr.bf16.mxu0 %v2258
        %4346 = vmatpush1.bf16.msra.mxu0 %v2257
        %4347 = vmatprep.subr.bf16.mxu0 0
        %4348 = vmatpush1.bf16.msra.mxu0 0
        %4349 = vmatprep.subr.bf16.mxu0 0
        %4350 = vmatpush1.bf16.msra.mxu0 0
        %4351 = vmatprep.subr.bf16.mxu0 0
        %4352 = vmatpush1.bf16.msra.mxu0 0
        %4353 = vmatprep.subr.bf16.mxu0 0
        %4354 = vmatpush1.bf16.msra.mxu0 0
        %4355 = vmatprep.subr.bf16.mxu0 0
        %4356 = vmatpush1.bf16.msra.mxu0 0
        %4357 = vmatprep.subr.bf16.mxu0 0
        %4358 = vmatpush1.bf16.msra.mxu0 0
        %4359 = vmatprep.subr.bf16.mxu0 0
        %4360 = vmatpush1.bf16.msra.mxu0 0
        %4361 = vmatprep.subr.bf16.mxu0 0
        %4362 = vmatpush1.bf16.msra.mxu0 0
        %4363 = vmatprep.subr.bf16.mxu0 0
        %4364 = vmatpush1.bf16.msra.mxu0 0
        %4365 = vmatprep.subr.bf16.mxu0 0
        %4366 = vmatpush1.bf16.msra.mxu0 0
        %4367 = vmatprep.subr.bf16.mxu0 0
        %4368 = vmatpush1.bf16.msra.mxu0 0
        %4369 = vmatprep.subr.bf16.mxu0 0
        %4370 = vmatpush1.bf16.msra.mxu0 0
        %4371 = vmatprep.subr.bf16.mxu0 0
        %4372 = vmatpush1.bf16.msra.mxu0 0
        %4373 = vmatprep.subr.bf16.mxu0 0
        %4374 = vmatpush1.bf16.msra.mxu0 0
        %4375 = vmatprep.mubr.bf16.mxu0 0
        %4376 = vmatmul.mubr.bf16.gmra.mrb[0].mxu0 %v2455
        %v4377 = vpop.f32.mrb[0].mxu0
        %v4378 = vadd.f32 %v1480, %v4377
        %v4379 = vpop.f32.mrb[0].mxu0
        %v4380 = vadd.f32 %v1484, %v4379
        %v4381 = vpop.f32.mrb[0].mxu0
        %v4382 = vpop.f32.mrb[0].mxu0
        %4383 = vdwg.mxu0
        %4384 = vmatprep.subr.bf16.mxu0 %v2164
        %4385 = vmatpush1.bf16.msra.mxu0 %v2163
        %4386 = vmatprep.subr.bf16.mxu0 %v2260
        %4387 = vmatpush1.bf16.msra.mxu0 %v2259
        %4388 = vmatprep.subr.bf16.mxu0 0
        %4389 = vmatpush1.bf16.msra.mxu0 0
        %4390 = vmatprep.subr.bf16.mxu0 0
        %4391 = vmatpush1.bf16.msra.mxu0 0
        %4392 = vmatprep.subr.bf16.mxu0 0
        %4393 = vmatpush1.bf16.msra.mxu0 0
        %4394 = vmatprep.subr.bf16.mxu0 0
        %4395 = vmatpush1.bf16.msra.mxu0 0
        %4396 = vmatprep.subr.bf16.mxu0 0
        %4397 = vmatpush1.bf16.msra.mxu0 0
        %4398 = vmatprep.subr.bf16.mxu0 0
        %4399 = vmatpush1.bf16.msra.mxu0 0
        %4400 = vmatprep.subr.bf16.mxu0 0
        %4401 = vmatpush1.bf16.msra.mxu0 0
        %4402 = vmatprep.subr.bf16.mxu0 0
        %4403 = vmatpush1.bf16.msra.mxu0 0
        %4404 = vmatprep.subr.bf16.mxu0 0
        %4405 = vmatpush1.bf16.msra.mxu0 0
        %4406 = vmatprep.subr.bf16.mxu0 0
        %4407 = vmatpush1.bf16.msra.mxu0 0
        %4408 = vmatprep.subr.bf16.mxu0 0
        %4409 = vmatpush1.bf16.msra.mxu0 0
        %4410 = vmatprep.subr.bf16.mxu0 0
        %4411 = vmatpush1.bf16.msra.mxu0 0
        %4412 = vmatprep.subr.bf16.mxu0 0
        %4413 = vmatpush1.bf16.msra.mxu0 0
        %4414 = vmatprep.subr.bf16.mxu0 0
        %4415 = vmatpush1.bf16.msra.mxu0 0
        %4416 = vmatprep.mubr.bf16.mxu0 0
        %4417 = vmatmul.mubr.bf16.gmra.mrb[0].mxu0 %v2455
        %v4418 = vpop.f32.mrb[0].mxu0
        %v4419 = vadd.f32 %v1488, %v4418
        %v4420 = vpop.f32.mrb[0].mxu0
        %v4421 = vadd.f32 %v1492, %v4420
        %v4422 = vpop.f32.mrb[0].mxu0
        %v4423 = vpop.f32.mrb[0].mxu0
        %4424 = vdwg.mxu0
        %v4425 = vxor.u32 %v2492, 2147483648
        %v4426 = vxor.u32 %v2494, 2147483648
        %v4427 = vxor.u32 %v2533, 2147483648
        %v4428 = vxor.u32 %v2535, 2147483648
        %v4429 = vxor.u32 %v2574, 2147483648
        %v4430 = vxor.u32 %v2576, 2147483648
        %v4431 = vxor.u32 %v2615, 2147483648
        %v4432 = vxor.u32 %v2617, 2147483648
        %v4433 = vxor.u32 %v2656, 2147483648
        %v4434 = vxor.u32 %v2658, 2147483648
        %v4435 = vxor.u32 %v2697, 2147483648
        %v4436 = vxor.u32 %v2699, 2147483648
        %v4437 = vxor.u32 %v2738, 2147483648
        %v4438 = vxor.u32 %v2740, 2147483648
        %v4439 = vxor.u32 %v2779, 2147483648
        %v4440 = vxor.u32 %v2781, 2147483648
        %v4441 = vxor.u32 %v2820, 2147483648
        %v4442 = vxor.u32 %v2822, 2147483648
        %v4443 = vxor.u32 %v2861, 2147483648
        %v4444 = vxor.u32 %v2863, 2147483648
        %v4445 = vxor.u32 %v2902, 2147483648
        %v4446 = vxor.u32 %v2904, 2147483648
        %v4447 = vxor.u32 %v2943, 2147483648
        %v4448 = vxor.u32 %v2945, 2147483648
        %v4449 = vxor.u32 %v2984, 2147483648
        %v4450 = vxor.u32 %v2986, 2147483648
        %v4451 = vxor.u32 %v3025, 2147483648
        %v4452 = vxor.u32 %v3027, 2147483648
        %v4453 = vxor.u32 %v3066, 2147483648
        %v4454 = vxor.u32 %v3068, 2147483648
        %v4455 = vxor.u32 %v3107, 2147483648
        %v4456 = vxor.u32 %v3109, 2147483648
        %v4457 = vxor.u32 %v3148, 2147483648
        %v4458 = vxor.u32 %v3150, 2147483648
        %v4459 = vxor.u32 %v3189, 2147483648
        %v4460 = vxor.u32 %v3191, 2147483648
        %v4461 = vxor.u32 %v3230, 2147483648
        %v4462 = vxor.u32 %v3232, 2147483648
        %v4463 = vxor.u32 %v3271, 2147483648
        %v4464 = vxor.u32 %v3273, 2147483648
        %v4465 = vxor.u32 %v3312, 2147483648
        %v4466 = vxor.u32 %v3314, 2147483648
        %v4467 = vxor.u32 %v3353, 2147483648
        %v4468 = vxor.u32 %v3355, 2147483648
        %v4469 = vxor.u32 %v3394, 2147483648
        %v4470 = vxor.u32 %v3396, 2147483648
        %v4471 = vxor.u32 %v3435, 2147483648
        %v4472 = vxor.u32 %v3437, 2147483648
        %v4473 = vxor.u32 %v3476, 2147483648
        %v4474 = vxor.u32 %v3478, 2147483648
        %v4475 = vxor.u32 %v3517, 2147483648
        %v4476 = vxor.u32 %v3519, 2147483648
        %v4477 = vxor.u32 %v3558, 2147483648
        %v4478 = vxor.u32 %v3560, 2147483648
        %v4479 = vxor.u32 %v3599, 2147483648
        %v4480 = vxor.u32 %v3601, 2147483648
        %v4481 = vxor.u32 %v3640, 2147483648
        %v4482 = vxor.u32 %v3642, 2147483648
        %v4483 = vxor.u32 %v3681, 2147483648
        %v4484 = vxor.u32 %v3683, 2147483648
        %v4485 = vxor.u32 %v3722, 2147483648
        %v4486 = vxor.u32 %v3724, 2147483648
        %v4487 = vxor.u32 %v3763, 2147483648
        %v4488 = vxor.u32 %v3765, 2147483648
        %v4489 = vxor.u32 %v3804, 2147483648
        %v4490 = vxor.u32 %v3806, 2147483648
        %v4491 = vxor.u32 %v3845, 2147483648
        %v4492 = vxor.u32 %v3847, 2147483648
        %v4493 = vxor.u32 %v3886, 2147483648
        %v4494 = vxor.u32 %v3888, 2147483648
        %v4495 = vxor.u32 %v3927, 2147483648
        %v4496 = vxor.u32 %v3929, 2147483648
        %v4497 = vxor.u32 %v3968, 2147483648
        %v4498 = vxor.u32 %v3970, 2147483648
        %v4499 = vxor.u32 %v4009, 2147483648
        %v4500 = vxor.u32 %v4011, 2147483648
        %v4501 = vxor.u32 %v4050, 2147483648
        %v4502 = vxor.u32 %v4052, 2147483648
        %v4503 = vxor.u32 %v4091, 2147483648
        %v4504 = vxor.u32 %v4093, 2147483648
        %v4505 = vxor.u32 %v4132, 2147483648
        %v4506 = vxor.u32 %v4134, 2147483648
        %v4507 = vxor.u32 %v4173, 2147483648
        %v4508 = vxor.u32 %v4175, 2147483648
        %v4509 = vxor.u32 %v4214, 2147483648
        %v4510 = vxor.u32 %v4216, 2147483648
        %v4511 = vxor.u32 %v4255, 2147483648
        %v4512 = vxor.u32 %v4257, 2147483648
        %v4513 = vxor.u32 %v4296, 2147483648
        %v4514 = vxor.u32 %v4298, 2147483648
        %v4515 = vxor.u32 %v4337, 2147483648
        %v4516 = vxor.u32 %v4339, 2147483648
        %v4517 = vxor.u32 %v4378, 2147483648
        %v4518 = vxor.u32 %v4380, 2147483648
        %v4519 = vxor.u32 %v4419, 2147483648
        %v4520 = vxor.u32 %v4421, 2147483648
        %v4521 = vmul.f32 %v4425, 1.442695
        %v4522 = vpow.pop %v4521
        %v4523 = vmul.f32 %v4426, 1.442695
        %v4524 = vpow.pop %v4523
        %v4525 = vmul.f32 %v4427, 1.442695
        %v4526 = vpow.pop %v4525
        %v4527 = vmul.f32 %v4428, 1.442695
        %v4528 = vpow.pop %v4527
        %v4529 = vmul.f32 %v4429, 1.442695
        %v4530 = vpow.pop %v4529
        %v4531 = vmul.f32 %v4430, 1.442695
        %v4532 = vpow.pop %v4531
        %v4533 = vmul.f32 %v4431, 1.442695
        %v4534 = vpow.pop %v4533
        %v4535 = vmul.f32 %v4432, 1.442695
        %v4536 = vpow.pop %v4535
        %v4537 = vmul.f32 %v4433, 1.442695
        %v4538 = vpow.pop %v4537
        %v4539 = vmul.f32 %v4434, 1.442695
        %v4540 = vpow.pop %v4539
        %v4541 = vmul.f32 %v4435, 1.442695
        %v4542 = vpow.pop %v4541
        %v4543 = vmul.f32 %v4436, 1.442695
        %v4544 = vpow.pop %v4543
        %v4545 = vmul.f32 %v4437, 1.442695
        %v4546 = vpow.pop %v4545
        %v4547 = vmul.f32 %v4438, 1.442695
        %v4548 = vpow.pop %v4547
        %v4549 = vmul.f32 %v4439, 1.442695
        %v4550 = vpow.pop %v4549
        %v4551 = vmul.f32 %v4440, 1.442695
        %v4552 = vpow.pop %v4551
        %v4553 = vmul.f32 %v4441, 1.442695
        %v4554 = vpow.pop %v4553
        %v4555 = vmul.f32 %v4442, 1.442695
        %v4556 = vpow.pop %v4555
        %v4557 = vmul.f32 %v4443, 1.442695
        %v4558 = vpow.pop %v4557
        %v4559 = vmul.f32 %v4444, 1.442695
        %v4560 = vpow.pop %v4559
        %v4561 = vmul.f32 %v4445, 1.442695
        %v4562 = vpow.pop %v4561
        %v4563 = vmul.f32 %v4446, 1.442695
        %v4564 = vpow.pop %v4563
        %v4565 = vmul.f32 %v4447, 1.442695
        %v4566 = vpow.pop %v4565
        %v4567 = vmul.f32 %v4448, 1.442695
        %v4568 = vpow.pop %v4567
        %v4569 = vmul.f32 %v4449, 1.442695
        %v4570 = vpow.pop %v4569
        %v4571 = vmul.f32 %v4450, 1.442695
        %v4572 = vpow.pop %v4571
        %v4573 = vmul.f32 %v4451, 1.442695
        %v4574 = vpow.pop %v4573
        %v4575 = vmul.f32 %v4452, 1.442695
        %v4576 = vpow.pop %v4575
        %v4577 = vmul.f32 %v4453, 1.442695
        %v4578 = vpow.pop %v4577
        %v4579 = vmul.f32 %v4454, 1.442695
        %v4580 = vpow.pop %v4579
        %v4581 = vmul.f32 %v4455, 1.442695
        %v4582 = vpow.pop %v4581
        %v4583 = vmul.f32 %v4456, 1.442695
        %v4584 = vpow.pop %v4583
        %v4585 = vmul.f32 %v4457, 1.442695
        %v4586 = vpow.pop %v4585
        %v4587 = vmul.f32 %v4458, 1.442695
        %v4588 = vpow.pop %v4587
        %v4589 = vmul.f32 %v4459, 1.442695
        %v4590 = vpow.pop %v4589
        %v4591 = vmul.f32 %v4460, 1.442695
        %v4592 = vpow.pop %v4591
        %v4593 = vmul.f32 %v4461, 1.442695
        %v4594 = vpow.pop %v4593
        %v4595 = vmul.f32 %v4462, 1.442695
        %v4596 = vpow.pop %v4595
        %v4597 = vmul.f32 %v4463, 1.442695
        %v4598 = vpow.pop %v4597
        %v4599 = vmul.f32 %v4464, 1.442695
        %v4600 = vpow.pop %v4599
        %v4601 = vmul.f32 %v4465, 1.442695
        %v4602 = vpow.pop %v4601
        %v4603 = vmul.f32 %v4466, 1.442695
        %v4604 = vpow.pop %v4603
        %v4605 = vmul.f32 %v4467, 1.442695
        %v4606 = vpow.pop %v4605
        %v4607 = vmul.f32 %v4468, 1.442695
        %v4608 = vpow.pop %v4607
        %v4609 = vmul.f32 %v4469, 1.442695
        %v4610 = vpow.pop %v4609
        %v4611 = vmul.f32 %v4470, 1.442695
        %v4612 = vpow.pop %v4611
        %v4613 = vmul.f32 %v4471, 1.442695
        %v4614 = vpow.pop %v4613
        %v4615 = vmul.f32 %v4472, 1.442695
        %v4616 = vpow.pop %v4615
        %v4617 = vmul.f32 %v4473, 1.442695
        %v4618 = vpow.pop %v4617
        %v4619 = vmul.f32 %v4474, 1.442695
        %v4620 = vpow.pop %v4619
        %v4621 = vmul.f32 %v4475, 1.442695
        %v4622 = vpow.pop %v4621
        %v4623 = vmul.f32 %v4476, 1.442695
        %v4624 = vpow.pop %v4623
        %v4625 = vmul.f32 %v4477, 1.442695
        %v4626 = vpow.pop %v4625
        %v4627 = vmul.f32 %v4478, 1.442695
        %v4628 = vpow.pop %v4627
        %v4629 = vmul.f32 %v4479, 1.442695
        %v4630 = vpow.pop %v4629
        %v4631 = vmul.f32 %v4480, 1.442695
        %v4632 = vpow.pop %v4631
        %v4633 = vmul.f32 %v4481, 1.442695
        %v4634 = vpow.pop %v4633
        %v4635 = vmul.f32 %v4482, 1.442695
        %v4636 = vpow.pop %v4635
        %v4637 = vmul.f32 %v4483, 1.442695
        %v4638 = vpow.pop %v4637
        %v4639 = vmul.f32 %v4484, 1.442695
        %v4640 = vpow.pop %v4639
        %v4641 = vmul.f32 %v4485, 1.442695
        %v4642 = vpow.pop %v4641
        %v4643 = vmul.f32 %v4486, 1.442695
        %v4644 = vpow.pop %v4643
        %v4645 = vmul.f32 %v4487, 1.442695
        %v4646 = vpow.pop %v4645
        %v4647 = vmul.f32 %v4488, 1.442695
        %v4648 = vpow.pop %v4647
        %v4649 = vmul.f32 %v4489, 1.442695
        %v4650 = vpow.pop %v4649
        %v4651 = vmul.f32 %v4490, 1.442695
        %v4652 = vpow.pop %v4651
        %v4653 = vmul.f32 %v4491, 1.442695
        %v4654 = vpow.pop %v4653
        %v4655 = vmul.f32 %v4492, 1.442695
        %v4656 = vpow.pop %v4655
        %v4657 = vmul.f32 %v4493, 1.442695
        %v4658 = vpow.pop %v4657
        %v4659 = vmul.f32 %v4494, 1.442695
        %v4660 = vpow.pop %v4659
        %v4661 = vmul.f32 %v4495, 1.442695
        %v4662 = vpow.pop %v4661
        %v4663 = vmul.f32 %v4496, 1.442695
        %v4664 = vpow.pop %v4663
        %v4665 = vmul.f32 %v4497, 1.442695
        %v4666 = vpow.pop %v4665
        %v4667 = vmul.f32 %v4498, 1.442695
        %v4668 = vpow.pop %v4667
        %v4669 = vmul.f32 %v4499, 1.442695
        %v4670 = vpow.pop %v4669
        %v4671 = vmul.f32 %v4500, 1.442695
        %v4672 = vpow.pop %v4671
        %v4673 = vmul.f32 %v4501, 1.442695
        %v4674 = vpow.pop %v4673
        %v4675 = vmul.f32 %v4502, 1.442695
        %v4676 = vpow.pop %v4675
        %v4677 = vmul.f32 %v4503, 1.442695
        %v4678 = vpow.pop %v4677
        %v4679 = vmul.f32 %v4504, 1.442695
        %v4680 = vpow.pop %v4679
        %v4681 = vmul.f32 %v4505, 1.442695
        %v4682 = vpow.pop %v4681
        %v4683 = vmul.f32 %v4506, 1.442695
        %v4684 = vpow.pop %v4683
        %v4685 = vmul.f32 %v4507, 1.442695
        %v4686 = vpow.pop %v4685
        %v4687 = vmul.f32 %v4508, 1.442695
        %v4688 = vpow.pop %v4687
        %v4689 = vmul.f32 %v4509, 1.442695
        %v4690 = vpow.pop %v4689
        %v4691 = vmul.f32 %v4510, 1.442695
        %v4692 = vpow.pop %v4691
        %v4693 = vmul.f32 %v4511, 1.442695
        %v4694 = vpow.pop %v4693
        %v4695 = vmul.f32 %v4512, 1.442695
        %v4696 = vpow.pop %v4695
        %v4697 = vmul.f32 %v4513, 1.442695
        %v4698 = vpow.pop %v4697
        %v4699 = vmul.f32 %v4514, 1.442695
        %v4700 = vpow.pop %v4699
        %v4701 = vmul.f32 %v4515, 1.442695
        %v4702 = vpow.pop %v4701
        %v4703 = vmul.f32 %v4516, 1.442695
        %v4704 = vpow.pop %v4703
        %v4705 = vmul.f32 %v4517, 1.442695
        %v4706 = vpow.pop %v4705
        %v4707 = vmul.f32 %v4518, 1.442695
        %v4708 = vpow.pop %v4707
        %v4709 = vmul.f32 %v4519, 1.442695
        %v4710 = vpow.pop %v4709
        %v4711 = vmul.f32 %v4520, 1.442695
        %v4712 = vpow.pop %v4711
        %v4713 = vadd.f32 %v4522, 1.0
        %v4714 = vadd.f32 %v4524, 1.0
        %v4715 = vadd.f32 %v4526, 1.0
        %v4716 = vadd.f32 %v4528, 1.0
        %v4717 = vadd.f32 %v4530, 1.0
        %v4718 = vadd.f32 %v4532, 1.0
        %v4719 = vadd.f32 %v4534, 1.0
        %v4720 = vadd.f32 %v4536, 1.0
        %v4721 = vadd.f32 %v4538, 1.0
        %v4722 = vadd.f32 %v4540, 1.0
        %v4723 = vadd.f32 %v4542, 1.0
        %v4724 = vadd.f32 %v4544, 1.0
        %v4725 = vadd.f32 %v4546, 1.0
        %v4726 = vadd.f32 %v4548, 1.0
        %v4727 = vadd.f32 %v4550, 1.0
        %v4728 = vadd.f32 %v4552, 1.0
        %v4729 = vadd.f32 %v4554, 1.0
        %v4730 = vadd.f32 %v4556, 1.0
        %v4731 = vadd.f32 %v4558, 1.0
        %v4732 = vadd.f32 %v4560, 1.0
        %v4733 = vadd.f32 %v4562, 1.0
        %v4734 = vadd.f32 %v4564, 1.0
        %v4735 = vadd.f32 %v4566, 1.0
        %v4736 = vadd.f32 %v4568, 1.0
        %v4737 = vadd.f32 %v4570, 1.0
        %v4738 = vadd.f32 %v4572, 1.0
        %v4739 = vadd.f32 %v4574, 1.0
        %v4740 = vadd.f32 %v4576, 1.0
        %v4741 = vadd.f32 %v4578, 1.0
        %v4742 = vadd.f32 %v4580, 1.0
        %v4743 = vadd.f32 %v4582, 1.0
        %v4744 = vadd.f32 %v4584, 1.0
        %v4745 = vadd.f32 %v4586, 1.0
        %v4746 = vadd.f32 %v4588, 1.0
        %v4747 = vadd.f32 %v4590, 1.0
        %v4748 = vadd.f32 %v4592, 1.0
        %v4749 = vadd.f32 %v4594, 1.0
        %v4750 = vadd.f32 %v4596, 1.0
        %v4751 = vadd.f32 %v4598, 1.0
        %v4752 = vadd.f32 %v4600, 1.0
        %v4753 = vadd.f32 %v4602, 1.0
        %v4754 = vadd.f32 %v4604, 1.0
        %v4755 = vadd.f32 %v4606, 1.0
        %v4756 = vadd.f32 %v4608, 1.0
        %v4757 = vadd.f32 %v4610, 1.0
        %v4758 = vadd.f32 %v4612, 1.0
        %v4759 = vadd.f32 %v4614, 1.0
        %v4760 = vadd.f32 %v4616, 1.0
        %v4761 = vadd.f32 %v4618, 1.0
        %v4762 = vadd.f32 %v4620, 1.0
        %v4763 = vadd.f32 %v4622, 1.0
        %v4764 = vadd.f32 %v4624, 1.0
        %v4765 = vadd.f32 %v4626, 1.0
        %v4766 = vadd.f32 %v4628, 1.0
        %v4767 = vadd.f32 %v4630, 1.0
        %v4768 = vadd.f32 %v4632, 1.0
        %v4769 = vadd.f32 %v4634, 1.0
        %v4770 = vadd.f32 %v4636, 1.0
        %v4771 = vadd.f32 %v4638, 1.0
        %v4772 = vadd.f32 %v4640, 1.0
        %v4773 = vadd.f32 %v4642, 1.0
        %v4774 = vadd.f32 %v4644, 1.0
        %v4775 = vadd.f32 %v4646, 1.0
        %v4776 = vadd.f32 %v4648, 1.0
        %v4777 = vadd.f32 %v4650, 1.0
        %v4778 = vadd.f32 %v4652, 1.0
        %v4779 = vadd.f32 %v4654, 1.0
        %v4780 = vadd.f32 %v4656, 1.0
        %v4781 = vadd.f32 %v4658, 1.0
        %v4782 = vadd.f32 %v4660, 1.0
        %v4783 = vadd.f32 %v4662, 1.0
        %v4784 = vadd.f32 %v4664, 1.0
        %v4785 = vadd.f32 %v4666, 1.0
        %v4786 = vadd.f32 %v4668, 1.0
        %v4787 = vadd.f32 %v4670, 1.0
        %v4788 = vadd.f32 %v4672, 1.0
        %v4789 = vadd.f32 %v4674, 1.0
        %v4790 = vadd.f32 %v4676, 1.0
        %v4791 = vadd.f32 %v4678, 1.0
        %v4792 = vadd.f32 %v4680, 1.0
        %v4793 = vadd.f32 %v4682, 1.0
        %v4794 = vadd.f32 %v4684, 1.0
        %v4795 = vadd.f32 %v4686, 1.0
        %v4796 = vadd.f32 %v4688, 1.0
        %v4797 = vadd.f32 %v4690, 1.0
        %v4798 = vadd.f32 %v4692, 1.0
        %v4799 = vadd.f32 %v4694, 1.0
        %v4800 = vadd.f32 %v4696, 1.0
        %v4801 = vadd.f32 %v4698, 1.0
        %v4802 = vadd.f32 %v4700, 1.0
        %v4803 = vadd.f32 %v4702, 1.0
        %v4804 = vadd.f32 %v4704, 1.0
        %v4805 = vadd.f32 %v4706, 1.0
        %v4806 = vadd.f32 %v4708, 1.0
        %v4807 = vadd.f32 %v4710, 1.0
        %v4808 = vadd.f32 %v4712, 1.0
        %v4809 = vrcp.pop %v4713
        %v4810 = vmul.f32 1.0, %v4809
        %v4811 = vrcp.pop %v4714
        %v4812 = vmul.f32 1.0, %v4811
        %v4813 = vrcp.pop %v4715
        %v4814 = vmul.f32 1.0, %v4813
        %v4815 = vrcp.pop %v4716
        %v4816 = vmul.f32 1.0, %v4815
        %v4817 = vrcp.pop %v4717
        %v4818 = vmul.f32 1.0, %v4817
        %v4819 = vrcp.pop %v4718
        %v4820 = vmul.f32 1.0, %v4819
        %v4821 = vrcp.pop %v4719
        %v4822 = vmul.f32 1.0, %v4821
        %v4823 = vrcp.pop %v4720
        %v4824 = vmul.f32 1.0, %v4823
        %v4825 = vrcp.pop %v4721
        %v4826 = vmul.f32 1.0, %v4825
        %v4827 = vrcp.pop %v4722
        %v4828 = vmul.f32 1.0, %v4827
        %v4829 = vrcp.pop %v4723
        %v4830 = vmul.f32 1.0, %v4829
        %v4831 = vrcp.pop %v4724
        %v4832 = vmul.f32 1.0, %v4831
        %v4833 = vrcp.pop %v4725
        %v4834 = vmul.f32 1.0, %v4833
        %v4835 = vrcp.pop %v4726
        %v4836 = vmul.f32 1.0, %v4835
        %v4837 = vrcp.pop %v4727
        %v4838 = vmul.f32 1.0, %v4837
        %v4839 = vrcp.pop %v4728
        %v4840 = vmul.f32 1.0, %v4839
        %v4841 = vrcp.pop %v4729
        %v4842 = vmul.f32 1.0, %v4841
        %v4843 = vrcp.pop %v4730
        %v4844 = vmul.f32 1.0, %v4843
        %v4845 = vrcp.pop %v4731
        %v4846 = vmul.f32 1.0, %v4845
        %v4847 = vrcp.pop %v4732
        %v4848 = vmul.f32 1.0, %v4847
        %v4849 = vrcp.pop %v4733
        %v4850 = vmul.f32 1.0, %v4849
        %v4851 = vrcp.pop %v4734
        %v4852 = vmul.f32 1.0, %v4851
        %v4853 = vrcp.pop %v4735
        %v4854 = vmul.f32 1.0, %v4853
        %v4855 = vrcp.pop %v4736
        %v4856 = vmul.f32 1.0, %v4855
        %v4857 = vrcp.pop %v4737
        %v4858 = vmul.f32 1.0, %v4857
        %v4859 = vrcp.pop %v4738
        %v4860 = vmul.f32 1.0, %v4859
        %v4861 = vrcp.pop %v4739
        %v4862 = vmul.f32 1.0, %v4861
        %v4863 = vrcp.pop %v4740
        %v4864 = vmul.f32 1.0, %v4863
        %v4865 = vrcp.pop %v4741
        %v4866 = vmul.f32 1.0, %v4865
        %v4867 = vrcp.pop %v4742
        %v4868 = vmul.f32 1.0, %v4867
        %v4869 = vrcp.pop %v4743
        %v4870 = vmul.f32 1.0, %v4869
        %v4871 = vrcp.pop %v4744
        %v4872 = vmul.f32 1.0, %v4871
        %v4873 = vrcp.pop %v4745
        %v4874 = vmul.f32 1.0, %v4873
        %v4875 = vrcp.pop %v4746
        %v4876 = vmul.f32 1.0, %v4875
        %v4877 = vrcp.pop %v4747
        %v4878 = vmul.f32 1.0, %v4877
        %v4879 = vrcp.pop %v4748
        %v4880 = vmul.f32 1.0, %v4879
        %v4881 = vrcp.pop %v4749
        %v4882 = vmul.f32 1.0, %v4881
        %v4883 = vrcp.pop %v4750
        %v4884 = vmul.f32 1.0, %v4883
        %v4885 = vrcp.pop %v4751
        %v4886 = vmul.f32 1.0, %v4885
        %v4887 = vrcp.pop %v4752
        %v4888 = vmul.f32 1.0, %v4887
        %v4889 = vrcp.pop %v4753
        %v4890 = vmul.f32 1.0, %v4889
        %v4891 = vrcp.pop %v4754
        %v4892 = vmul.f32 1.0, %v4891
        %v4893 = vrcp.pop %v4755
        %v4894 = vmul.f32 1.0, %v4893
        %v4895 = vrcp.pop %v4756
        %v4896 = vmul.f32 1.0, %v4895
        %v4897 = vrcp.pop %v4757
        %v4898 = vmul.f32 1.0, %v4897
        %v4899 = vrcp.pop %v4758
        %v4900 = vmul.f32 1.0, %v4899
        %v4901 = vrcp.pop %v4759
        %v4902 = vmul.f32 1.0, %v4901
        %v4903 = vrcp.pop %v4760
        %v4904 = vmul.f32 1.0, %v4903
        %v4905 = vrcp.pop %v4761
        %v4906 = vmul.f32 1.0, %v4905
        %v4907 = vrcp.pop %v4762
        %v4908 = vmul.f32 1.0, %v4907
        %v4909 = vrcp.pop %v4763
        %v4910 = vmul.f32 1.0, %v4909
        %v4911 = vrcp.pop %v4764
        %v4912 = vmul.f32 1.0, %v4911
        %v4913 = vrcp.pop %v4765
        %v4914 = vmul.f32 1.0, %v4913
        %v4915 = vrcp.pop %v4766
        %v4916 = vmul.f32 1.0, %v4915
        %v4917 = vrcp.pop %v4767
        %v4918 = vmul.f32 1.0, %v4917
        %v4919 = vrcp.pop %v4768
        %v4920 = vmul.f32 1.0, %v4919
        %v4921 = vrcp.pop %v4769
        %v4922 = vmul.f32 1.0, %v4921
        %v4923 = vrcp.pop %v4770
        %v4924 = vmul.f32 1.0, %v4923
        %v4925 = vrcp.pop %v4771
        %v4926 = vmul.f32 1.0, %v4925
        %v4927 = vrcp.pop %v4772
        %v4928 = vmul.f32 1.0, %v4927
        %v4929 = vrcp.pop %v4773
        %v4930 = vmul.f32 1.0, %v4929
        %v4931 = vrcp.pop %v4774
        %v4932 = vmul.f32 1.0, %v4931
        %v4933 = vrcp.pop %v4775
        %v4934 = vmul.f32 1.0, %v4933
        %v4935 = vrcp.pop %v4776
        %v4936 = vmul.f32 1.0, %v4935
        %v4937 = vrcp.pop %v4777
        %v4938 = vmul.f32 1.0, %v4937
        %v4939 = vrcp.pop %v4778
        %v4940 = vmul.f32 1.0, %v4939
        %v4941 = vrcp.pop %v4779
        %v4942 = vmul.f32 1.0, %v4941
        %v4943 = vrcp.pop %v4780
        %v4944 = vmul.f32 1.0, %v4943
        %v4945 = vrcp.pop %v4781
        %v4946 = vmul.f32 1.0, %v4945
        %v4947 = vrcp.pop %v4782
        %v4948 = vmul.f32 1.0, %v4947
        %v4949 = vrcp.pop %v4783
        %v4950 = vmul.f32 1.0, %v4949
        %v4951 = vrcp.pop %v4784
        %v4952 = vmul.f32 1.0, %v4951
        %v4953 = vrcp.pop %v4785
        %v4954 = vmul.f32 1.0, %v4953
        %v4955 = vrcp.pop %v4786
        %v4956 = vmul.f32 1.0, %v4955
        %v4957 = vrcp.pop %v4787
        %v4958 = vmul.f32 1.0, %v4957
        %v4959 = vrcp.pop %v4788
        %v4960 = vmul.f32 1.0, %v4959
        %v4961 = vrcp.pop %v4789
        %v4962 = vmul.f32 1.0, %v4961
        %v4963 = vrcp.pop %v4790
        %v4964 = vmul.f32 1.0, %v4963
        %v4965 = vrcp.pop %v4791
        %v4966 = vmul.f32 1.0, %v4965
        %v4967 = vrcp.pop %v4792
        %v4968 = vmul.f32 1.0, %v4967
        %v4969 = vrcp.pop %v4793
        %v4970 = vmul.f32 1.0, %v4969
        %v4971 = vrcp.pop %v4794
        %v4972 = vmul.f32 1.0, %v4971
        %v4973 = vrcp.pop %v4795
        %v4974 = vmul.f32 1.0, %v4973
        %v4975 = vrcp.pop %v4796
        %v4976 = vmul.f32 1.0, %v4975
        %v4977 = vrcp.pop %v4797
        %v4978 = vmul.f32 1.0, %v4977
        %v4979 = vrcp.pop %v4798
        %v4980 = vmul.f32 1.0, %v4979
        %v4981 = vrcp.pop %v4799
        %v4982 = vmul.f32 1.0, %v4981
        %v4983 = vrcp.pop %v4800
        %v4984 = vmul.f32 1.0, %v4983
        %v4985 = vrcp.pop %v4801
        %v4986 = vmul.f32 1.0, %v4985
        %v4987 = vrcp.pop %v4802
        %v4988 = vmul.f32 1.0, %v4987
        %v4989 = vrcp.pop %v4803
        %v4990 = vmul.f32 1.0, %v4989
        %v4991 = vrcp.pop %v4804
        %v4992 = vmul.f32 1.0, %v4991
        %v4993 = vrcp.pop %v4805
        %v4994 = vmul.f32 1.0, %v4993
        %v4995 = vrcp.pop %v4806
        %v4996 = vmul.f32 1.0, %v4995
        %v4997 = vrcp.pop %v4807
        %v4998 = vmul.f32 1.0, %v4997
        %v4999 = vrcp.pop %v4808
        %v5000 = vmul.f32 1.0, %v4999
        %v5097 = vcombine.low %v4810, %v4812
        %v5098 = vcombine.low %v4814, %v4816
        %v5100 = vunpack.c.l.s4 1983009808
        %v5101 = vunpack.c.0.s8 %v5100
        %v5102 = vlaneseq
        %v5103 = vshrl.u32 %v5102, 7
        %v5104 = vsub.s32 %v5101, %v5103
        %v5105 = vrot.slane %v5097, %v5104
        %v5107 = vunpack.c.l.s4 1983009808
        %v5108 = vunpack.c.0.s8 %v5107
        %v5109 = vlaneseq
        %v5110 = vshrl.u32 %v5109, 7
        %v5111 = vsub.s32 %v5108, %v5110
        %v5112 = vrot.slane %v5098, %v5111
        %v5113 = vcombine.low %v5105, %v5112
        %v5114 = vcombine.low %v4818, %v4820
        %v5115 = vcombine.low %v4822, %v4824
        %v5117 = vunpack.c.l.s4 1983009808
        %v5118 = vunpack.c.0.s8 %v5117
        %v5119 = vlaneseq
        %v5120 = vshrl.u32 %v5119, 7
        %v5121 = vsub.s32 %v5118, %v5120
        %v5122 = vrot.slane %v5114, %v5121
        %v5124 = vunpack.c.l.s4 1983009808
        %v5125 = vunpack.c.0.s8 %v5124
        %v5126 = vlaneseq
        %v5127 = vshrl.u32 %v5126, 7
        %v5128 = vsub.s32 %v5125, %v5127
        %v5129 = vrot.slane %v5115, %v5128
        %v5130 = vcombine.low %v5122, %v5129
        %v5131 = vcombine.low %v4826, %v4828
        %v5132 = vcombine.low %v4830, %v4832
        %v5134 = vunpack.c.l.s4 1983009808
        %v5135 = vunpack.c.0.s8 %v5134
        %v5136 = vlaneseq
        %v5137 = vshrl.u32 %v5136, 7
        %v5138 = vsub.s32 %v5135, %v5137
        %v5139 = vrot.slane %v5131, %v5138
        %v5141 = vunpack.c.l.s4 1983009808
        %v5142 = vunpack.c.0.s8 %v5141
        %v5143 = vlaneseq
        %v5144 = vshrl.u32 %v5143, 7
        %v5145 = vsub.s32 %v5142, %v5144
        %v5146 = vrot.slane %v5132, %v5145
        %v5147 = vcombine.low %v5139, %v5146
        %v5148 = vcombine.low %v4834, %v4836
        %v5149 = vcombine.low %v4838, %v4840
        %v5151 = vunpack.c.l.s4 1983009808
        %v5152 = vunpack.c.0.s8 %v5151
        %v5153 = vlaneseq
        %v5154 = vshrl.u32 %v5153, 7
        %v5155 = vsub.s32 %v5152, %v5154
        %v5156 = vrot.slane %v5148, %v5155
        %v5158 = vunpack.c.l.s4 1983009808
        %v5159 = vunpack.c.0.s8 %v5158
        %v5160 = vlaneseq
        %v5161 = vshrl.u32 %v5160, 7
        %v5162 = vsub.s32 %v5159, %v5161
        %v5163 = vrot.slane %v5149, %v5162
        %v5164 = vcombine.low %v5156, %v5163
        %v5165 = vcombine.low %v4842, %v4844
        %v5166 = vcombine.low %v4846, %v4848
        %v5168 = vunpack.c.l.s4 1983009808
        %v5169 = vunpack.c.0.s8 %v5168
        %v5170 = vlaneseq
        %v5171 = vshrl.u32 %v5170, 7
        %v5172 = vsub.s32 %v5169, %v5171
        %v5173 = vrot.slane %v5165, %v5172
        %v5175 = vunpack.c.l.s4 1983009808
        %v5176 = vunpack.c.0.s8 %v5175
        %v5177 = vlaneseq
        %v5178 = vshrl.u32 %v5177, 7
        %v5179 = vsub.s32 %v5176, %v5178
        %v5180 = vrot.slane %v5166, %v5179
        %v5181 = vcombine.low %v5173, %v5180
        %v5182 = vcombine.low %v4850, %v4852
        %v5183 = vcombine.low %v4854, %v4856
        %v5185 = vunpack.c.l.s4 1983009808
        %v5186 = vunpack.c.0.s8 %v5185
        %v5187 = vlaneseq
        %v5188 = vshrl.u32 %v5187, 7
        %v5189 = vsub.s32 %v5186, %v5188
        %v5190 = vrot.slane %v5182, %v5189
        %v5192 = vunpack.c.l.s4 1983009808
        %v5193 = vunpack.c.0.s8 %v5192
        %v5194 = vlaneseq
        %v5195 = vshrl.u32 %v5194, 7
        %v5196 = vsub.s32 %v5193, %v5195
        %v5197 = vrot.slane %v5183, %v5196
        %v5198 = vcombine.low %v5190, %v5197
        %v5199 = vcombine.low %v4858, %v4860
        %v5200 = vcombine.low %v4862, %v4864
        %v5202 = vunpack.c.l.s4 1983009808
        %v5203 = vunpack.c.0.s8 %v5202
        %v5204 = vlaneseq
        %v5205 = vshrl.u32 %v5204, 7
        %v5206 = vsub.s32 %v5203, %v5205
        %v5207 = vrot.slane %v5199, %v5206
        %v5209 = vunpack.c.l.s4 1983009808
        %v5210 = vunpack.c.0.s8 %v5209
        %v5211 = vlaneseq
        %v5212 = vshrl.u32 %v5211, 7
        %v5213 = vsub.s32 %v5210, %v5212
        %v5214 = vrot.slane %v5200, %v5213
        %v5215 = vcombine.low %v5207, %v5214
        %v5216 = vcombine.low %v4866, %v4868
        %v5217 = vcombine.low %v4870, %v4872
        %v5219 = vunpack.c.l.s4 1983009808
        %v5220 = vunpack.c.0.s8 %v5219
        %v5221 = vlaneseq
        %v5222 = vshrl.u32 %v5221, 7
        %v5223 = vsub.s32 %v5220, %v5222
        %v5224 = vrot.slane %v5216, %v5223
        %v5226 = vunpack.c.l.s4 1983009808
        %v5227 = vunpack.c.0.s8 %v5226
        %v5228 = vlaneseq
        %v5229 = vshrl.u32 %v5228, 7
        %v5230 = vsub.s32 %v5227, %v5229
        %v5231 = vrot.slane %v5217, %v5230
        %v5232 = vcombine.low %v5224, %v5231
        %v5233 = vcombine.low %v4874, %v4876
        %v5234 = vcombine.low %v4878, %v4880
        %v5236 = vunpack.c.l.s4 1983009808
        %v5237 = vunpack.c.0.s8 %v5236
        %v5238 = vlaneseq
        %v5239 = vshrl.u32 %v5238, 7
        %v5240 = vsub.s32 %v5237, %v5239
        %v5241 = vrot.slane %v5233, %v5240
        %v5243 = vunpack.c.l.s4 1983009808
        %v5244 = vunpack.c.0.s8 %v5243
        %v5245 = vlaneseq
        %v5246 = vshrl.u32 %v5245, 7
        %v5247 = vsub.s32 %v5244, %v5246
        %v5248 = vrot.slane %v5234, %v5247
        %v5249 = vcombine.low %v5241, %v5248
        %v5250 = vcombine.low %v4882, %v4884
        %v5251 = vcombine.low %v4886, %v4888
        %v5253 = vunpack.c.l.s4 1983009808
        %v5254 = vunpack.c.0.s8 %v5253
        %v5255 = vlaneseq
        %v5256 = vshrl.u32 %v5255, 7
        %v5257 = vsub.s32 %v5254, %v5256
        %v5258 = vrot.slane %v5250, %v5257
        %v5260 = vunpack.c.l.s4 1983009808
        %v5261 = vunpack.c.0.s8 %v5260
        %v5262 = vlaneseq
        %v5263 = vshrl.u32 %v5262, 7
        %v5264 = vsub.s32 %v5261, %v5263
        %v5265 = vrot.slane %v5251, %v5264
        %v5266 = vcombine.low %v5258, %v5265
        %v5267 = vcombine.low %v4890, %v4892
        %v5268 = vcombine.low %v4894, %v4896
        %v5270 = vunpack.c.l.s4 1983009808
        %v5271 = vunpack.c.0.s8 %v5270
        %v5272 = vlaneseq
        %v5273 = vshrl.u32 %v5272, 7
        %v5274 = vsub.s32 %v5271, %v5273
        %v5275 = vrot.slane %v5267, %v5274
        %v5277 = vunpack.c.l.s4 1983009808
        %v5278 = vunpack.c.0.s8 %v5277
        %v5279 = vlaneseq
        %v5280 = vshrl.u32 %v5279, 7
        %v5281 = vsub.s32 %v5278, %v5280
        %v5282 = vrot.slane %v5268, %v5281
        %v5283 = vcombine.low %v5275, %v5282
        %v5284 = vcombine.low %v4898, %v4900
        %v5285 = vcombine.low %v4902, %v4904
        %v5287 = vunpack.c.l.s4 1983009808
        %v5288 = vunpack.c.0.s8 %v5287
        %v5289 = vlaneseq
        %v5290 = vshrl.u32 %v5289, 7
        %v5291 = vsub.s32 %v5288, %v5290
        %v5292 = vrot.slane %v5284, %v5291
        %v5294 = vunpack.c.l.s4 1983009808
        %v5295 = vunpack.c.0.s8 %v5294
        %v5296 = vlaneseq
        %v5297 = vshrl.u32 %v5296, 7
        %v5298 = vsub.s32 %v5295, %v5297
        %v5299 = vrot.slane %v5285, %v5298
        %v5300 = vcombine.low %v5292, %v5299
        %v5301 = vcombine.low %v4906, %v4908
        %v5302 = vcombine.low %v4910, %v4912
        %v5304 = vunpack.c.l.s4 1983009808
        %v5305 = vunpack.c.0.s8 %v5304
        %v5306 = vlaneseq
        %v5307 = vshrl.u32 %v5306, 7
        %v5308 = vsub.s32 %v5305, %v5307
        %v5309 = vrot.slane %v5301, %v5308
        %v5311 = vunpack.c.l.s4 1983009808
        %v5312 = vunpack.c.0.s8 %v5311
        %v5313 = vlaneseq
        %v5314 = vshrl.u32 %v5313, 7
        %v5315 = vsub.s32 %v5312, %v5314
        %v5316 = vrot.slane %v5302, %v5315
        %v5317 = vcombine.low %v5309, %v5316
        %v5318 = vcombine.low %v4914, %v4916
        %v5319 = vcombine.low %v4918, %v4920
        %v5321 = vunpack.c.l.s4 1983009808
        %v5322 = vunpack.c.0.s8 %v5321
        %v5323 = vlaneseq
        %v5324 = vshrl.u32 %v5323, 7
        %v5325 = vsub.s32 %v5322, %v5324
        %v5326 = vrot.slane %v5318, %v5325
        %v5328 = vunpack.c.l.s4 1983009808
        %v5329 = vunpack.c.0.s8 %v5328
        %v5330 = vlaneseq
        %v5331 = vshrl.u32 %v5330, 7
        %v5332 = vsub.s32 %v5329, %v5331
        %v5333 = vrot.slane %v5319, %v5332
        %v5334 = vcombine.low %v5326, %v5333
        %v5335 = vcombine.low %v4922, %v4924
        %v5336 = vcombine.low %v4926, %v4928
        %v5338 = vunpack.c.l.s4 1983009808
        %v5339 = vunpack.c.0.s8 %v5338
        %v5340 = vlaneseq
        %v5341 = vshrl.u32 %v5340, 7
        %v5342 = vsub.s32 %v5339, %v5341
        %v5343 = vrot.slane %v5335, %v5342
        %v5345 = vunpack.c.l.s4 1983009808
        %v5346 = vunpack.c.0.s8 %v5345
        %v5347 = vlaneseq
        %v5348 = vshrl.u32 %v5347, 7
        %v5349 = vsub.s32 %v5346, %v5348
        %v5350 = vrot.slane %v5336, %v5349
        %v5351 = vcombine.low %v5343, %v5350
        %v5352 = vcombine.low %v4930, %v4932
        %v5353 = vcombine.low %v4934, %v4936
        %v5355 = vunpack.c.l.s4 1983009808
        %v5356 = vunpack.c.0.s8 %v5355
        %v5357 = vlaneseq
        %v5358 = vshrl.u32 %v5357, 7
        %v5359 = vsub.s32 %v5356, %v5358
        %v5360 = vrot.slane %v5352, %v5359
        %v5362 = vunpack.c.l.s4 1983009808
        %v5363 = vunpack.c.0.s8 %v5362
        %v5364 = vlaneseq
        %v5365 = vshrl.u32 %v5364, 7
        %v5366 = vsub.s32 %v5363, %v5365
        %v5367 = vrot.slane %v5353, %v5366
        %v5368 = vcombine.low %v5360, %v5367
        %v5369 = vcombine.low %v4938, %v4940
        %v5370 = vcombine.low %v4942, %v4944
        %v5372 = vunpack.c.l.s4 1983009808
        %v5373 = vunpack.c.0.s8 %v5372
        %v5374 = vlaneseq
        %v5375 = vshrl.u32 %v5374, 7
        %v5376 = vsub.s32 %v5373, %v5375
        %v5377 = vrot.slane %v5369, %v5376
        %v5379 = vunpack.c.l.s4 1983009808
        %v5380 = vunpack.c.0.s8 %v5379
        %v5381 = vlaneseq
        %v5382 = vshrl.u32 %v5381, 7
        %v5383 = vsub.s32 %v5380, %v5382
        %v5384 = vrot.slane %v5370, %v5383
        %v5385 = vcombine.low %v5377, %v5384
        %v5386 = vcombine.low %v4946, %v4948
        %v5387 = vcombine.low %v4950, %v4952
        %v5389 = vunpack.c.l.s4 1983009808
        %v5390 = vunpack.c.0.s8 %v5389
        %v5391 = vlaneseq
        %v5392 = vshrl.u32 %v5391, 7
        %v5393 = vsub.s32 %v5390, %v5392
        %v5394 = vrot.slane %v5386, %v5393
        %v5396 = vunpack.c.l.s4 1983009808
        %v5397 = vunpack.c.0.s8 %v5396
        %v5398 = vlaneseq
        %v5399 = vshrl.u32 %v5398, 7
        %v5400 = vsub.s32 %v5397, %v5399
        %v5401 = vrot.slane %v5387, %v5400
        %v5402 = vcombine.low %v5394, %v5401
        %v5403 = vcombine.low %v4954, %v4956
        %v5404 = vcombine.low %v4958, %v4960
        %v5406 = vunpack.c.l.s4 1983009808
        %v5407 = vunpack.c.0.s8 %v5406
        %v5408 = vlaneseq
        %v5409 = vshrl.u32 %v5408, 7
        %v5410 = vsub.s32 %v5407, %v5409
        %v5411 = vrot.slane %v5403, %v5410
        %v5413 = vunpack.c.l.s4 1983009808
        %v5414 = vunpack.c.0.s8 %v5413
        %v5415 = vlaneseq
        %v5416 = vshrl.u32 %v5415, 7
        %v5417 = vsub.s32 %v5414, %v5416
        %v5418 = vrot.slane %v5404, %v5417
        %v5419 = vcombine.low %v5411, %v5418
        %v5420 = vcombine.low %v4962, %v4964
        %v5421 = vcombine.low %v4966, %v4968
        %v5423 = vunpack.c.l.s4 1983009808
        %v5424 = vunpack.c.0.s8 %v5423
        %v5425 = vlaneseq
        %v5426 = vshrl.u32 %v5425, 7
        %v5427 = vsub.s32 %v5424, %v5426
        %v5428 = vrot.slane %v5420, %v5427
        %v5430 = vunpack.c.l.s4 1983009808
        %v5431 = vunpack.c.0.s8 %v5430
        %v5432 = vlaneseq
        %v5433 = vshrl.u32 %v5432, 7
        %v5434 = vsub.s32 %v5431, %v5433
        %v5435 = vrot.slane %v5421, %v5434
        %v5436 = vcombine.low %v5428, %v5435
        %v5437 = vcombine.low %v4970, %v4972
        %v5438 = vcombine.low %v4974, %v4976
        %v5440 = vunpack.c.l.s4 1983009808
        %v5441 = vunpack.c.0.s8 %v5440
        %v5442 = vlaneseq
        %v5443 = vshrl.u32 %v5442, 7
        %v5444 = vsub.s32 %v5441, %v5443
        %v5445 = vrot.slane %v5437, %v5444
        %v5447 = vunpack.c.l.s4 1983009808
        %v5448 = vunpack.c.0.s8 %v5447
        %v5449 = vlaneseq
        %v5450 = vshrl.u32 %v5449, 7
        %v5451 = vsub.s32 %v5448, %v5450
        %v5452 = vrot.slane %v5438, %v5451
        %v5453 = vcombine.low %v5445, %v5452
        %v5454 = vcombine.low %v4978, %v4980
        %v5455 = vcombine.low %v4982, %v4984
        %v5457 = vunpack.c.l.s4 1983009808
        %v5458 = vunpack.c.0.s8 %v5457
        %v5459 = vlaneseq
        %v5460 = vshrl.u32 %v5459, 7
        %v5461 = vsub.s32 %v5458, %v5460
        %v5462 = vrot.slane %v5454, %v5461
        %v5464 = vunpack.c.l.s4 1983009808
        %v5465 = vunpack.c.0.s8 %v5464
        %v5466 = vlaneseq
        %v5467 = vshrl.u32 %v5466, 7
        %v5468 = vsub.s32 %v5465, %v5467
        %v5469 = vrot.slane %v5455, %v5468
        %v5470 = vcombine.low %v5462, %v5469
        %v5471 = vcombine.low %v4986, %v4988
        %v5472 = vcombine.low %v4990, %v4992
        %v5474 = vunpack.c.l.s4 1983009808
        %v5475 = vunpack.c.0.s8 %v5474
        %v5476 = vlaneseq
        %v5477 = vshrl.u32 %v5476, 7
        %v5478 = vsub.s32 %v5475, %v5477
        %v5479 = vrot.slane %v5471, %v5478
        %v5481 = vunpack.c.l.s4 1983009808
        %v5482 = vunpack.c.0.s8 %v5481
        %v5483 = vlaneseq
        %v5484 = vshrl.u32 %v5483, 7
        %v5485 = vsub.s32 %v5482, %v5484
        %v5486 = vrot.slane %v5472, %v5485
        %v5487 = vcombine.low %v5479, %v5486
        %v5488 = vcombine.low %v4994, %v4996
        %v5489 = vcombine.low %v4998, %v5000
        %v5491 = vunpack.c.l.s4 1983009808
        %v5492 = vunpack.c.0.s8 %v5491
        %v5493 = vlaneseq
        %v5494 = vshrl.u32 %v5493, 7
        %v5495 = vsub.s32 %v5492, %v5494
        %v5496 = vrot.slane %v5488, %v5495
        %v5498 = vunpack.c.l.s4 1983009808
        %v5499 = vunpack.c.0.s8 %v5498
        %v5500 = vlaneseq
        %v5501 = vshrl.u32 %v5500, 7
        %v5502 = vsub.s32 %v5499, %v5501
        %v5503 = vrot.slane %v5489, %v5502
        %v5504 = vcombine.low %v5496, %v5503
        %5529 = vst [vmem:[%s287] sm:$0xff] %v5113
        %5530 = vst [vmem:[%s287 + $0x8] sm:$0xff] %v5130
        %5531 = vst [vmem:[%s287 + $0x10] sm:$0xff] %v5147
        %5532 = vst [vmem:[%s287 + $0x18] sm:$0xff] %v5164
        %5533 = vst [vmem:[%s287 + $0x20] sm:$0xff] %v5181
        %5534 = vst [vmem:[%s287 + $0x28] sm:$0xff] %v5198
        %5535 = vst [vmem:[%s287 + $0x30] sm:$0xff] %v5215
        %5536 = vst [vmem:[%s287 + $0x38] sm:$0xff] %v5232
        %5537 = vst [vmem:[%s287 + $0x40] sm:$0xff] %v5249
        %5538 = vst [vmem:[%s287 + $0x48] sm:$0xff] %v5266
        %5539 = vst [vmem:[%s287 + $0x50] sm:$0xff] %v5283
        %5540 = vst [vmem:[%s287 + $0x58] sm:$0xff] %v5300
        %5541 = vst [vmem:[%s287 + $0x60] sm:$0xff] %v5317
        %5542 = vst [vmem:[%s287 + $0x68] sm:$0xff] %v5334
        %5543 = vst [vmem:[%s287 + $0x70] sm:$0xff] %v5351
        %5544 = vst [vmem:[%s287 + $0x78] sm:$0xff] %v5368
        %5545 = vst [vmem:[%s287 + $0x80] sm:$0xff] %v5385
        %5546 = vst [vmem:[%s287 + $0x88] sm:$0xff] %v5402
        %5547 = vst [vmem:[%s287 + $0x90] sm:$0xff] %v5419
        %5548 = vst [vmem:[%s287 + $0x98] sm:$0xff] %v5436
        %5549 = vst [vmem:[%s287 + $0xa0] sm:$0xff] %v5453
        %5550 = vst [vmem:[%s287 + $0xa8] sm:$0xff] %v5470
        %5551 = vst [vmem:[%s287 + $0xb0] sm:$0xff] %v5487
        %5552 = vst [vmem:[%s287 + $0xb8] sm:$0xff] %v5504
        %s5553 = smul.u32 96, %s18
        %p5554 = scmp.lt.s32.totalorder %s5553, 383
        %s5555 = scalar_select %p5554, %s5553, 383
        %s5556 = smul.addr %s5555, 2
        %s5557 = scalar_lea.vmem %s5, %s5556
        // Predicated region
        $region53: #{autoencoder_forward.1} parent=39 // pred_check
          %p5558 = pneg %p151
        $region54: #{autoencoder_forward.1} parent=39 // pred_check_branch
          %5560 = sbr.rel (%p5558) target = $region56
        $region55: #{autoencoder_forward.1} parent=39 // pred_region
          %s5561 = smul.u32 96, %s18
        $region56: #{autoencoder_forward.1} parent=39 // pred_fallthru
          _
      $region40: #{autoencoder_forward.1} parent=5 // pred_fallthru
        _
      %p5562 = scmp.le.s32.totalorder 2, %s13
      // Predicated region
      $region57: #{autoencoder_forward.1} parent=5 // pred_check
        %p5563 = pneg %p5562
      $region58: #{autoencoder_forward.1} parent=5 // pred_check_branch
        %5565 = sbr.rel (%p5563) target = $region60
      $region59: #{autoencoder_forward.1} parent=5 // pred_region
        %s5566 = ssub.s32 %s13, 2
        // Predicated region
        $region61: #{autoencoder_forward.1} parent=59 // pred_check
          %p5567 = pneg %p157
        $region62: #{autoencoder_forward.1} parent=59 // pred_check_branch
          %5569 = sbr.rel (%p5567) target = $region64
        $region63: #{autoencoder_forward.1} parent=59 // pred_region
          %s5570 = smul.u32 96, %s19
          %p5571 = scmp.lt.s32.totalorder %s5570, 383
          %s5572 = scalar_select %p5571, %s5570, 383
          %s5573 = smul.addr %s5572, 2
          %s5574 = scalar_lea.vmem %s5, %s5573
        $region64: #{autoencoder_forward.1} parent=59 // pred_fallthru
          _
      $region60: #{autoencoder_forward.1} parent=5 // pred_fallthru
        _
    $region6: #{autoencoder_forward.1} parent=1 // loop_footer
      %s17 = sadd.s32 1, %s13
    $region7: #{autoencoder_forward.1} parent=1 // loop_footer_branch
      %12 = sbr.rel target = $region3
    $region8: #{autoencoder_forward.1} parent=1 // loop_exit
      _
    %5575 = vsyncpa [#allocation3], 1
    %s5576 = scalar_lea.sflag [#allocation3], 1
    %5577 = vsyncpa %s5576, 1
    %5578 = vsyncpa [#allocation5], 1

</llo_original>
